<compile_context>
chip_gen: v5e
topology: v5e:2x2
jax: 0.10.0
libtpu: 0.0.40
codegen_flags: <defaults>
</compile_context>

<pallas_src>
import functools

import jax
import jax.numpy as jnp
from jax.experimental import pallas as pl
from jax.experimental.pallas import tpu as pltpu


def _round_up(x, m):
    return (x + m - 1) // m * m


# ------------------------------ fused kernel --------------------------------

def _fused_convnet_kernel(xd_ref, w1_ref, b1_ref, w2_ref, b2_ref,
                          wfc_ref, seg_ref, bfc_ref, o_ref, *,
                          w1_width, w2_width):
    W1W, W2W = w1_width, w2_width

    xd = xd_ref[0]                                            # (16, XW) f32

    # ---- conv1 (1->10, k5) + maxpool2 + relu ------------------------------
    # xd rows are the 16 (row%4, col%4) phases of the 28x28 input, lanes are
    # (n, a, b) over the 7x7 coarse grid (n*49 + a*7 + b).  The four lane
    # shifts {0,1,7,8} give every x[4a+u, 4b+v] needed for u,v in [0,8).
    r1 = jnp.concatenate([xd[:, s:s + W1W] for s in (0, 1, 7, 8)],
                         axis=0)                              # (64, W1W)
    out1 = jnp.dot(w1_ref[...], r1,
                   preferred_element_type=jnp.float32)        # (160, W1W)
    # rows = pool_offset*40 + parity*10 + cout  ->  max over the 4 offsets
    c1 = jnp.maximum(jnp.maximum(out1[0:40], out1[40:80]),
                     jnp.maximum(out1[80:120], out1[120:160]))
    y1 = jnp.maximum(c1 + b1_ref[...], 0.0)                   # (40, W1W)

    # ---- conv2 (10->20, k5) + maxpool2 + relu ------------------------------
    # Accumulate nine shifted dots instead of building a (360, W2W) im2col
    # concat: out2 += w2[q] (80,40) @ y1[:, qh*7+qw : ...+W2W].
    out2 = jnp.dot(w2_ref[0], y1[:, 0:W2W],
                   preferred_element_type=jnp.float32)        # (80, W2W)
    for q in range(1, 9):
        qh, qw = q // 3, q % 3
        s = qh * 7 + qw
        out2 = out2 + jnp.dot(w2_ref[q], y1[:, s:s + W2W],
                              preferred_element_type=jnp.float32)
    c2 = jnp.maximum(jnp.maximum(out2[0:20], out2[20:40]),
                     jnp.maximum(out2[40:60], out2[60:80]))
    m = jnp.maximum(c2 + b2_ref[...], 0.0)                    # (20, W2W)

    # ---- fc (320 -> 10) + log_softmax, vectorized over batch lanes ---------
    # wfc is the fc weight embedded on the 7x7 lane grid (zeros outside the
    # valid 4x4 pooled window) and pre-tiled across the batch lanes, so
    # invalid/garbage lanes contribute nothing.  One multiply, one cin-sum,
    # one MXU matmul against a (lanes, OB) one-hot segment-sum matrix.
    t = wfc_ref[...] * m[None, :, :]                          # (10, 20, W2W)
    u = jnp.sum(t, axis=1)                                    # (10, W2W)
    logits = jnp.dot(u, seg_ref[...],
                     preferred_element_type=jnp.float32) + bfc_ref[...]  # (10, OB)
    mx = jnp.max(logits, axis=0, keepdims=True)
    e = jnp.exp(logits - mx)
    lse = jnp.log(jnp.sum(e, axis=0, keepdims=True)) + mx
    o_ref[0] = (logits - lse).astype(o_ref.dtype)             # (10, OB)


# ------------------------- weight / input repacking --------------------------

def _build_conv1_weight(w1):
    """(10,1,5,5) -> (160,64): rows = pool*40 + parity*10 + cout,
       cols = (Qu*2+Qv)*16 + ru*4 + rv  (8x8 tap grid split by mod-4 phase)."""
    d_blocks = []
    for dy in range(2):
        for dx in range(2):
            g_blocks = []
            for sp in range(2):
                for tp in range(2):
                    ou, ov = 2 * sp + dy, 2 * tp + dx
                    emb = jnp.pad(w1[:, 0],
                                  ((0, 0), (ou, 3 - ou), (ov, 3 - ov)))
                    g_blocks.append(emb)                       # (10,8,8)
            d_blocks.append(jnp.stack(g_blocks, axis=0))       # (4,10,8,8)
    wb = jnp.stack(d_blocks, axis=0)                           # (4,4,10,8,8)
    wb = wb.reshape(4, 4, 10, 2, 4, 2, 4).transpose(0, 1, 2, 3, 5, 4, 6)
    return wb.reshape(160, 64)


def _build_conv2_weight(w2):
    """(20,10,5,5) -> (9,80,40): [q=qh*3+qw] blocks, rows = pool*20 + cout,
       cols = parity*10 + cin (6x6 tap grid split by mod-2 phase)."""
    blocks = []
    for dy in range(2):
        for dx in range(2):
            emb = jnp.pad(w2, ((0, 0), (0, 0), (dy, 1 - dy), (dx, 1 - dx)))
            emb = emb.reshape(20, 10, 3, 2, 3, 2).transpose(0, 2, 4, 3, 5, 1)
            blocks.append(emb.reshape(20, 360))
    w2big = jnp.concatenate(blocks, axis=0)                    # (80, 360)
    return w2big.reshape(80, 9, 40).transpose(1, 0, 2)         # (9, 80, 40)


def _build_fc_weight(wf):
    """(10,320) -> (10,20,49): embed the 4x4 pooled window into the 7x7 lane
       grid (zeros elsewhere), feature order matches torch .view (C,H,W)."""
    w = wf.reshape(10, 20, 4, 4)
    w = jnp.pad(w, ((0, 0), (0, 0), (0, 3), (0, 3)))
    return w.reshape(10, 20, 49)


# --------------------------------- wrapper -----------------------------------

def convnet_forward(x, params, batch_block=64):
    """Pallas implementation of ConvNet.forward.  x: (N, 1, 28, 28) f32."""
    w1, b1, w2, b2, wf, bf = params
    n = x.shape[0]

    B = min(batch_block, n)
    # Keep at least 2 blocks for large batches so both v7x TensorCores get work.
    if n > 32 and pl.cdiv(n, B) == 1:
        B = pl.cdiv(n, 2)
    nblk = pl.cdiv(n, B)
    npad = nblk * B

    lanes = B * 49                 # one 7x7 coarse grid per batch element
    w1w = lanes + 16               # conv1 output / y1 width (conv2 shift pad)
    w2w = lanes                    # conv2 output width
    xw = _round_up(lanes + 24, 128)
    ob = _round_up(B, 128)         # lane-dense output block (unmasked vst)

    # mod-4 spatial de-interleave of the input, batch folded into lanes.
    xp = jnp.pad(x[:, 0].astype(jnp.float32),
                 ((0, npad - n), (0, 0), (0, 0)))             # (npad,28,28)
    xd = xp.reshape(nblk, B, 7, 4, 7, 4).transpose(0, 3, 5, 1, 2, 4)
    xd = xd.reshape(nblk, 16, lanes)
    xd = jnp.pad(xd, ((0, 0), (0, 0), (0, xw - lanes)))       # (nblk,16,XW)

    w1big = _build_conv1_weight(w1)                           # (160, 64)
    b1t = jnp.tile(b1.reshape(1, 10), (4, 1)).reshape(40, 1)  # (40, 1)
    w2stk = _build_conv2_weight(w2)                           # (9, 80, 40)
    b2c = b2.reshape(20, 1)                                   # (20, 1)
    wfc_tiled = jnp.tile(_build_fc_weight(wf), (1, 1, B))     # (10, 20, lanes)
    # one-hot segment-sum matrix: lane l belongs to batch element l//49;
    # columns >= B stay all-zero (padded output lanes).
    seg = (jnp.arange(lanes)[:, None] // 49
           == jnp.arange(ob)[None, :]).astype(jnp.float32)    # (lanes, ob)
    bfc = bf.reshape(10, 1)                                   # (10, 1)

    # VMEM working-set estimate (f32) -> vmem_limit_bytes, clamped for v7x.
    est = 4 * (2 * 16 * xw                       # double-buffered input block
               + 160 * 64 + 40                   # conv1 weights/bias
               + 9 * 80 * 128 + 20               # conv2 weights/bias (lane pad)
               + 200 * w2w + w2w * ob + 10       # fc weight, segment matrix
               + (64 + 160 + 40) * w1w           # r1, out1, y1
               + (80 + 20 + 20) * w2w            # out2, c2, m
               + (200 + 10) * w2w                # fc product, cin-sum
               + 8 * 10 * ob)                    # logits / softmax temps / out
    vlim = max(32 * 1024 * 1024, min(2 * est, 56 * 1024 * 1024))

    kernel = functools.partial(_fused_convnet_kernel,
                               w1_width=w1w, w2_width=w2w)

    out = pl.pallas_call(
        kernel,
        out_shape=jax.ShapeDtypeStruct((nblk, 10, ob), jnp.float32),
        grid=(nblk,),
        in_specs=[
            pl.BlockSpec((1, 16, xw), lambda i: (i, 0, 0)),    # xd (per block)
            pl.BlockSpec((160, 64), lambda i: (0, 0)),         # w1big
            pl.BlockSpec((40, 1), lambda i: (0, 0)),           # b1 (tiled)
            pl.BlockSpec((9, 80, 40), lambda i: (0, 0, 0)),    # w2 blocks
            pl.BlockSpec((20, 1), lambda i: (0, 0)),           # b2
            pl.BlockSpec((10, 20, lanes), lambda i: (0, 0, 0)),  # fc weight
            pl.BlockSpec((lanes, ob), lambda i: (0, 0)),       # segment matrix
            pl.BlockSpec((10, 1), lambda i: (0, 0)),           # fc bias
        ],
        out_specs=pl.BlockSpec((1, 10, ob), lambda i: (i, 0, 0)),
        compiler_params=pltpu.CompilerParams(
            dimension_semantics=("parallel",),
            vmem_limit_bytes=int(vlim)),
    )(xd, w1big, b1t, w2stk, b2c, wfc_tiled, seg, bfc)

    # (nblk, 10, ob) -> (npad, 10), drop lane + batch padding.
    return out.transpose(0, 2, 1)[:, :B, :].reshape(npad, 10)[:n]


# ---------------------------- pure-JAX reference -----------------------------

def reference_forward(x, params):
    w1, b1, w2, b2, wf, bf = params

    def conv(a, w, b):
        y = jax.lax.conv_general_dilated(
            a, w, (1, 1), "VALID",
            dimension_numbers=("NCHW", "OIHW", "NCHW"))
        return y + b[None, :, None, None]

    def mp(a):
        return jax.lax.reduce_window(a, -jnp.inf, jax.lax.max,
                                     (1, 1, 2, 2), (1, 1, 2, 2), "VALID")

    a = jax.nn.relu(mp(conv(x, w1, b1)))
    a = jax.nn.relu(mp(conv(a, w2, b2)))
    a = a.reshape(x.shape[0], -1)
    logits = a @ wf.T + bf
    return jax.nn.log_softmax(logits, axis=-1)


# ----------------------------------- main ------------------------------------

if __name__ == "__main__":
    key = jax.random.PRNGKey(0)
    ks = jax.random.split(key, 8)

    # Deterministic synthetic parameters (PyTorch-like uniform(+-1/sqrt(fan))).
    def u(k, shape, fan_in):
        bound = 1.0 / (fan_in ** 0.5)
        return jax.random.uniform(k, shape, jnp.float32, -bound, bound)

    w1 = u(ks[0], (10, 1, 5, 5), 1 * 5 * 5)
    b1 = u(ks[1], (10,), 1 * 5 * 5)
    w2 = u(ks[2], (20, 10, 5, 5), 10 * 5 * 5)
    b2 = u(ks[3], (20,), 10 * 5 * 5)
    wf = u(ks[4], (10, 320), 320)
    bf = u(ks[5], (10,), 320)
    params = (w1, b1, w2, b2, wf, bf)

    # Input: batch=2, MNIST-sized (1, 28, 28) so the 320-wide fc matches.
    x = jax.random.normal(ks[6], (2, 1, 28, 28), jnp.float32)
    fwd = jax.jit(lambda xx: convnet_forward(xx, params))
    out = jax.block_until_ready(fwd(x))
    ref = reference_forward(x, params)
    assert out.shape == (2, 10)
    assert jnp.allclose(out, ref, atol=1e-3, rtol=1e-3), "mismatch vs reference"

    # Also exercise the multi-block grid + batch-padding path (3 blocks of 2).
    x2 = jax.random.normal(ks[7], (5, 1, 28, 28), jnp.float32)
    fwd2 = jax.jit(lambda xx: convnet_forward(xx, params, batch_block=2))
    out2 = jax.block_until_ready(fwd2(x2))
    ref2 = reference_forward(x2, params)
    assert out2.shape == (5, 10)
    assert jnp.allclose(out2, ref2, atol=1e-3, rtol=1e-3), \
        "mismatch vs reference (multi-block)"

    print("KERNEL_OK")
</pallas_src>

<mosaic_0001>
module attributes {stable_mosaic.version = 11 : i64} {
  func.func @_fused_convnet_kernel(%arg0: i32, %arg1: memref<1x16x128xf32, #tpu.memory_space<vmem>>, %arg2: memref<160x64xf32, #tpu.memory_space<vmem>>, %arg3: memref<40x1xf32, #tpu.memory_space<vmem>>, %arg4: memref<9x80x40xf32, #tpu.memory_space<vmem>>, %arg5: memref<20x1xf32, #tpu.memory_space<vmem>>, %arg6: memref<10x20x98xf32, #tpu.memory_space<vmem>>, %arg7: memref<98x128xf32, #tpu.memory_space<vmem>>, %arg8: memref<10x1xf32, #tpu.memory_space<vmem>>, %arg9: memref<1x10x128xf32, #tpu.memory_space<vmem>>) attributes {dimension_semantics = [#tpu.dimension_semantics<parallel>], iteration_bounds = array<i64: 1>, scalar_prefetch = 0 : i64, scratch_operands = 0 : i64, tpu.core_type = #tpu.core_type<tc>, window_params = [{transform_indices = @transform_0, window_bounds = array<i64: 1, 16, 128>}, {pipeline_mode = #tpu.pipeline_mode<synchronous>, transform_indices = @transform_1, window_bounds = array<i64: 160, 64>}, {pipeline_mode = #tpu.pipeline_mode<synchronous>, transform_indices = @transform_2, window_bounds = array<i64: 40, 1>}, {pipeline_mode = #tpu.pipeline_mode<synchronous>, transform_indices = @transform_3, window_bounds = array<i64: 9, 80, 40>}, {pipeline_mode = #tpu.pipeline_mode<synchronous>, transform_indices = @transform_4, window_bounds = array<i64: 20, 1>}, {pipeline_mode = #tpu.pipeline_mode<synchronous>, transform_indices = @transform_5, window_bounds = array<i64: 10, 20, 98>}, {pipeline_mode = #tpu.pipeline_mode<synchronous>, transform_indices = @transform_6, window_bounds = array<i64: 98, 128>}, {pipeline_mode = #tpu.pipeline_mode<synchronous>, transform_indices = @transform_7, window_bounds = array<i64: 10, 1>}, {transform_indices = @transform_8, window_bounds = array<i64: 1, 10, 128>}]} {
    %c0 = arith.constant 0 : index
    %c0_0 = arith.constant 0 : index
    %c0_1 = arith.constant 0 : index
    %0 = vector.load %arg1[%c0, %c0_0, %c0_1] : memref<1x16x128xf32, #tpu.memory_space<vmem>>, vector<1x16x128xf32>
    %1 = vector.shape_cast %0 : vector<1x16x128xf32> to vector<16x128xf32>
    %2 = vector.extract_strided_slice %1 {offsets = [0, 0], sizes = [16, 114], strides = [1, 1]} : vector<16x128xf32> to vector<16x114xf32>
    %3 = vector.extract_strided_slice %1 {offsets = [0, 1], sizes = [16, 114], strides = [1, 1]} : vector<16x128xf32> to vector<16x114xf32>
    %4 = vector.extract_strided_slice %1 {offsets = [0, 7], sizes = [16, 114], strides = [1, 1]} : vector<16x128xf32> to vector<16x114xf32>
    %5 = vector.extract_strided_slice %1 {offsets = [0, 8], sizes = [16, 114], strides = [1, 1]} : vector<16x128xf32> to vector<16x114xf32>
    %6 = tpu.concatenate %2, %3, %4, %5 in 0 : vector<16x114xf32>, vector<16x114xf32>, vector<16x114xf32>, vector<16x114xf32> -> vector<64x114xf32>
    %c0_2 = arith.constant 0 : index
    %c0_3 = arith.constant 0 : index
    %7 = vector.load %arg2[%c0_2, %c0_3] : memref<160x64xf32, #tpu.memory_space<vmem>>, vector<160x64xf32>
    %cst = arith.constant dense<0.000000e+00> : vector<160x114xf32>
    %8 = tpu.matmul %7, %6, %cst {dimension_numbers = #tpu.dot_dimension_numbers<[1], [0], [0], [1], [0, 0, 1, 1], [], []>} : vector<160x64xf32>, vector<64x114xf32>, vector<160x114xf32> -> vector<160x114xf32>
    %9 = vector.extract_strided_slice %8 {offsets = [0, 0], sizes = [40, 114], strides = [1, 1]} : vector<160x114xf32> to vector<40x114xf32>
    %10 = vector.extract_strided_slice %8 {offsets = [40, 0], sizes = [40, 114], strides = [1, 1]} : vector<160x114xf32> to vector<40x114xf32>
    %11 = arith.maximumf %9, %10 : vector<40x114xf32>
    %12 = vector.extract_strided_slice %8 {offsets = [80, 0], sizes = [40, 114], strides = [1, 1]} : vector<160x114xf32> to vector<40x114xf32>
    %13 = vector.extract_strided_slice %8 {offsets = [120, 0], sizes = [40, 114], strides = [1, 1]} : vector<160x114xf32> to vector<40x114xf32>
    %14 = arith.maximumf %12, %13 : vector<40x114xf32>
    %15 = arith.maximumf %11, %14 : vector<40x114xf32>
    %c0_4 = arith.constant 0 : index
    %c0_5 = arith.constant 0 : index
    %16 = vector.load %arg3[%c0_4, %c0_5] : memref<40x1xf32, #tpu.memory_space<vmem>>, vector<40x1xf32>
    %17 = vector.broadcast %16 : vector<40x1xf32> to vector<40x114xf32>
    %18 = arith.addf %15, %17 : vector<40x114xf32>
    %cst_6 = arith.constant 0.000000e+00 : f32
    %19 = vector.broadcast %cst_6 : f32 to vector<40x114xf32>
    %20 = arith.maximumf %18, %19 : vector<40x114xf32>
    %c0_7 = arith.constant 0 : index
    %c0_8 = arith.constant 0 : index
    %c0_9 = arith.constant 0 : index
    %21 = vector.load %arg4[%c0_7, %c0_8, %c0_9] : memref<9x80x40xf32, #tpu.memory_space<vmem>>, vector<1x80x40xf32>
    %22 = vector.shape_cast %21 : vector<1x80x40xf32> to vector<80x40xf32>
    %23 = vector.extract_strided_slice %20 {offsets = [0, 0], sizes = [40, 98], strides = [1, 1]} : vector<40x114xf32> to vector<40x98xf32>
    %cst_10 = arith.constant dense<0.000000e+00> : vector<80x98xf32>
    %24 = tpu.matmul %22, %23, %cst_10 {dimension_numbers = #tpu.dot_dimension_numbers<[1], [0], [0], [1], [0, 0, 1, 1], [], []>} : vector<80x40xf32>, vector<40x98xf32>, vector<80x98xf32> -> vector<80x98xf32>
    %c1 = arith.constant 1 : index
    %c0_11 = arith.constant 0 : index
    %c0_12 = arith.constant 0 : index
    %25 = vector.load %arg4[%c1, %c0_11, %c0_12] : memref<9x80x40xf32, #tpu.memory_space<vmem>>, vector<1x80x40xf32>
    %26 = vector.shape_cast %25 : vector<1x80x40xf32> to vector<80x40xf32>
    %27 = vector.extract_strided_slice %20 {offsets = [0, 1], sizes = [40, 98], strides = [1, 1]} : vector<40x114xf32> to vector<40x98xf32>
    %cst_13 = arith.constant dense<0.000000e+00> : vector<80x98xf32>
    %28 = tpu.matmul %26, %27, %cst_13 {dimension_numbers = #tpu.dot_dimension_numbers<[1], [0], [0], [1], [0, 0, 1, 1], [], []>} : vector<80x40xf32>, vector<40x98xf32>, vector<80x98xf32> -> vector<80x98xf32>
    %29 = arith.addf %24, %28 : vector<80x98xf32>
    %c2 = arith.constant 2 : index
    %c0_14 = arith.constant 0 : index
    %c0_15 = arith.constant 0 : index
    %30 = vector.load %arg4[%c2, %c0_14, %c0_15] : memref<9x80x40xf32, #tpu.memory_space<vmem>>, vector<1x80x40xf32>
    %31 = vector.shape_cast %30 : vector<1x80x40xf32> to vector<80x40xf32>
    %32 = vector.extract_strided_slice %20 {offsets = [0, 2], sizes = [40, 98], strides = [1, 1]} : vector<40x114xf32> to vector<40x98xf32>
    %cst_16 = arith.constant dense<0.000000e+00> : vector<80x98xf32>
    %33 = tpu.matmul %31, %32, %cst_16 {dimension_numbers = #tpu.dot_dimension_numbers<[1], [0], [0], [1], [0, 0, 1, 1], [], []>} : vector<80x40xf32>, vector<40x98xf32>, vector<80x98xf32> -> vector<80x98xf32>
    %34 = arith.addf %29, %33 : vector<80x98xf32>
    %c3 = arith.constant 3 : index
    %c0_17 = arith.constant 0 : index
    %c0_18 = arith.constant 0 : index
    %35 = vector.load %arg4[%c3, %c0_17, %c0_18] : memref<9x80x40xf32, #tpu.memory_space<vmem>>, vector<1x80x40xf32>
    %36 = vector.shape_cast %35 : vector<1x80x40xf32> to vector<80x40xf32>
    %37 = vector.extract_strided_slice %20 {offsets = [0, 7], sizes = [40, 98], strides = [1, 1]} : vector<40x114xf32> to vector<40x98xf32>
    %cst_19 = arith.constant dense<0.000000e+00> : vector<80x98xf32>
    %38 = tpu.matmul %36, %37, %cst_19 {dimension_numbers = #tpu.dot_dimension_numbers<[1], [0], [0], [1], [0, 0, 1, 1], [], []>} : vector<80x40xf32>, vector<40x98xf32>, vector<80x98xf32> -> vector<80x98xf32>
    %39 = arith.addf %34, %38 : vector<80x98xf32>
    %c4 = arith.constant 4 : index
    %c0_20 = arith.constant 0 : index
    %c0_21 = arith.constant 0 : index
    %40 = vector.load %arg4[%c4, %c0_20, %c0_21] : memref<9x80x40xf32, #tpu.memory_space<vmem>>, vector<1x80x40xf32>
    %41 = vector.shape_cast %40 : vector<1x80x40xf32> to vector<80x40xf32>
    %42 = vector.extract_strided_slice %20 {offsets = [0, 8], sizes = [40, 98], strides = [1, 1]} : vector<40x114xf32> to vector<40x98xf32>
    %cst_22 = arith.constant dense<0.000000e+00> : vector<80x98xf32>
    %43 = tpu.matmul %41, %42, %cst_22 {dimension_numbers = #tpu.dot_dimension_numbers<[1], [0], [0], [1], [0, 0, 1, 1], [], []>} : vector<80x40xf32>, vector<40x98xf32>, vector<80x98xf32> -> vector<80x98xf32>
    %44 = arith.addf %39, %43 : vector<80x98xf32>
    %c5 = arith.constant 5 : index
    %c0_23 = arith.constant 0 : index
    %c0_24 = arith.constant 0 : index
    %45 = vector.load %arg4[%c5, %c0_23, %c0_24] : memref<9x80x40xf32, #tpu.memory_space<vmem>>, vector<1x80x40xf32>
    %46 = vector.shape_cast %45 : vector<1x80x40xf32> to vector<80x40xf32>
    %47 = vector.extract_strided_slice %20 {offsets = [0, 9], sizes = [40, 98], strides = [1, 1]} : vector<40x114xf32> to vector<40x98xf32>
    %cst_25 = arith.constant dense<0.000000e+00> : vector<80x98xf32>
    %48 = tpu.matmul %46, %47, %cst_25 {dimension_numbers = #tpu.dot_dimension_numbers<[1], [0], [0], [1], [0, 0, 1, 1], [], []>} : vector<80x40xf32>, vector<40x98xf32>, vector<80x98xf32> -> vector<80x98xf32>
    %49 = arith.addf %44, %48 : vector<80x98xf32>
    %c6 = arith.constant 6 : index
    %c0_26 = arith.constant 0 : index
    %c0_27 = arith.constant 0 : index
    %50 = vector.load %arg4[%c6, %c0_26, %c0_27] : memref<9x80x40xf32, #tpu.memory_space<vmem>>, vector<1x80x40xf32>
    %51 = vector.shape_cast %50 : vector<1x80x40xf32> to vector<80x40xf32>
    %52 = vector.extract_strided_slice %20 {offsets = [0, 14], sizes = [40, 98], strides = [1, 1]} : vector<40x114xf32> to vector<40x98xf32>
    %cst_28 = arith.constant dense<0.000000e+00> : vector<80x98xf32>
    %53 = tpu.matmul %51, %52, %cst_28 {dimension_numbers = #tpu.dot_dimension_numbers<[1], [0], [0], [1], [0, 0, 1, 1], [], []>} : vector<80x40xf32>, vector<40x98xf32>, vector<80x98xf32> -> vector<80x98xf32>
    %54 = arith.addf %49, %53 : vector<80x98xf32>
    %c7 = arith.constant 7 : index
    %c0_29 = arith.constant 0 : index
    %c0_30 = arith.constant 0 : index
    %55 = vector.load %arg4[%c7, %c0_29, %c0_30] : memref<9x80x40xf32, #tpu.memory_space<vmem>>, vector<1x80x40xf32>
    %56 = vector.shape_cast %55 : vector<1x80x40xf32> to vector<80x40xf32>
    %57 = vector.extract_strided_slice %20 {offsets = [0, 15], sizes = [40, 98], strides = [1, 1]} : vector<40x114xf32> to vector<40x98xf32>
    %cst_31 = arith.constant dense<0.000000e+00> : vector<80x98xf32>
    %58 = tpu.matmul %56, %57, %cst_31 {dimension_numbers = #tpu.dot_dimension_numbers<[1], [0], [0], [1], [0, 0, 1, 1], [], []>} : vector<80x40xf32>, vector<40x98xf32>, vector<80x98xf32> -> vector<80x98xf32>
    %59 = arith.addf %54, %58 : vector<80x98xf32>
    %c8 = arith.constant 8 : index
    %c0_32 = arith.constant 0 : index
    %c0_33 = arith.constant 0 : index
    %60 = vector.load %arg4[%c8, %c0_32, %c0_33] : memref<9x80x40xf32, #tpu.memory_space<vmem>>, vector<1x80x40xf32>
    %61 = vector.shape_cast %60 : vector<1x80x40xf32> to vector<80x40xf32>
    %62 = vector.extract_strided_slice %20 {offsets = [0, 16], sizes = [40, 98], strides = [1, 1]} : vector<40x114xf32> to vector<40x98xf32>
    %cst_34 = arith.constant dense<0.000000e+00> : vector<80x98xf32>
    %63 = tpu.matmul %61, %62, %cst_34 {dimension_numbers = #tpu.dot_dimension_numbers<[1], [0], [0], [1], [0, 0, 1, 1], [], []>} : vector<80x40xf32>, vector<40x98xf32>, vector<80x98xf32> -> vector<80x98xf32>
    %64 = arith.addf %59, %63 : vector<80x98xf32>
    %65 = vector.extract_strided_slice %64 {offsets = [0, 0], sizes = [20, 98], strides = [1, 1]} : vector<80x98xf32> to vector<20x98xf32>
    %66 = vector.extract_strided_slice %64 {offsets = [20, 0], sizes = [20, 98], strides = [1, 1]} : vector<80x98xf32> to vector<20x98xf32>
    %67 = arith.maximumf %65, %66 : vector<20x98xf32>
    %68 = vector.extract_strided_slice %64 {offsets = [40, 0], sizes = [20, 98], strides = [1, 1]} : vector<80x98xf32> to vector<20x98xf32>
    %69 = vector.extract_strided_slice %64 {offsets = [60, 0], sizes = [20, 98], strides = [1, 1]} : vector<80x98xf32> to vector<20x98xf32>
    %70 = arith.maximumf %68, %69 : vector<20x98xf32>
    %71 = arith.maximumf %67, %70 : vector<20x98xf32>
    %c0_35 = arith.constant 0 : index
    %c0_36 = arith.constant 0 : index
    %72 = vector.load %arg5[%c0_35, %c0_36] : memref<20x1xf32, #tpu.memory_space<vmem>>, vector<20x1xf32>
    %73 = vector.broadcast %72 : vector<20x1xf32> to vector<20x98xf32>
    %74 = arith.addf %71, %73 : vector<20x98xf32>
    %cst_37 = arith.constant 0.000000e+00 : f32
    %75 = vector.broadcast %cst_37 : f32 to vector<20x98xf32>
    %76 = arith.maximumf %74, %75 : vector<20x98xf32>
    %c0_38 = arith.constant 0 : index
    %c0_39 = arith.constant 0 : index
    %c0_40 = arith.constant 0 : index
    %77 = vector.load %arg6[%c0_38, %c0_39, %c0_40] : memref<10x20x98xf32, #tpu.memory_space<vmem>>, vector<10x20x98xf32>
    %78 = vector.shape_cast %76 : vector<20x98xf32> to vector<1x20x98xf32>
    %79 = vector.broadcast %78 : vector<1x20x98xf32> to vector<10x20x98xf32>
    %80 = arith.mulf %77, %79 : vector<10x20x98xf32>
    %cst_41 = arith.constant dense<0.000000e+00> : vector<10x98xf32>
    %81 = vector.multi_reduction <add>, %80, %cst_41 [1] : vector<10x20x98xf32> to vector<10x98xf32>
    %c0_42 = arith.constant 0 : index
    %c0_43 = arith.constant 0 : index
    %82 = vector.load %arg7[%c0_42, %c0_43] : memref<98x128xf32, #tpu.memory_space<vmem>>, vector<98x128xf32>
    %cst_44 = arith.constant dense<0.000000e+00> : vector<10x128xf32>
    %83 = tpu.matmul %81, %82, %cst_44 {dimension_numbers = #tpu.dot_dimension_numbers<[1], [0], [0], [1], [0, 0, 1, 1], [], []>} : vector<10x98xf32>, vector<98x128xf32>, vector<10x128xf32> -> vector<10x128xf32>
    %c0_45 = arith.constant 0 : index
    %c0_46 = arith.constant 0 : index
    %84 = vector.load %arg8[%c0_45, %c0_46] : memref<10x1xf32, #tpu.memory_space<vmem>>, vector<10x1xf32>
    %85 = vector.broadcast %84 : vector<10x1xf32> to vector<10x128xf32>
    %86 = arith.addf %83, %85 : vector<10x128xf32>
    %cst_47 = arith.constant dense<0xFF800000> : vector<128xf32>
    %87 = vector.multi_reduction <maximumf>, %86, %cst_47 [0] : vector<10x128xf32> to vector<128xf32>
    %88 = vector.shape_cast %87 : vector<128xf32> to vector<1x128xf32>
    %89 = vector.broadcast %88 : vector<1x128xf32> to vector<10x128xf32>
    %90 = arith.subf %86, %89 : vector<10x128xf32>
    %91 = math.exp %90 : vector<10x128xf32>
    %cst_48 = arith.constant dense<0.000000e+00> : vector<128xf32>
    %92 = vector.multi_reduction <add>, %91, %cst_48 [0] : vector<10x128xf32> to vector<128xf32>
    %93 = vector.shape_cast %92 : vector<128xf32> to vector<1x128xf32>
    %94 = math.log %93 : vector<1x128xf32>
    %95 = arith.addf %94, %88 : vector<1x128xf32>
    %96 = vector.broadcast %95 : vector<1x128xf32> to vector<10x128xf32>
    %97 = arith.subf %86, %96 : vector<10x128xf32>
    %c0_49 = arith.constant 0 : index
    %c0_50 = arith.constant 0 : index
    %c0_51 = arith.constant 0 : index
    %98 = vector.load %arg9[%c0_49, %c0_50, %c0_51] : memref<1x10x128xf32, #tpu.memory_space<vmem>>, vector<1x10x128xf32>
    %99 = vector.shape_cast %98 : vector<1x10x128xf32> to vector<10x128xf32>
    %100 = vector.shape_cast %97 : vector<10x128xf32> to vector<1x10x128xf32>
    tpu.vector_store %arg9[%c0_49, %c0_50, %c0_51], %100 {strides = array<i32>} : memref<1x10x128xf32, #tpu.memory_space<vmem>>, vector<1x10x128xf32>,
    return
  }
  func.func @transform_0(%arg0: i32) -> (i32, i32, i32) {
    %c0_i32 = arith.constant 0 : i32
    %c0_i32_0 = arith.constant 0 : i32
    %c0_i32_1 = arith.constant 0 : i32
    return %arg0, %c0_i32, %c0_i32_0 : i32, i32, i32
  }
  func.func @transform_1(%arg0: i32) -> (i32, i32) {
    %c0_i32 = arith.constant 0 : i32
    %c0_i32_0 = arith.constant 0 : i32
    %c0_i32_1 = arith.constant 0 : i32
    return %c0_i32, %c0_i32_0 : i32, i32
  }
  func.func @transform_2(%arg0: i32) -> (i32, i32) {
    %c0_i32 = arith.constant 0 : i32
    %c0_i32_0 = arith.constant 0 : i32
    %c0_i32_1 = arith.constant 0 : i32
    return %c0_i32, %c0_i32_0 : i32, i32
  }
  func.func @transform_3(%arg0: i32) -> (i32, i32, i32) {
    %c0_i32 = arith.constant 0 : i32
    %c0_i32_0 = arith.constant 0 : i32
    %c0_i32_1 = arith.constant 0 : i32
    %c0_i32_2 = arith.constant 0 : i32
    return %c0_i32, %c0_i32_0, %c0_i32_1 : i32, i32, i32
  }
  func.func @transform_4(%arg0: i32) -> (i32, i32) {
    %c0_i32 = arith.constant 0 : i32
    %c0_i32_0 = arith.constant 0 : i32
    %c0_i32_1 = arith.constant 0 : i32
    return %c0_i32, %c0_i32_0 : i32, i32
  }
  func.func @transform_5(%arg0: i32) -> (i32, i32, i32) {
    %c0_i32 = arith.constant 0 : i32
    %c0_i32_0 = arith.constant 0 : i32
    %c0_i32_1 = arith.constant 0 : i32
    %c0_i32_2 = arith.constant 0 : i32
    return %c0_i32, %c0_i32_0, %c0_i32_1 : i32, i32, i32
  }
  func.func @transform_6(%arg0: i32) -> (i32, i32) {
    %c0_i32 = arith.constant 0 : i32
    %c0_i32_0 = arith.constant 0 : i32
    %c0_i32_1 = arith.constant 0 : i32
    return %c0_i32, %c0_i32_0 : i32, i32
  }
  func.func @transform_7(%arg0: i32) -> (i32, i32) {
    %c0_i32 = arith.constant 0 : i32
    %c0_i32_0 = arith.constant 0 : i32
    %c0_i32_1 = arith.constant 0 : i32
    return %c0_i32, %c0_i32_0 : i32, i32
  }
  func.func @transform_8(%arg0: i32) -> (i32, i32, i32) {
    %c0_i32 = arith.constant 0 : i32
    %c0_i32_0 = arith.constant 0 : i32
    %c0_i32_1 = arith.constant 0 : i32
    return %arg0, %c0_i32, %c0_i32_0 : i32, i32, i32
  }
}

</mosaic_0001>

<llo_original>
// kernel: tile.15
$region0: #{tile.15}
  %s0 = inlined_call_operand.vmem [shape: f32[10,20,2,49], index: 0, kind: input, shape index: {}]
  %s1 = inlined_call_operand.vmem [shape: f32[10,20,98], index: 1, kind: output, shape index: {}]
  $region1: #{tile.15} parent=0
    #allocation0 [shape = 'u8[819200]{0}', space=vmem, size = 0xc8000, scoped, tag = 'scoped mem for input reshape']
    %s3 = ssub.s32 4, 1
    %s4 = scalar_lea.vmem %s0, 398
    %v5 = vld [vmem:[%s4] sm:%s3]
    %s6 = scalar_lea.vmem [#allocation0], 1592
    %7 = vst [vmem:[%s6] sm:%s3] %v5
    %s8 = scalar_lea.vmem %s0, 396
    %v9 = vld [vmem:[%s8] sm:%s3]
    %s10 = scalar_lea.vmem [#allocation0], 1584
    %11 = vst [vmem:[%s10] sm:%s3] %v9
    %s12 = scalar_lea.vmem %s0, 394
    %v13 = vld [vmem:[%s12] sm:%s3]
    %s14 = scalar_lea.vmem [#allocation0], 1576
    %15 = vst [vmem:[%s14] sm:%s3] %v13
    %s16 = scalar_lea.vmem %s0, 392
    %v17 = vld [vmem:[%s16] sm:%s3]
    %s18 = scalar_lea.vmem [#allocation0], 1568
    %19 = vst [vmem:[%s18] sm:%s3] %v17
    %s20 = scalar_lea.vmem %s0, 390
    %v21 = vld [vmem:[%s20] sm:%s3]
    %s22 = scalar_lea.vmem [#allocation0], 1560
    %23 = vst [vmem:[%s22] sm:%s3] %v21
    %s24 = scalar_lea.vmem %s0, 388
    %v25 = vld [vmem:[%s24] sm:%s3]
    %s26 = scalar_lea.vmem [#allocation0], 1552
    %27 = vst [vmem:[%s26] sm:%s3] %v25
    %s28 = scalar_lea.vmem %s0, 386
    %v29 = vld [vmem:[%s28] sm:%s3]
    %s30 = scalar_lea.vmem [#allocation0], 1544
    %31 = vst [vmem:[%s30] sm:%s3] %v29
    %s32 = scalar_lea.vmem %s0, 384
    %v33 = vld [vmem:[%s32] sm:%s3]
    %s34 = scalar_lea.vmem [#allocation0], 1536
    %35 = vst [vmem:[%s34] sm:%s3] %v33
    %s36 = scalar_lea.vmem %s0, 382
    %v37 = vld [vmem:[%s36] sm:%s3]
    %s38 = scalar_lea.vmem [#allocation0], 1528
    %39 = vst [vmem:[%s38] sm:%s3] %v37
    %s40 = scalar_lea.vmem %s0, 380
    %v41 = vld [vmem:[%s40] sm:%s3]
    %s42 = scalar_lea.vmem [#allocation0], 1520
    %43 = vst [vmem:[%s42] sm:%s3] %v41
    %s44 = scalar_lea.vmem %s0, 378
    %v45 = vld [vmem:[%s44] sm:%s3]
    %s46 = scalar_lea.vmem [#allocation0], 1512
    %47 = vst [vmem:[%s46] sm:%s3] %v45
    %s48 = scalar_lea.vmem %s0, 376
    %v49 = vld [vmem:[%s48] sm:%s3]
    %s50 = scalar_lea.vmem [#allocation0], 1504
    %51 = vst [vmem:[%s50] sm:%s3] %v49
    %s52 = scalar_lea.vmem %s0, 374
    %v53 = vld [vmem:[%s52] sm:%s3]
    %s54 = scalar_lea.vmem [#allocation0], 1496
    %55 = vst [vmem:[%s54] sm:%s3] %v53
    %s56 = scalar_lea.vmem %s0, 372
    %v57 = vld [vmem:[%s56] sm:%s3]
    %s58 = scalar_lea.vmem [#allocation0], 1488
    %59 = vst [vmem:[%s58] sm:%s3] %v57
    %s60 = scalar_lea.vmem %s0, 370
    %v61 = vld [vmem:[%s60] sm:%s3]
    %s62 = scalar_lea.vmem [#allocation0], 1480
    %63 = vst [vmem:[%s62] sm:%s3] %v61
    %s64 = scalar_lea.vmem %s0, 368
    %v65 = vld [vmem:[%s64] sm:%s3]
    %s66 = scalar_lea.vmem [#allocation0], 1472
    %67 = vst [vmem:[%s66] sm:%s3] %v65
    %s68 = scalar_lea.vmem %s0, 366
    %v69 = vld [vmem:[%s68] sm:%s3]
    %s70 = scalar_lea.vmem [#allocation0], 1464
    %71 = vst [vmem:[%s70] sm:%s3] %v69
    %s72 = scalar_lea.vmem %s0, 364
    %v73 = vld [vmem:[%s72] sm:%s3]
    %s74 = scalar_lea.vmem [#allocation0], 1456
    %75 = vst [vmem:[%s74] sm:%s3] %v73
    %s76 = scalar_lea.vmem %s0, 362
    %v77 = vld [vmem:[%s76] sm:%s3]
    %s78 = scalar_lea.vmem [#allocation0], 1448
    %79 = vst [vmem:[%s78] sm:%s3] %v77
    %s80 = scalar_lea.vmem %s0, 360
    %v81 = vld [vmem:[%s80] sm:%s3]
    %s82 = scalar_lea.vmem [#allocation0], 1440
    %83 = vst [vmem:[%s82] sm:%s3] %v81
    %s84 = scalar_lea.vmem %s0, 358
    %v85 = vld [vmem:[%s84] sm:%s3]
    %s86 = scalar_lea.vmem [#allocation0], 1432
    %87 = vst [vmem:[%s86] sm:%s3] %v85
    %s88 = scalar_lea.vmem %s0, 356
    %v89 = vld [vmem:[%s88] sm:%s3]
    %s90 = scalar_lea.vmem [#allocation0], 1424
    %91 = vst [vmem:[%s90] sm:%s3] %v89
    %s92 = scalar_lea.vmem %s0, 354
    %v93 = vld [vmem:[%s92] sm:%s3]
    %s94 = scalar_lea.vmem [#allocation0], 1416
    %95 = vst [vmem:[%s94] sm:%s3] %v93
    %s96 = scalar_lea.vmem %s0, 352
    %v97 = vld [vmem:[%s96] sm:%s3]
    %s98 = scalar_lea.vmem [#allocation0], 1408
    %99 = vst [vmem:[%s98] sm:%s3] %v97
    %s100 = scalar_lea.vmem %s0, 350
    %v101 = vld [vmem:[%s100] sm:%s3]
    %s102 = scalar_lea.vmem [#allocation0], 1400
    %103 = vst [vmem:[%s102] sm:%s3] %v101
    %s104 = scalar_lea.vmem %s0, 348
    %v105 = vld [vmem:[%s104] sm:%s3]
    %s106 = scalar_lea.vmem [#allocation0], 1392
    %107 = vst [vmem:[%s106] sm:%s3] %v105
    %s108 = scalar_lea.vmem %s0, 346
    %v109 = vld [vmem:[%s108] sm:%s3]
    %s110 = scalar_lea.vmem [#allocation0], 1384
    %111 = vst [vmem:[%s110] sm:%s3] %v109
    %s112 = scalar_lea.vmem %s0, 344
    %v113 = vld [vmem:[%s112] sm:%s3]
    %s114 = scalar_lea.vmem [#allocation0], 1376
    %115 = vst [vmem:[%s114] sm:%s3] %v113
    %s116 = scalar_lea.vmem %s0, 342
    %v117 = vld [vmem:[%s116] sm:%s3]
    %s118 = scalar_lea.vmem [#allocation0], 1368
    %119 = vst [vmem:[%s118] sm:%s3] %v117
    %s120 = scalar_lea.vmem %s0, 340
    %v121 = vld [vmem:[%s120] sm:%s3]
    %s122 = scalar_lea.vmem [#allocation0], 1360
    %123 = vst [vmem:[%s122] sm:%s3] %v121
    %s124 = scalar_lea.vmem %s0, 338
    %v125 = vld [vmem:[%s124] sm:%s3]
    %s126 = scalar_lea.vmem [#allocation0], 1352
    %127 = vst [vmem:[%s126] sm:%s3] %v125
    %s128 = scalar_lea.vmem %s0, 336
    %v129 = vld [vmem:[%s128] sm:%s3]
    %s130 = scalar_lea.vmem [#allocation0], 1344
    %131 = vst [vmem:[%s130] sm:%s3] %v129
    %s132 = scalar_lea.vmem %s0, 334
    %v133 = vld [vmem:[%s132] sm:%s3]
    %s134 = scalar_lea.vmem [#allocation0], 1336
    %135 = vst [vmem:[%s134] sm:%s3] %v133
    %s136 = scalar_lea.vmem %s0, 332
    %v137 = vld [vmem:[%s136] sm:%s3]
    %s138 = scalar_lea.vmem [#allocation0], 1328
    %139 = vst [vmem:[%s138] sm:%s3] %v137
    %s140 = scalar_lea.vmem %s0, 330
    %v141 = vld [vmem:[%s140] sm:%s3]
    %s142 = scalar_lea.vmem [#allocation0], 1320
    %143 = vst [vmem:[%s142] sm:%s3] %v141
    %s144 = scalar_lea.vmem %s0, 328
    %v145 = vld [vmem:[%s144] sm:%s3]
    %s146 = scalar_lea.vmem [#allocation0], 1312
    %147 = vst [vmem:[%s146] sm:%s3] %v145
    %s148 = scalar_lea.vmem %s0, 326
    %v149 = vld [vmem:[%s148] sm:%s3]
    %s150 = scalar_lea.vmem [#allocation0], 1304
    %151 = vst [vmem:[%s150] sm:%s3] %v149
    %s152 = scalar_lea.vmem %s0, 324
    %v153 = vld [vmem:[%s152] sm:%s3]
    %s154 = scalar_lea.vmem [#allocation0], 1296
    %155 = vst [vmem:[%s154] sm:%s3] %v153
    %s156 = scalar_lea.vmem %s0, 322
    %v157 = vld [vmem:[%s156] sm:%s3]
    %s158 = scalar_lea.vmem [#allocation0], 1288
    %159 = vst [vmem:[%s158] sm:%s3] %v157
    %s160 = scalar_lea.vmem %s0, 320
    %v161 = vld [vmem:[%s160] sm:%s3]
    %s162 = scalar_lea.vmem [#allocation0], 1280
    %163 = vst [vmem:[%s162] sm:%s3] %v161
    %s164 = scalar_lea.vmem %s0, 318
    %v165 = vld [vmem:[%s164] sm:%s3]
    %s166 = scalar_lea.vmem [#allocation0], 1272
    %167 = vst [vmem:[%s166] sm:%s3] %v165
    %s168 = scalar_lea.vmem %s0, 316
    %v169 = vld [vmem:[%s168] sm:%s3]
    %s170 = scalar_lea.vmem [#allocation0], 1264
    %171 = vst [vmem:[%s170] sm:%s3] %v169
    %s172 = scalar_lea.vmem %s0, 314
    %v173 = vld [vmem:[%s172] sm:%s3]
    %s174 = scalar_lea.vmem [#allocation0], 1256
    %175 = vst [vmem:[%s174] sm:%s3] %v173
    %s176 = scalar_lea.vmem %s0, 312
    %v177 = vld [vmem:[%s176] sm:%s3]
    %s178 = scalar_lea.vmem [#allocation0], 1248
    %179 = vst [vmem:[%s178] sm:%s3] %v177
    %s180 = scalar_lea.vmem %s0, 310
    %v181 = vld [vmem:[%s180] sm:%s3]
    %s182 = scalar_lea.vmem [#allocation0], 1240
    %183 = vst [vmem:[%s182] sm:%s3] %v181
    %s184 = scalar_lea.vmem %s0, 308
    %v185 = vld [vmem:[%s184] sm:%s3]
    %s186 = scalar_lea.vmem [#allocation0], 1232
    %187 = vst [vmem:[%s186] sm:%s3] %v185
    %s188 = scalar_lea.vmem %s0, 306
    %v189 = vld [vmem:[%s188] sm:%s3]
    %s190 = scalar_lea.vmem [#allocation0], 1224
    %191 = vst [vmem:[%s190] sm:%s3] %v189
    %s192 = scalar_lea.vmem %s0, 304
    %v193 = vld [vmem:[%s192] sm:%s3]
    %s194 = scalar_lea.vmem [#allocation0], 1216
    %195 = vst [vmem:[%s194] sm:%s3] %v193
    %s196 = scalar_lea.vmem %s0, 302
    %v197 = vld [vmem:[%s196] sm:%s3]
    %s198 = scalar_lea.vmem [#allocation0], 1208
    %199 = vst [vmem:[%s198] sm:%s3] %v197
    %s200 = scalar_lea.vmem %s0, 300
    %v201 = vld [vmem:[%s200] sm:%s3]
    %s202 = scalar_lea.vmem [#allocation0], 1200
    %203 = vst [vmem:[%s202] sm:%s3] %v201
    %s204 = scalar_lea.vmem %s0, 298
    %v205 = vld [vmem:[%s204] sm:%s3]
    %s206 = scalar_lea.vmem [#allocation0], 1192
    %207 = vst [vmem:[%s206] sm:%s3] %v205
    %s208 = scalar_lea.vmem %s0, 296
    %v209 = vld [vmem:[%s208] sm:%s3]
    %s210 = scalar_lea.vmem [#allocation0], 1184
    %211 = vst [vmem:[%s210] sm:%s3] %v209
    %s212 = scalar_lea.vmem %s0, 294
    %v213 = vld [vmem:[%s212] sm:%s3]
    %s214 = scalar_lea.vmem [#allocation0], 1176
    %215 = vst [vmem:[%s214] sm:%s3] %v213
    %s216 = scalar_lea.vmem %s0, 292
    %v217 = vld [vmem:[%s216] sm:%s3]
    %s218 = scalar_lea.vmem [#allocation0], 1168
    %219 = vst [vmem:[%s218] sm:%s3] %v217
    %s220 = scalar_lea.vmem %s0, 290
    %v221 = vld [vmem:[%s220] sm:%s3]
    %s222 = scalar_lea.vmem [#allocation0], 1160
    %223 = vst [vmem:[%s222] sm:%s3] %v221
    %s224 = scalar_lea.vmem %s0, 288
    %v225 = vld [vmem:[%s224] sm:%s3]
    %s226 = scalar_lea.vmem [#allocation0], 1152
    %227 = vst [vmem:[%s226] sm:%s3] %v225
    %s228 = scalar_lea.vmem %s0, 286
    %v229 = vld [vmem:[%s228] sm:%s3]
    %s230 = scalar_lea.vmem [#allocation0], 1144
    %231 = vst [vmem:[%s230] sm:%s3] %v229
    %s232 = scalar_lea.vmem %s0, 284
    %v233 = vld [vmem:[%s232] sm:%s3]
    %s234 = scalar_lea.vmem [#allocation0], 1136
    %235 = vst [vmem:[%s234] sm:%s3] %v233
    %s236 = scalar_lea.vmem %s0, 282
    %v237 = vld [vmem:[%s236] sm:%s3]
    %s238 = scalar_lea.vmem [#allocation0], 1128
    %239 = vst [vmem:[%s238] sm:%s3] %v237
    %s240 = scalar_lea.vmem %s0, 280
    %v241 = vld [vmem:[%s240] sm:%s3]
    %s242 = scalar_lea.vmem [#allocation0], 1120
    %243 = vst [vmem:[%s242] sm:%s3] %v241
    %s244 = scalar_lea.vmem %s0, 278
    %v245 = vld [vmem:[%s244] sm:%s3]
    %s246 = scalar_lea.vmem [#allocation0], 1112
    %247 = vst [vmem:[%s246] sm:%s3] %v245
    %s248 = scalar_lea.vmem %s0, 276
    %v249 = vld [vmem:[%s248] sm:%s3]
    %s250 = scalar_lea.vmem [#allocation0], 1104
    %251 = vst [vmem:[%s250] sm:%s3] %v249
    %s252 = scalar_lea.vmem %s0, 274
    %v253 = vld [vmem:[%s252] sm:%s3]
    %s254 = scalar_lea.vmem [#allocation0], 1096
    %255 = vst [vmem:[%s254] sm:%s3] %v253
    %s256 = scalar_lea.vmem %s0, 272
    %v257 = vld [vmem:[%s256] sm:%s3]
    %s258 = scalar_lea.vmem [#allocation0], 1088
    %259 = vst [vmem:[%s258] sm:%s3] %v257
    %s260 = scalar_lea.vmem %s0, 270
    %v261 = vld [vmem:[%s260] sm:%s3]
    %s262 = scalar_lea.vmem [#allocation0], 1080
    %263 = vst [vmem:[%s262] sm:%s3] %v261
    %s264 = scalar_lea.vmem %s0, 268
    %v265 = vld [vmem:[%s264] sm:%s3]
    %s266 = scalar_lea.vmem [#allocation0], 1072
    %267 = vst [vmem:[%s266] sm:%s3] %v265
    %s268 = scalar_lea.vmem %s0, 266
    %v269 = vld [vmem:[%s268] sm:%s3]
    %s270 = scalar_lea.vmem [#allocation0], 1064
    %271 = vst [vmem:[%s270] sm:%s3] %v269
    %s272 = scalar_lea.vmem %s0, 264
    %v273 = vld [vmem:[%s272] sm:%s3]
    %s274 = scalar_lea.vmem [#allocation0], 1056
    %275 = vst [vmem:[%s274] sm:%s3] %v273
    %s276 = scalar_lea.vmem %s0, 262
    %v277 = vld [vmem:[%s276] sm:%s3]
    %s278 = scalar_lea.vmem [#allocation0], 1048
    %279 = vst [vmem:[%s278] sm:%s3] %v277
    %s280 = scalar_lea.vmem %s0, 260
    %v281 = vld [vmem:[%s280] sm:%s3]
    %s282 = scalar_lea.vmem [#allocation0], 1040
    %283 = vst [vmem:[%s282] sm:%s3] %v281
    %s284 = scalar_lea.vmem %s0, 258
    %v285 = vld [vmem:[%s284] sm:%s3]
    %s286 = scalar_lea.vmem [#allocation0], 1032
    %287 = vst [vmem:[%s286] sm:%s3] %v285
    %s288 = scalar_lea.vmem %s0, 256
    %v289 = vld [vmem:[%s288] sm:%s3]
    %s290 = scalar_lea.vmem [#allocation0], 1024
    %291 = vst [vmem:[%s290] sm:%s3] %v289
    %s292 = scalar_lea.vmem %s0, 254
    %v293 = vld [vmem:[%s292] sm:%s3]
    %s294 = scalar_lea.vmem [#allocation0], 1016
    %295 = vst [vmem:[%s294] sm:%s3] %v293
    %s296 = scalar_lea.vmem %s0, 252
    %v297 = vld [vmem:[%s296] sm:%s3]
    %s298 = scalar_lea.vmem [#allocation0], 1008
    %299 = vst [vmem:[%s298] sm:%s3] %v297
    %s300 = scalar_lea.vmem %s0, 250
    %v301 = vld [vmem:[%s300] sm:%s3]
    %s302 = scalar_lea.vmem [#allocation0], 1000
    %303 = vst [vmem:[%s302] sm:%s3] %v301
    %s304 = scalar_lea.vmem %s0, 248
    %v305 = vld [vmem:[%s304] sm:%s3]
    %s306 = scalar_lea.vmem [#allocation0], 992
    %307 = vst [vmem:[%s306] sm:%s3] %v305
    %s308 = scalar_lea.vmem %s0, 246
    %v309 = vld [vmem:[%s308] sm:%s3]
    %s310 = scalar_lea.vmem [#allocation0], 984
    %311 = vst [vmem:[%s310] sm:%s3] %v309
    %s312 = scalar_lea.vmem %s0, 244
    %v313 = vld [vmem:[%s312] sm:%s3]
    %s314 = scalar_lea.vmem [#allocation0], 976
    %315 = vst [vmem:[%s314] sm:%s3] %v313
    %s316 = scalar_lea.vmem %s0, 242
    %v317 = vld [vmem:[%s316] sm:%s3]
    %s318 = scalar_lea.vmem [#allocation0], 968
    %319 = vst [vmem:[%s318] sm:%s3] %v317
    %s320 = scalar_lea.vmem %s0, 240
    %v321 = vld [vmem:[%s320] sm:%s3]
    %s322 = scalar_lea.vmem [#allocation0], 960
    %323 = vst [vmem:[%s322] sm:%s3] %v321
    %s324 = scalar_lea.vmem %s0, 238
    %v325 = vld [vmem:[%s324] sm:%s3]
    %s326 = scalar_lea.vmem [#allocation0], 952
    %327 = vst [vmem:[%s326] sm:%s3] %v325
    %s328 = scalar_lea.vmem %s0, 236
    %v329 = vld [vmem:[%s328] sm:%s3]
    %s330 = scalar_lea.vmem [#allocation0], 944
    %331 = vst [vmem:[%s330] sm:%s3] %v329
    %s332 = scalar_lea.vmem %s0, 234
    %v333 = vld [vmem:[%s332] sm:%s3]
    %s334 = scalar_lea.vmem [#allocation0], 936
    %335 = vst [vmem:[%s334] sm:%s3] %v333
    %s336 = scalar_lea.vmem %s0, 232
    %v337 = vld [vmem:[%s336] sm:%s3]
    %s338 = scalar_lea.vmem [#allocation0], 928
    %339 = vst [vmem:[%s338] sm:%s3] %v337
    %s340 = scalar_lea.vmem %s0, 230
    %v341 = vld [vmem:[%s340] sm:%s3]
    %s342 = scalar_lea.vmem [#allocation0], 920
    %343 = vst [vmem:[%s342] sm:%s3] %v341
    %s344 = scalar_lea.vmem %s0, 228
    %v345 = vld [vmem:[%s344] sm:%s3]
    %s346 = scalar_lea.vmem [#allocation0], 912
    %347 = vst [vmem:[%s346] sm:%s3] %v345
    %s348 = scalar_lea.vmem %s0, 226
    %v349 = vld [vmem:[%s348] sm:%s3]
    %s350 = scalar_lea.vmem [#allocation0], 904
    %351 = vst [vmem:[%s350] sm:%s3] %v349
    %s352 = scalar_lea.vmem %s0, 224
    %v353 = vld [vmem:[%s352] sm:%s3]
    %s354 = scalar_lea.vmem [#allocation0], 896
    %355 = vst [vmem:[%s354] sm:%s3] %v353
    %s356 = scalar_lea.vmem %s0, 222
    %v357 = vld [vmem:[%s356] sm:%s3]
    %s358 = scalar_lea.vmem [#allocation0], 888
    %359 = vst [vmem:[%s358] sm:%s3] %v357
    %s360 = scalar_lea.vmem %s0, 220
    %v361 = vld [vmem:[%s360] sm:%s3]
    %s362 = scalar_lea.vmem [#allocation0], 880
    %363 = vst [vmem:[%s362] sm:%s3] %v361
    %s364 = scalar_lea.vmem %s0, 218
    %v365 = vld [vmem:[%s364] sm:%s3]
    %s366 = scalar_lea.vmem [#allocation0], 872
    %367 = vst [vmem:[%s366] sm:%s3] %v365
    %s368 = scalar_lea.vmem %s0, 216
    %v369 = vld [vmem:[%s368] sm:%s3]
    %s370 = scalar_lea.vmem [#allocation0], 864
    %371 = vst [vmem:[%s370] sm:%s3] %v369
    %s372 = scalar_lea.vmem %s0, 214
    %v373 = vld [vmem:[%s372] sm:%s3]
    %s374 = scalar_lea.vmem [#allocation0], 856
    %375 = vst [vmem:[%s374] sm:%s3] %v373
    %s376 = scalar_lea.vmem %s0, 212
    %v377 = vld [vmem:[%s376] sm:%s3]
    %s378 = scalar_lea.vmem [#allocation0], 848
    %379 = vst [vmem:[%s378] sm:%s3] %v377
    %s380 = scalar_lea.vmem %s0, 210
    %v381 = vld [vmem:[%s380] sm:%s3]
    %s382 = scalar_lea.vmem [#allocation0], 840
    %383 = vst [vmem:[%s382] sm:%s3] %v381
    %s384 = scalar_lea.vmem %s0, 208
    %v385 = vld [vmem:[%s384] sm:%s3]
    %s386 = scalar_lea.vmem [#allocation0], 832
    %387 = vst [vmem:[%s386] sm:%s3] %v385
    %s388 = scalar_lea.vmem %s0, 206
    %v389 = vld [vmem:[%s388] sm:%s3]
    %s390 = scalar_lea.vmem [#allocation0], 824
    %391 = vst [vmem:[%s390] sm:%s3] %v389
    %s392 = scalar_lea.vmem %s0, 204
    %v393 = vld [vmem:[%s392] sm:%s3]
    %s394 = scalar_lea.vmem [#allocation0], 816
    %395 = vst [vmem:[%s394] sm:%s3] %v393
    %s396 = scalar_lea.vmem %s0, 202
    %v397 = vld [vmem:[%s396] sm:%s3]
    %s398 = scalar_lea.vmem [#allocation0], 808
    %399 = vst [vmem:[%s398] sm:%s3] %v397
    %s400 = scalar_lea.vmem %s0, 200
    %v401 = vld [vmem:[%s400] sm:%s3]
    %s402 = scalar_lea.vmem [#allocation0], 800
    %403 = vst [vmem:[%s402] sm:%s3] %v401
    %s404 = scalar_lea.vmem %s0, 198
    %v405 = vld [vmem:[%s404] sm:%s3]
    %s406 = scalar_lea.vmem [#allocation0], 792
    %407 = vst [vmem:[%s406] sm:%s3] %v405
    %s408 = scalar_lea.vmem %s0, 196
    %v409 = vld [vmem:[%s408] sm:%s3]
    %s410 = scalar_lea.vmem [#allocation0], 784
    %411 = vst [vmem:[%s410] sm:%s3] %v409
    %s412 = scalar_lea.vmem %s0, 194
    %v413 = vld [vmem:[%s412] sm:%s3]
    %s414 = scalar_lea.vmem [#allocation0], 776
    %415 = vst [vmem:[%s414] sm:%s3] %v413
    %s416 = scalar_lea.vmem %s0, 192
    %v417 = vld [vmem:[%s416] sm:%s3]
    %s418 = scalar_lea.vmem [#allocation0], 768
    %419 = vst [vmem:[%s418] sm:%s3] %v417
    %s420 = scalar_lea.vmem %s0, 190
    %v421 = vld [vmem:[%s420] sm:%s3]
    %s422 = scalar_lea.vmem [#allocation0], 760
    %423 = vst [vmem:[%s422] sm:%s3] %v421
    %s424 = scalar_lea.vmem %s0, 188
    %v425 = vld [vmem:[%s424] sm:%s3]
    %s426 = scalar_lea.vmem [#allocation0], 752
    %427 = vst [vmem:[%s426] sm:%s3] %v425
    %s428 = scalar_lea.vmem %s0, 186
    %v429 = vld [vmem:[%s428] sm:%s3]
    %s430 = scalar_lea.vmem [#allocation0], 744
    %431 = vst [vmem:[%s430] sm:%s3] %v429
    %s432 = scalar_lea.vmem %s0, 184
    %v433 = vld [vmem:[%s432] sm:%s3]
    %s434 = scalar_lea.vmem [#allocation0], 736
    %435 = vst [vmem:[%s434] sm:%s3] %v433
    %s436 = scalar_lea.vmem %s0, 182
    %v437 = vld [vmem:[%s436] sm:%s3]
    %s438 = scalar_lea.vmem [#allocation0], 728
    %439 = vst [vmem:[%s438] sm:%s3] %v437
    %s440 = scalar_lea.vmem %s0, 180
    %v441 = vld [vmem:[%s440] sm:%s3]
    %s442 = scalar_lea.vmem [#allocation0], 720
    %443 = vst [vmem:[%s442] sm:%s3] %v441
    %s444 = scalar_lea.vmem %s0, 178
    %v445 = vld [vmem:[%s444] sm:%s3]
    %s446 = scalar_lea.vmem [#allocation0], 712
    %447 = vst [vmem:[%s446] sm:%s3] %v445
    %s448 = scalar_lea.vmem %s0, 176
    %v449 = vld [vmem:[%s448] sm:%s3]
    %s450 = scalar_lea.vmem [#allocation0], 704
    %451 = vst [vmem:[%s450] sm:%s3] %v449
    %s452 = scalar_lea.vmem %s0, 174
    %v453 = vld [vmem:[%s452] sm:%s3]
    %s454 = scalar_lea.vmem [#allocation0], 696
    %455 = vst [vmem:[%s454] sm:%s3] %v453
    %s456 = scalar_lea.vmem %s0, 172
    %v457 = vld [vmem:[%s456] sm:%s3]
    %s458 = scalar_lea.vmem [#allocation0], 688
    %459 = vst [vmem:[%s458] sm:%s3] %v457
    %s460 = scalar_lea.vmem %s0, 170
    %v461 = vld [vmem:[%s460] sm:%s3]
    %s462 = scalar_lea.vmem [#allocation0], 680
    %463 = vst [vmem:[%s462] sm:%s3] %v461
    %s464 = scalar_lea.vmem %s0, 168
    %v465 = vld [vmem:[%s464] sm:%s3]
    %s466 = scalar_lea.vmem [#allocation0], 672
    %467 = vst [vmem:[%s466] sm:%s3] %v465
    %s468 = scalar_lea.vmem %s0, 166
    %v469 = vld [vmem:[%s468] sm:%s3]
    %s470 = scalar_lea.vmem [#allocation0], 664
    %471 = vst [vmem:[%s470] sm:%s3] %v469
    %s472 = scalar_lea.vmem %s0, 164
    %v473 = vld [vmem:[%s472] sm:%s3]
    %s474 = scalar_lea.vmem [#allocation0], 656
    %475 = vst [vmem:[%s474] sm:%s3] %v473
    %s476 = scalar_lea.vmem %s0, 162
    %v477 = vld [vmem:[%s476] sm:%s3]
    %s478 = scalar_lea.vmem [#allocation0], 648
    %479 = vst [vmem:[%s478] sm:%s3] %v477
    %s480 = scalar_lea.vmem %s0, 160
    %v481 = vld [vmem:[%s480] sm:%s3]
    %s482 = scalar_lea.vmem [#allocation0], 640
    %483 = vst [vmem:[%s482] sm:%s3] %v481
    %s484 = scalar_lea.vmem %s0, 158
    %v485 = vld [vmem:[%s484] sm:%s3]
    %s486 = scalar_lea.vmem [#allocation0], 632
    %487 = vst [vmem:[%s486] sm:%s3] %v485
    %s488 = scalar_lea.vmem %s0, 156
    %v489 = vld [vmem:[%s488] sm:%s3]
    %s490 = scalar_lea.vmem [#allocation0], 624
    %491 = vst [vmem:[%s490] sm:%s3] %v489
    %s492 = scalar_lea.vmem %s0, 154
    %v493 = vld [vmem:[%s492] sm:%s3]
    %s494 = scalar_lea.vmem [#allocation0], 616
    %495 = vst [vmem:[%s494] sm:%s3] %v493
    %s496 = scalar_lea.vmem %s0, 152
    %v497 = vld [vmem:[%s496] sm:%s3]
    %s498 = scalar_lea.vmem [#allocation0], 608
    %499 = vst [vmem:[%s498] sm:%s3] %v497
    %s500 = scalar_lea.vmem %s0, 150
    %v501 = vld [vmem:[%s500] sm:%s3]
    %s502 = scalar_lea.vmem [#allocation0], 600
    %503 = vst [vmem:[%s502] sm:%s3] %v501
    %s504 = scalar_lea.vmem %s0, 148
    %v505 = vld [vmem:[%s504] sm:%s3]
    %s506 = scalar_lea.vmem [#allocation0], 592
    %507 = vst [vmem:[%s506] sm:%s3] %v505
    %s508 = scalar_lea.vmem %s0, 146
    %v509 = vld [vmem:[%s508] sm:%s3]
    %s510 = scalar_lea.vmem [#allocation0], 584
    %511 = vst [vmem:[%s510] sm:%s3] %v509
    %s512 = scalar_lea.vmem %s0, 144
    %v513 = vld [vmem:[%s512] sm:%s3]
    %s514 = scalar_lea.vmem [#allocation0], 576
    %515 = vst [vmem:[%s514] sm:%s3] %v513
    %s516 = scalar_lea.vmem %s0, 142
    %v517 = vld [vmem:[%s516] sm:%s3]
    %s518 = scalar_lea.vmem [#allocation0], 568
    %519 = vst [vmem:[%s518] sm:%s3] %v517
    %s520 = scalar_lea.vmem %s0, 140
    %v521 = vld [vmem:[%s520] sm:%s3]
    %s522 = scalar_lea.vmem [#allocation0], 560
    %523 = vst [vmem:[%s522] sm:%s3] %v521
    %s524 = scalar_lea.vmem %s0, 138
    %v525 = vld [vmem:[%s524] sm:%s3]
    %s526 = scalar_lea.vmem [#allocation0], 552
    %527 = vst [vmem:[%s526] sm:%s3] %v525
    %s528 = scalar_lea.vmem %s0, 136
    %v529 = vld [vmem:[%s528] sm:%s3]
    %s530 = scalar_lea.vmem [#allocation0], 544
    %531 = vst [vmem:[%s530] sm:%s3] %v529
    %s532 = scalar_lea.vmem %s0, 134
    %v533 = vld [vmem:[%s532] sm:%s3]
    %s534 = scalar_lea.vmem [#allocation0], 536
    %535 = vst [vmem:[%s534] sm:%s3] %v533
    %s536 = scalar_lea.vmem %s0, 132
    %v537 = vld [vmem:[%s536] sm:%s3]
    %s538 = scalar_lea.vmem [#allocation0], 528
    %539 = vst [vmem:[%s538] sm:%s3] %v537
    %s540 = scalar_lea.vmem %s0, 130
    %v541 = vld [vmem:[%s540] sm:%s3]
    %s542 = scalar_lea.vmem [#allocation0], 520
    %543 = vst [vmem:[%s542] sm:%s3] %v541
    %s544 = scalar_lea.vmem %s0, 128
    %v545 = vld [vmem:[%s544] sm:%s3]
    %s546 = scalar_lea.vmem [#allocation0], 512
    %547 = vst [vmem:[%s546] sm:%s3] %v545
    %s548 = scalar_lea.vmem %s0, 126
    %v549 = vld [vmem:[%s548] sm:%s3]
    %s550 = scalar_lea.vmem [#allocation0], 504
    %551 = vst [vmem:[%s550] sm:%s3] %v549
    %s552 = scalar_lea.vmem %s0, 124
    %v553 = vld [vmem:[%s552] sm:%s3]
    %s554 = scalar_lea.vmem [#allocation0], 496
    %555 = vst [vmem:[%s554] sm:%s3] %v553
    %s556 = scalar_lea.vmem %s0, 122
    %v557 = vld [vmem:[%s556] sm:%s3]
    %s558 = scalar_lea.vmem [#allocation0], 488
    %559 = vst [vmem:[%s558] sm:%s3] %v557
    %s560 = scalar_lea.vmem %s0, 120
    %v561 = vld [vmem:[%s560] sm:%s3]
    %s562 = scalar_lea.vmem [#allocation0], 480
    %563 = vst [vmem:[%s562] sm:%s3] %v561
    %s564 = scalar_lea.vmem %s0, 118
    %v565 = vld [vmem:[%s564] sm:%s3]
    %s566 = scalar_lea.vmem [#allocation0], 472
    %567 = vst [vmem:[%s566] sm:%s3] %v565
    %s568 = scalar_lea.vmem %s0, 116
    %v569 = vld [vmem:[%s568] sm:%s3]
    %s570 = scalar_lea.vmem [#allocation0], 464
    %571 = vst [vmem:[%s570] sm:%s3] %v569
    %s572 = scalar_lea.vmem %s0, 114
    %v573 = vld [vmem:[%s572] sm:%s3]
    %s574 = scalar_lea.vmem [#allocation0], 456
    %575 = vst [vmem:[%s574] sm:%s3] %v573
    %s576 = scalar_lea.vmem %s0, 112
    %v577 = vld [vmem:[%s576] sm:%s3]
    %s578 = scalar_lea.vmem [#allocation0], 448
    %579 = vst [vmem:[%s578] sm:%s3] %v577
    %s580 = scalar_lea.vmem %s0, 110
    %v581 = vld [vmem:[%s580] sm:%s3]
    %s582 = scalar_lea.vmem [#allocation0], 440
    %583 = vst [vmem:[%s582] sm:%s3] %v581
    %s584 = scalar_lea.vmem %s0, 108
    %v585 = vld [vmem:[%s584] sm:%s3]
    %s586 = scalar_lea.vmem [#allocation0], 432
    %587 = vst [vmem:[%s586] sm:%s3] %v585
    %s588 = scalar_lea.vmem %s0, 106
    %v589 = vld [vmem:[%s588] sm:%s3]
    %s590 = scalar_lea.vmem [#allocation0], 424
    %591 = vst [vmem:[%s590] sm:%s3] %v589
    %s592 = scalar_lea.vmem %s0, 104
    %v593 = vld [vmem:[%s592] sm:%s3]
    %s594 = scalar_lea.vmem [#allocation0], 416
    %595 = vst [vmem:[%s594] sm:%s3] %v593
    %s596 = scalar_lea.vmem %s0, 102
    %v597 = vld [vmem:[%s596] sm:%s3]
    %s598 = scalar_lea.vmem [#allocation0], 408
    %599 = vst [vmem:[%s598] sm:%s3] %v597
    %s600 = scalar_lea.vmem %s0, 100
    %v601 = vld [vmem:[%s600] sm:%s3]
    %s602 = scalar_lea.vmem [#allocation0], 400
    %603 = vst [vmem:[%s602] sm:%s3] %v601
    %s604 = scalar_lea.vmem %s0, 98
    %v605 = vld [vmem:[%s604] sm:%s3]
    %s606 = scalar_lea.vmem [#allocation0], 392
    %607 = vst [vmem:[%s606] sm:%s3] %v605
    %s608 = scalar_lea.vmem %s0, 96
    %v609 = vld [vmem:[%s608] sm:%s3]
    %s610 = scalar_lea.vmem [#allocation0], 384
    %611 = vst [vmem:[%s610] sm:%s3] %v609
    %s612 = scalar_lea.vmem %s0, 94
    %v613 = vld [vmem:[%s612] sm:%s3]
    %s614 = scalar_lea.vmem [#allocation0], 376
    %615 = vst [vmem:[%s614] sm:%s3] %v613
    %s616 = scalar_lea.vmem %s0, 92
    %v617 = vld [vmem:[%s616] sm:%s3]
    %s618 = scalar_lea.vmem [#allocation0], 368
    %619 = vst [vmem:[%s618] sm:%s3] %v617
    %s620 = scalar_lea.vmem %s0, 90
    %v621 = vld [vmem:[%s620] sm:%s3]
    %s622 = scalar_lea.vmem [#allocation0], 360
    %623 = vst [vmem:[%s622] sm:%s3] %v621
    %s624 = scalar_lea.vmem %s0, 88
    %v625 = vld [vmem:[%s624] sm:%s3]
    %s626 = scalar_lea.vmem [#allocation0], 352
    %627 = vst [vmem:[%s626] sm:%s3] %v625
    %s628 = scalar_lea.vmem %s0, 86
    %v629 = vld [vmem:[%s628] sm:%s3]
    %s630 = scalar_lea.vmem [#allocation0], 344
    %631 = vst [vmem:[%s630] sm:%s3] %v629
    %s632 = scalar_lea.vmem %s0, 84
    %v633 = vld [vmem:[%s632] sm:%s3]
    %s634 = scalar_lea.vmem [#allocation0], 336
    %635 = vst [vmem:[%s634] sm:%s3] %v633
    %s636 = scalar_lea.vmem %s0, 82
    %v637 = vld [vmem:[%s636] sm:%s3]
    %s638 = scalar_lea.vmem [#allocation0], 328
    %639 = vst [vmem:[%s638] sm:%s3] %v637
    %s640 = scalar_lea.vmem %s0, 80
    %v641 = vld [vmem:[%s640] sm:%s3]
    %s642 = scalar_lea.vmem [#allocation0], 320
    %643 = vst [vmem:[%s642] sm:%s3] %v641
    %s644 = scalar_lea.vmem %s0, 78
    %v645 = vld [vmem:[%s644] sm:%s3]
    %s646 = scalar_lea.vmem [#allocation0], 312
    %647 = vst [vmem:[%s646] sm:%s3] %v645
    %s648 = scalar_lea.vmem %s0, 76
    %v649 = vld [vmem:[%s648] sm:%s3]
    %s650 = scalar_lea.vmem [#allocation0], 304
    %651 = vst [vmem:[%s650] sm:%s3] %v649
    %s652 = scalar_lea.vmem %s0, 74
    %v653 = vld [vmem:[%s652] sm:%s3]
    %s654 = scalar_lea.vmem [#allocation0], 296
    %655 = vst [vmem:[%s654] sm:%s3] %v653
    %s656 = scalar_lea.vmem %s0, 72
    %v657 = vld [vmem:[%s656] sm:%s3]
    %s658 = scalar_lea.vmem [#allocation0], 288
    %659 = vst [vmem:[%s658] sm:%s3] %v657
    %s660 = scalar_lea.vmem %s0, 70
    %v661 = vld [vmem:[%s660] sm:%s3]
    %s662 = scalar_lea.vmem [#allocation0], 280
    %663 = vst [vmem:[%s662] sm:%s3] %v661
    %s664 = scalar_lea.vmem %s0, 68
    %v665 = vld [vmem:[%s664] sm:%s3]
    %s666 = scalar_lea.vmem [#allocation0], 272
    %667 = vst [vmem:[%s666] sm:%s3] %v665
    %s668 = scalar_lea.vmem %s0, 66
    %v669 = vld [vmem:[%s668] sm:%s3]
    %s670 = scalar_lea.vmem [#allocation0], 264
    %671 = vst [vmem:[%s670] sm:%s3] %v669
    %s672 = scalar_lea.vmem %s0, 64
    %v673 = vld [vmem:[%s672] sm:%s3]
    %s674 = scalar_lea.vmem [#allocation0], 256
    %675 = vst [vmem:[%s674] sm:%s3] %v673
    %s676 = scalar_lea.vmem %s0, 62
    %v677 = vld [vmem:[%s676] sm:%s3]
    %s678 = scalar_lea.vmem [#allocation0], 248
    %679 = vst [vmem:[%s678] sm:%s3] %v677
    %s680 = scalar_lea.vmem %s0, 60
    %v681 = vld [vmem:[%s680] sm:%s3]
    %s682 = scalar_lea.vmem [#allocation0], 240
    %683 = vst [vmem:[%s682] sm:%s3] %v681
    %s684 = scalar_lea.vmem %s0, 58
    %v685 = vld [vmem:[%s684] sm:%s3]
    %s686 = scalar_lea.vmem [#allocation0], 232
    %687 = vst [vmem:[%s686] sm:%s3] %v685
    %s688 = scalar_lea.vmem %s0, 56
    %v689 = vld [vmem:[%s688] sm:%s3]
    %s690 = scalar_lea.vmem [#allocation0], 224
    %691 = vst [vmem:[%s690] sm:%s3] %v689
    %s692 = scalar_lea.vmem %s0, 54
    %v693 = vld [vmem:[%s692] sm:%s3]
    %s694 = scalar_lea.vmem [#allocation0], 216
    %695 = vst [vmem:[%s694] sm:%s3] %v693
    %s696 = scalar_lea.vmem %s0, 52
    %v697 = vld [vmem:[%s696] sm:%s3]
    %s698 = scalar_lea.vmem [#allocation0], 208
    %699 = vst [vmem:[%s698] sm:%s3] %v697
    %s700 = scalar_lea.vmem %s0, 50
    %v701 = vld [vmem:[%s700] sm:%s3]
    %s702 = scalar_lea.vmem [#allocation0], 200
    %703 = vst [vmem:[%s702] sm:%s3] %v701
    %s704 = scalar_lea.vmem %s0, 48
    %v705 = vld [vmem:[%s704] sm:%s3]
    %s706 = scalar_lea.vmem [#allocation0], 192
    %707 = vst [vmem:[%s706] sm:%s3] %v705
    %s708 = scalar_lea.vmem %s0, 46
    %v709 = vld [vmem:[%s708] sm:%s3]
    %s710 = scalar_lea.vmem [#allocation0], 184
    %711 = vst [vmem:[%s710] sm:%s3] %v709
    %s712 = scalar_lea.vmem %s0, 44
    %v713 = vld [vmem:[%s712] sm:%s3]
    %s714 = scalar_lea.vmem [#allocation0], 176
    %715 = vst [vmem:[%s714] sm:%s3] %v713
    %s716 = scalar_lea.vmem %s0, 42
    %v717 = vld [vmem:[%s716] sm:%s3]
    %s718 = scalar_lea.vmem [#allocation0], 168
    %719 = vst [vmem:[%s718] sm:%s3] %v717
    %s720 = scalar_lea.vmem %s0, 40
    %v721 = vld [vmem:[%s720] sm:%s3]
    %s722 = scalar_lea.vmem [#allocation0], 160
    %723 = vst [vmem:[%s722] sm:%s3] %v721
    %s724 = scalar_lea.vmem %s0, 38
    %v725 = vld [vmem:[%s724] sm:%s3]
    %s726 = scalar_lea.vmem [#allocation0], 152
    %727 = vst [vmem:[%s726] sm:%s3] %v725
    %s728 = scalar_lea.vmem %s0, 36
    %v729 = vld [vmem:[%s728] sm:%s3]
    %s730 = scalar_lea.vmem [#allocation0], 144
    %731 = vst [vmem:[%s730] sm:%s3] %v729
    %s732 = scalar_lea.vmem %s0, 34
    %v733 = vld [vmem:[%s732] sm:%s3]
    %s734 = scalar_lea.vmem [#allocation0], 136
    %735 = vst [vmem:[%s734] sm:%s3] %v733
    %s736 = scalar_lea.vmem %s0, 32
    %v737 = vld [vmem:[%s736] sm:%s3]
    %s738 = scalar_lea.vmem [#allocation0], 128
    %739 = vst [vmem:[%s738] sm:%s3] %v737
    %s740 = scalar_lea.vmem %s0, 30
    %v741 = vld [vmem:[%s740] sm:%s3]
    %s742 = scalar_lea.vmem [#allocation0], 120
    %743 = vst [vmem:[%s742] sm:%s3] %v741
    %s744 = scalar_lea.vmem %s0, 28
    %v745 = vld [vmem:[%s744] sm:%s3]
    %s746 = scalar_lea.vmem [#allocation0], 112
    %747 = vst [vmem:[%s746] sm:%s3] %v745
    %s748 = scalar_lea.vmem %s0, 26
    %v749 = vld [vmem:[%s748] sm:%s3]
    %s750 = scalar_lea.vmem [#allocation0], 104
    %751 = vst [vmem:[%s750] sm:%s3] %v749
    %s752 = scalar_lea.vmem %s0, 24
    %v753 = vld [vmem:[%s752] sm:%s3]
    %s754 = scalar_lea.vmem [#allocation0], 96
    %755 = vst [vmem:[%s754] sm:%s3] %v753
    %s756 = scalar_lea.vmem %s0, 22
    %v757 = vld [vmem:[%s756] sm:%s3]
    %s758 = scalar_lea.vmem [#allocation0], 88
    %759 = vst [vmem:[%s758] sm:%s3] %v757
    %s760 = scalar_lea.vmem %s0, 20
    %v761 = vld [vmem:[%s760] sm:%s3]
    %s762 = scalar_lea.vmem [#allocation0], 80
    %763 = vst [vmem:[%s762] sm:%s3] %v761
    %s764 = scalar_lea.vmem %s0, 18
    %v765 = vld [vmem:[%s764] sm:%s3]
    %s766 = scalar_lea.vmem [#allocation0], 72
    %767 = vst [vmem:[%s766] sm:%s3] %v765
    %s768 = scalar_lea.vmem %s0, 16
    %v769 = vld [vmem:[%s768] sm:%s3]
    %s770 = scalar_lea.vmem [#allocation0], 64
    %771 = vst [vmem:[%s770] sm:%s3] %v769
    %s772 = scalar_lea.vmem %s0, 14
    %v773 = vld [vmem:[%s772] sm:%s3]
    %s774 = scalar_lea.vmem [#allocation0], 56
    %775 = vst [vmem:[%s774] sm:%s3] %v773
    %s776 = scalar_lea.vmem %s0, 12
    %v777 = vld [vmem:[%s776] sm:%s3]
    %s778 = scalar_lea.vmem [#allocation0], 48
    %779 = vst [vmem:[%s778] sm:%s3] %v777
    %s780 = scalar_lea.vmem %s0, 10
    %v781 = vld [vmem:[%s780] sm:%s3]
    %s782 = scalar_lea.vmem [#allocation0], 40
    %783 = vst [vmem:[%s782] sm:%s3] %v781
    %s784 = scalar_lea.vmem %s0, 8
    %v785 = vld [vmem:[%s784] sm:%s3]
    %s786 = scalar_lea.vmem [#allocation0], 32
    %787 = vst [vmem:[%s786] sm:%s3] %v785
    %s788 = scalar_lea.vmem %s0, 6
    %v789 = vld [vmem:[%s788] sm:%s3]
    %s790 = scalar_lea.vmem [#allocation0], 24
    %791 = vst [vmem:[%s790] sm:%s3] %v789
    %s792 = scalar_lea.vmem %s0, 4
    %v793 = vld [vmem:[%s792] sm:%s3]
    %s794 = scalar_lea.vmem [#allocation0], 16
    %795 = vst [vmem:[%s794] sm:%s3] %v793
    %s796 = scalar_lea.vmem %s0, 2
    %v797 = vld [vmem:[%s796] sm:%s3]
    %s798 = scalar_lea.vmem [#allocation0], 8
    %799 = vst [vmem:[%s798] sm:%s3] %v797
    %v800 = vld [vmem:[%s0] sm:%s3]
    %801 = vst [vmem:[#allocation0] sm:%s3] %v800
    %v802 = vld [vmem:[#allocation0] ss:$8 sm:$0xf]
    %v803 = vld [vmem:[#allocation0] ss:$8 sm:$0xf0]
    %vm804 = vcmask 1047556
    %v805 = vsel %vm804, %v803, %v802
    %vm806 = vcmask 400384
    %807 = vst.msk [vmem:[%s1] sm:$0xff] %vm806, %v805
    %s808 = scalar_lea.vmem [#allocation0], 64
    %v809 = vld [vmem:[%s808] ss:$8 sm:$0xf]
    %s810 = scalar_lea.vmem [#allocation0], 64
    %v811 = vld [vmem:[%s810] ss:$8 sm:$0xf0]
    %vm812 = vcmask 1047556
    %v813 = vsel %vm812, %v811, %v809
    %vm814 = vcmask 400384
    %s815 = scalar_lea.vmem %s1, 8
    %816 = vst.msk [vmem:[%s815] sm:$0xff] %vm814, %v813
    %s817 = scalar_lea.vmem [#allocation0], 128
    %v818 = vld [vmem:[%s817] ss:$8 sm:$0xf]
    %s819 = scalar_lea.vmem [#allocation0], 128
    %v820 = vld [vmem:[%s819] ss:$8 sm:$0xf0]
    %vm821 = vcmask 1047556
    %v822 = vsel %vm821, %v820, %v818
    %vm823 = vcmask 400384
    %s824 = scalar_lea.vmem %s1, 16
    %825 = vst.msk [vmem:[%s824] sm:$0xf] %vm823, %v822
    %s826 = scalar_lea.vmem %s1, 20
    %827 = vst.msk [vmem:[%s826] sm:$0xf0] %vm823, %v822
    %s828 = scalar_lea.vmem [#allocation0], 192
    %v829 = vld [vmem:[%s828] ss:$8 sm:$0xf]
    %s830 = scalar_lea.vmem [#allocation0], 192
    %v831 = vld [vmem:[%s830] ss:$8 sm:$0xf0]
    %vm832 = vcmask 1047556
    %v833 = vsel %vm832, %v831, %v829
    %vm834 = vcmask 400384
    %s835 = scalar_lea.vmem %s1, 28
    %836 = vst.msk [vmem:[%s835] sm:$0xff] %vm834, %v833
    %s837 = scalar_lea.vmem [#allocation0], 256
    %v838 = vld [vmem:[%s837] ss:$8 sm:$0xf]
    %s839 = scalar_lea.vmem [#allocation0], 256
    %v840 = vld [vmem:[%s839] ss:$8 sm:$0xf0]
    %vm841 = vcmask 1047556
    %v842 = vsel %vm841, %v840, %v838
    %vm843 = vcmask 400384
    %s844 = scalar_lea.vmem %s1, 36
    %845 = vst.msk [vmem:[%s844] sm:$0xff] %vm843, %v842
    %s846 = scalar_lea.vmem [#allocation0], 320
    %v847 = vld [vmem:[%s846] ss:$8 sm:$0xf]
    %s848 = scalar_lea.vmem [#allocation0], 320
    %v849 = vld [vmem:[%s848] ss:$8 sm:$0xf0]
    %vm850 = vcmask 1047556
    %v851 = vsel %vm850, %v849, %v847
    %vm852 = vcmask 400384
    %s853 = scalar_lea.vmem %s1, 48
    %854 = vst.msk [vmem:[%s853] sm:$0xff] %vm852, %v851
    %s855 = scalar_lea.vmem [#allocation0], 384
    %v856 = vld [vmem:[%s855] ss:$8 sm:$0xf]
    %s857 = scalar_lea.vmem [#allocation0], 384
    %v858 = vld [vmem:[%s857] ss:$8 sm:$0xf0]
    %vm859 = vcmask 1047556
    %v860 = vsel %vm859, %v858, %v856
    %vm861 = vcmask 400384
    %s862 = scalar_lea.vmem %s1, 56
    %863 = vst.msk [vmem:[%s862] sm:$0xff] %vm861, %v860
    %s864 = scalar_lea.vmem [#allocation0], 448
    %v865 = vld [vmem:[%s864] ss:$8 sm:$0xf]
    %s866 = scalar_lea.vmem [#allocation0], 448
    %v867 = vld [vmem:[%s866] ss:$8 sm:$0xf0]
    %vm868 = vcmask 1047556
    %v869 = vsel %vm868, %v867, %v865
    %vm870 = vcmask 400384
    %s871 = scalar_lea.vmem %s1, 64
    %872 = vst.msk [vmem:[%s871] sm:$0xf] %vm870, %v869
    %s873 = scalar_lea.vmem %s1, 68
    %874 = vst.msk [vmem:[%s873] sm:$0xf0] %vm870, %v869
    %s875 = scalar_lea.vmem [#allocation0], 512
    %v876 = vld [vmem:[%s875] ss:$8 sm:$0xf]
    %s877 = scalar_lea.vmem [#allocation0], 512
    %v878 = vld [vmem:[%s877] ss:$8 sm:$0xf0]
    %vm879 = vcmask 1047556
    %v880 = vsel %vm879, %v878, %v876
    %vm881 = vcmask 400384
    %s882 = scalar_lea.vmem %s1, 76
    %883 = vst.msk [vmem:[%s882] sm:$0xff] %vm881, %v880
    %s884 = scalar_lea.vmem [#allocation0], 576
    %v885 = vld [vmem:[%s884] ss:$8 sm:$0xf]
    %s886 = scalar_lea.vmem [#allocation0], 576
    %v887 = vld [vmem:[%s886] ss:$8 sm:$0xf0]
    %vm888 = vcmask 1047556
    %v889 = vsel %vm888, %v887, %v885
    %vm890 = vcmask 400384
    %s891 = scalar_lea.vmem %s1, 84
    %892 = vst.msk [vmem:[%s891] sm:$0xff] %vm890, %v889
    %s893 = scalar_lea.vmem [#allocation0], 640
    %v894 = vld [vmem:[%s893] ss:$8 sm:$0xf]
    %s895 = scalar_lea.vmem [#allocation0], 640
    %v896 = vld [vmem:[%s895] ss:$8 sm:$0xf0]
    %vm897 = vcmask 1047556
    %v898 = vsel %vm897, %v896, %v894
    %vm899 = vcmask 400384
    %s900 = scalar_lea.vmem %s1, 96
    %901 = vst.msk [vmem:[%s900] sm:$0xff] %vm899, %v898
    %s902 = scalar_lea.vmem [#allocation0], 704
    %v903 = vld [vmem:[%s902] ss:$8 sm:$0xf]
    %s904 = scalar_lea.vmem [#allocation0], 704
    %v905 = vld [vmem:[%s904] ss:$8 sm:$0xf0]
    %vm906 = vcmask 1047556
    %v907 = vsel %vm906, %v905, %v903
    %vm908 = vcmask 400384
    %s909 = scalar_lea.vmem %s1, 104
    %910 = vst.msk [vmem:[%s909] sm:$0xff] %vm908, %v907
    %s911 = scalar_lea.vmem [#allocation0], 768
    %v912 = vld [vmem:[%s911] ss:$8 sm:$0xf]
    %s913 = scalar_lea.vmem [#allocation0], 768
    %v914 = vld [vmem:[%s913] ss:$8 sm:$0xf0]
    %vm915 = vcmask 1047556
    %v916 = vsel %vm915, %v914, %v912
    %vm917 = vcmask 400384
    %s918 = scalar_lea.vmem %s1, 112
    %919 = vst.msk [vmem:[%s918] sm:$0xf] %vm917, %v916
    %s920 = scalar_lea.vmem %s1, 116
    %921 = vst.msk [vmem:[%s920] sm:$0xf0] %vm917, %v916
    %s922 = scalar_lea.vmem [#allocation0], 832
    %v923 = vld [vmem:[%s922] ss:$8 sm:$0xf]
    %s924 = scalar_lea.vmem [#allocation0], 832
    %v925 = vld [vmem:[%s924] ss:$8 sm:$0xf0]
    %vm926 = vcmask 1047556
    %v927 = vsel %vm926, %v925, %v923
    %vm928 = vcmask 400384
    %s929 = scalar_lea.vmem %s1, 124
    %930 = vst.msk [vmem:[%s929] sm:$0xff] %vm928, %v927
    %s931 = scalar_lea.vmem [#allocation0], 896
    %v932 = vld [vmem:[%s931] ss:$8 sm:$0xf]
    %s933 = scalar_lea.vmem [#allocation0], 896
    %v934 = vld [vmem:[%s933] ss:$8 sm:$0xf0]
    %vm935 = vcmask 1047556
    %v936 = vsel %vm935, %v934, %v932
    %vm937 = vcmask 400384
    %s938 = scalar_lea.vmem %s1, 132
    %939 = vst.msk [vmem:[%s938] sm:$0xff] %vm937, %v936
    %s940 = scalar_lea.vmem [#allocation0], 960
    %v941 = vld [vmem:[%s940] ss:$8 sm:$0xf]
    %s942 = scalar_lea.vmem [#allocation0], 960
    %v943 = vld [vmem:[%s942] ss:$8 sm:$0xf0]
    %vm944 = vcmask 1047556
    %v945 = vsel %vm944, %v943, %v941
    %vm946 = vcmask 400384
    %s947 = scalar_lea.vmem %s1, 144
    %948 = vst.msk [vmem:[%s947] sm:$0xff] %vm946, %v945
    %s949 = scalar_lea.vmem [#allocation0], 1024
    %v950 = vld [vmem:[%s949] ss:$8 sm:$0xf]
    %s951 = scalar_lea.vmem [#allocation0], 1024
    %v952 = vld [vmem:[%s951] ss:$8 sm:$0xf0]
    %vm953 = vcmask 1047556
    %v954 = vsel %vm953, %v952, %v950
    %vm955 = vcmask 400384
    %s956 = scalar_lea.vmem %s1, 152
    %957 = vst.msk [vmem:[%s956] sm:$0xff] %vm955, %v954
    %s958 = scalar_lea.vmem [#allocation0], 1088
    %v959 = vld [vmem:[%s958] ss:$8 sm:$0xf]
    %s960 = scalar_lea.vmem [#allocation0], 1088
    %v961 = vld [vmem:[%s960] ss:$8 sm:$0xf0]
    %vm962 = vcmask 1047556
    %v963 = vsel %vm962, %v961, %v959
    %vm964 = vcmask 400384
    %s965 = scalar_lea.vmem %s1, 160
    %966 = vst.msk [vmem:[%s965] sm:$0xf] %vm964, %v963
    %s967 = scalar_lea.vmem %s1, 164
    %968 = vst.msk [vmem:[%s967] sm:$0xf0] %vm964, %v963
    %s969 = scalar_lea.vmem [#allocation0], 1152
    %v970 = vld [vmem:[%s969] ss:$8 sm:$0xf]
    %s971 = scalar_lea.vmem [#allocation0], 1152
    %v972 = vld [vmem:[%s971] ss:$8 sm:$0xf0]
    %vm973 = vcmask 1047556
    %v974 = vsel %vm973, %v972, %v970
    %vm975 = vcmask 400384
    %s976 = scalar_lea.vmem %s1, 172
    %977 = vst.msk [vmem:[%s976] sm:$0xff] %vm975, %v974
    %s978 = scalar_lea.vmem [#allocation0], 1216
    %v979 = vld [vmem:[%s978] ss:$8 sm:$0xf]
    %s980 = scalar_lea.vmem [#allocation0], 1216
    %v981 = vld [vmem:[%s980] ss:$8 sm:$0xf0]
    %vm982 = vcmask 1047556
    %v983 = vsel %vm982, %v981, %v979
    %vm984 = vcmask 400384
    %s985 = scalar_lea.vmem %s1, 180
    %986 = vst.msk [vmem:[%s985] sm:$0xff] %vm984, %v983
    %s987 = scalar_lea.vmem [#allocation0], 1280
    %v988 = vld [vmem:[%s987] ss:$8 sm:$0xf]
    %s989 = scalar_lea.vmem [#allocation0], 1280
    %v990 = vld [vmem:[%s989] ss:$8 sm:$0xf0]
    %vm991 = vcmask 1047556
    %v992 = vsel %vm991, %v990, %v988
    %vm993 = vcmask 400384
    %s994 = scalar_lea.vmem %s1, 192
    %995 = vst.msk [vmem:[%s994] sm:$0xff] %vm993, %v992
    %s996 = scalar_lea.vmem [#allocation0], 1344
    %v997 = vld [vmem:[%s996] ss:$8 sm:$0xf]
    %s998 = scalar_lea.vmem [#allocation0], 1344
    %v999 = vld [vmem:[%s998] ss:$8 sm:$0xf0]
    %vm1000 = vcmask 1047556
    %v1001 = vsel %vm1000, %v999, %v997
    %vm1002 = vcmask 400384
    %s1003 = scalar_lea.vmem %s1, 200
    %1004 = vst.msk [vmem:[%s1003] sm:$0xff] %vm1002, %v1001
    %s1005 = scalar_lea.vmem [#allocation0], 1408
    %v1006 = vld [vmem:[%s1005] ss:$8 sm:$0xf]
    %s1007 = scalar_lea.vmem [#allocation0], 1408
    %v1008 = vld [vmem:[%s1007] ss:$8 sm:$0xf0]
    %vm1009 = vcmask 1047556
    %v1010 = vsel %vm1009, %v1008, %v1006
    %vm1011 = vcmask 400384
    %s1012 = scalar_lea.vmem %s1, 208
    %1013 = vst.msk [vmem:[%s1012] sm:$0xf] %vm1011, %v1010
    %s1014 = scalar_lea.vmem %s1, 212
    %1015 = vst.msk [vmem:[%s1014] sm:$0xf0] %vm1011, %v1010
    %s1016 = scalar_lea.vmem [#allocation0], 1472
    %v1017 = vld [vmem:[%s1016] ss:$8 sm:$0xf]
    %s1018 = scalar_lea.vmem [#allocation0], 1472
    %v1019 = vld [vmem:[%s1018] ss:$8 sm:$0xf0]
    %vm1020 = vcmask 1047556
    %v1021 = vsel %vm1020, %v1019, %v1017
    %vm1022 = vcmask 400384
    %s1023 = scalar_lea.vmem %s1, 220
    %1024 = vst.msk [vmem:[%s1023] sm:$0xff] %vm1022, %v1021
    %s1025 = scalar_lea.vmem [#allocation0], 1536
    %v1026 = vld [vmem:[%s1025] ss:$8 sm:$0xf]
    %s1027 = scalar_lea.vmem [#allocation0], 1536
    %v1028 = vld [vmem:[%s1027] ss:$8 sm:$0xf0]
    %vm1029 = vcmask 1047556
    %v1030 = vsel %vm1029, %v1028, %v1026
    %vm1031 = vcmask 400384
    %s1032 = scalar_lea.vmem %s1, 228
    %1033 = vst.msk [vmem:[%s1032] sm:$0xff] %vm1031, %v1030
    %s1034 = scalar_lea.vmem [#allocation0], 1
    %v1035 = vld [vmem:[%s1034] ss:$8 sm:$0xf]
    %s1036 = scalar_lea.vmem [#allocation0], 1
    %v1037 = vld [vmem:[%s1036] ss:$8 sm:$0xf0]
    %vm1038 = vcmask 1047556
    %v1039 = vsel %vm1038, %v1037, %v1035
    %1040 = vrot.lane.b32.xlu0 %v1039, 49
    %v1041 = vpop.permute.xlu0 %1040
    %vm1042 = vcmask 802184
    %1043 = vst.msk [vmem:[%s1] sm:$0xff] %vm1042, %v1041
    %s1044 = scalar_lea.vmem [#allocation0], 225
    %v1045 = vld [vmem:[%s1044] ss:$8 sm:$0xf]
    %s1046 = scalar_lea.vmem [#allocation0], 225
    %v1047 = vld [vmem:[%s1046] ss:$8 sm:$0xf0]
    %vm1048 = vcmask 1047556
    %v1049 = vsel %vm1048, %v1047, %v1045
    %1050 = vrot.lane.b32.xlu0 %v1049, 49
    %v1051 = vpop.permute.xlu0 %1050
    %vm1052 = vcmask 802184
    %s1053 = scalar_lea.vmem %s1, 32
    %1054 = vst.msk [vmem:[%s1053] sm:$0xff] %vm1052, %v1051
    %s1055 = scalar_lea.vmem [#allocation0], 449
    %v1056 = vld [vmem:[%s1055] ss:$8 sm:$0xf]
    %s1057 = scalar_lea.vmem [#allocation0], 641
    %v1058 = vld [vmem:[%s1057] ss:$8 sm:$0xf0]
    %vm1059 = vcmask 1047556
    %v1060 = vsel %vm1059, %v1058, %v1056
    %1061 = vrot.lane.b32.xlu0 %v1060, 49
    %v1062 = vpop.permute.xlu0 %1061
    %vm1063 = vcmask 802184
    %s1064 = scalar_lea.vmem %s1, 64
    %1065 = vst.msk [vmem:[%s1064] sm:$0xf] %vm1063, %v1062
    %s1066 = scalar_lea.vmem %s1, 96
    %1067 = vst.msk [vmem:[%s1066] sm:$0xf0] %vm1063, %v1062
    %s1068 = scalar_lea.vmem [#allocation0], 641
    %v1069 = vld [vmem:[%s1068] ss:$8 sm:$0xf]
    %s1070 = scalar_lea.vmem [#allocation0], 865
    %v1071 = vld [vmem:[%s1070] ss:$8 sm:$0xf0]
    %vm1072 = vcmask 1047556
    %v1073 = vsel %vm1072, %v1071, %v1069
    %1074 = vrot.lane.b32.xlu0 %v1073, 49
    %v1075 = vpop.permute.xlu0 %1074
    %vm1076 = vcmask 802184
    %s1077 = scalar_lea.vmem %s1, 96
    %1078 = vst.msk [vmem:[%s1077] sm:$0xf] %vm1076, %v1075
    %s1079 = scalar_lea.vmem %s1, 128
    %1080 = vst.msk [vmem:[%s1079] sm:$0xf0] %vm1076, %v1075
    %s1081 = scalar_lea.vmem [#allocation0], 865
    %v1082 = vld [vmem:[%s1081] ss:$8 sm:$0xf]
    %s1083 = scalar_lea.vmem [#allocation0], 1281
    %v1084 = vld [vmem:[%s1083] ss:$8 sm:$0xf0]
    %vm1085 = vcmask 1047556
    %v1086 = vsel %vm1085, %v1084, %v1082
    %1087 = vrot.lane.b32.xlu0 %v1086, 49
    %v1088 = vpop.permute.xlu0 %1087
    %vm1089 = vcmask 802184
    %s1090 = scalar_lea.vmem %s1, 128
    %1091 = vst.msk [vmem:[%s1090] sm:$0xf] %vm1089, %v1088
    %s1092 = scalar_lea.vmem %s1, 192
    %1093 = vst.msk [vmem:[%s1092] sm:$0xf0] %vm1089, %v1088
    %s1094 = scalar_lea.vmem [#allocation0], 1089
    %v1095 = vld [vmem:[%s1094] ss:$8 sm:$0xf]
    %s1096 = scalar_lea.vmem [#allocation0], 1505
    %v1097 = vld [vmem:[%s1096] ss:$8 sm:$0xf0]
    %vm1098 = vcmask 1047556
    %v1099 = vsel %vm1098, %v1097, %v1095
    %1100 = vrot.lane.b32.xlu0 %v1099, 49
    %v1101 = vpop.permute.xlu0 %1100
    %vm1102 = vcmask 802184
    %s1103 = scalar_lea.vmem %s1, 160
    %1104 = vst.msk [vmem:[%s1103] sm:$0xf] %vm1102, %v1101
    %s1105 = scalar_lea.vmem %s1, 224
    %1106 = vst.msk [vmem:[%s1105] sm:$0xf0] %vm1102, %v1101
    %s1107 = scalar_lea.vmem [#allocation0], 1281
    %v1108 = vld [vmem:[%s1107] ss:$8 sm:$0xf]
    %s1109 = scalar_lea.vmem [#allocation0], 33
    %v1110 = vld [vmem:[%s1109] ss:$8 sm:$0xf0]
    %vm1111 = vcmask 1047556
    %v1112 = vsel %vm1111, %v1110, %v1108
    %1113 = vrot.lane.b32.xlu0 %v1112, 49
    %v1114 = vpop.permute.xlu0 %1113
    %vm1115 = vcmask 802184
    %s1116 = scalar_lea.vmem %s1, 192
    %1117 = vst.msk [vmem:[%s1116] sm:$0xf] %vm1115, %v1114
    %s1118 = scalar_lea.vmem %s1, 4
    %1119 = vst.msk [vmem:[%s1118] sm:$0xf0] %vm1115, %v1114
    %s1120 = scalar_lea.vmem [#allocation0], 1505
    %v1121 = vld [vmem:[%s1120] ss:$8 sm:$0xf]
    %s1122 = scalar_lea.vmem [#allocation0], 257
    %v1123 = vld [vmem:[%s1122] ss:$8 sm:$0xf0]
    %vm1124 = vcmask 1047556
    %v1125 = vsel %vm1124, %v1123, %v1121
    %1126 = vrot.lane.b32.xlu0 %v1125, 49
    %v1127 = vpop.permute.xlu0 %1126
    %vm1128 = vcmask 802184
    %s1129 = scalar_lea.vmem %s1, 224
    %1130 = vst.msk [vmem:[%s1129] sm:$0xf] %vm1128, %v1127
    %s1131 = scalar_lea.vmem %s1, 36
    %1132 = vst.msk [vmem:[%s1131] sm:$0xf0] %vm1128, %v1127
    %s1133 = scalar_lea.vmem [#allocation0], 481
    %v1134 = vld [vmem:[%s1133] ss:$8 sm:$0xf]
    %s1135 = scalar_lea.vmem [#allocation0], 65
    %v1136 = vld [vmem:[%s1135] ss:$8 sm:$0xf0]
    %vm1137 = vcmask 1047556
    %v1138 = vsel %vm1137, %v1136, %v1134
    %1139 = vrot.lane.b32.xlu0 %v1138, 49
    %v1140 = vpop.permute.xlu0 %1139
    %vm1141 = vcmask 802184
    %s1142 = scalar_lea.vmem %s1, 72
    %1143 = vst.msk [vmem:[%s1142] sm:$0xf] %vm1141, %v1140
    %s1144 = scalar_lea.vmem %s1, 8
    %1145 = vst.msk [vmem:[%s1144] sm:$0xf0] %vm1141, %v1140
    %s1146 = scalar_lea.vmem [#allocation0], 705
    %v1147 = vld [vmem:[%s1146] ss:$8 sm:$0xf]
    %s1148 = scalar_lea.vmem [#allocation0], 481
    %v1149 = vld [vmem:[%s1148] ss:$8 sm:$0xf0]
    %vm1150 = vcmask 1047556
    %v1151 = vsel %vm1150, %v1149, %v1147
    %1152 = vrot.lane.b32.xlu0 %v1151, 49
    %v1153 = vpop.permute.xlu0 %1152
    %vm1154 = vcmask 802184
    %s1155 = scalar_lea.vmem %s1, 104
    %1156 = vst.msk [vmem:[%s1155] sm:$0xf] %vm1154, %v1153
    %s1157 = scalar_lea.vmem %s1, 72
    %1158 = vst.msk [vmem:[%s1157] sm:$0xf0] %vm1154, %v1153
    %s1159 = scalar_lea.vmem [#allocation0], 929
    %v1160 = vld [vmem:[%s1159] ss:$8 sm:$0xf]
    %s1161 = scalar_lea.vmem [#allocation0], 705
    %v1162 = vld [vmem:[%s1161] ss:$8 sm:$0xf0]
    %vm1163 = vcmask 1047556
    %v1164 = vsel %vm1163, %v1162, %v1160
    %1165 = vrot.lane.b32.xlu0 %v1164, 49
    %v1166 = vpop.permute.xlu0 %1165
    %vm1167 = vcmask 802184
    %s1168 = scalar_lea.vmem %s1, 136
    %1169 = vst.msk [vmem:[%s1168] sm:$0xf] %vm1167, %v1166
    %s1170 = scalar_lea.vmem %s1, 104
    %1171 = vst.msk [vmem:[%s1170] sm:$0xf0] %vm1167, %v1166
    %s1172 = scalar_lea.vmem [#allocation0], 1121
    %v1173 = vld [vmem:[%s1172] ss:$8 sm:$0xf]
    %s1174 = scalar_lea.vmem [#allocation0], 1121
    %v1175 = vld [vmem:[%s1174] ss:$8 sm:$0xf0]
    %vm1176 = vcmask 1047556
    %v1177 = vsel %vm1176, %v1175, %v1173
    %1178 = vrot.lane.b32.xlu0 %v1177, 49
    %v1179 = vpop.permute.xlu0 %1178
    %vm1180 = vcmask 802184
    %s1181 = scalar_lea.vmem %s1, 168
    %1182 = vst.msk [vmem:[%s1181] sm:$0xff] %vm1180, %v1179
    %s1183 = scalar_lea.vmem [#allocation0], 1345
    %v1184 = vld [vmem:[%s1183] ss:$8 sm:$0xf]
    %s1185 = scalar_lea.vmem [#allocation0], 1345
    %v1186 = vld [vmem:[%s1185] ss:$8 sm:$0xf0]
    %vm1187 = vcmask 1047556
    %v1188 = vsel %vm1187, %v1186, %v1184
    %1189 = vrot.lane.b32.xlu0 %v1188, 49
    %v1190 = vpop.permute.xlu0 %1189
    %vm1191 = vcmask 802184
    %s1192 = scalar_lea.vmem %s1, 200
    %1193 = vst.msk [vmem:[%s1192] sm:$0xff] %vm1191, %v1190
    %s1194 = scalar_lea.vmem [#allocation0], 1569
    %v1195 = vld [vmem:[%s1194] ss:$8 sm:$0xf]
    %s1196 = scalar_lea.vmem [#allocation0], 97
    %v1197 = vld [vmem:[%s1196] ss:$8 sm:$0xf0]
    %vm1198 = vcmask 1047556
    %v1199 = vsel %vm1198, %v1197, %v1195
    %1200 = vrot.lane.b32.xlu0 %v1199, 49
    %v1201 = vpop.permute.xlu0 %1200
    %vm1202 = vcmask 802184
    %s1203 = scalar_lea.vmem %s1, 232
    %1204 = vst.msk [vmem:[%s1203] sm:$0xf] %vm1202, %v1201
    %s1205 = scalar_lea.vmem %s1, 12
    %1206 = vst.msk [vmem:[%s1205] sm:$0xf0] %vm1202, %v1201
    %s1207 = scalar_lea.vmem [#allocation0], 321
    %v1208 = vld [vmem:[%s1207] ss:$8 sm:$0xf]
    %s1209 = scalar_lea.vmem [#allocation0], 321
    %v1210 = vld [vmem:[%s1209] ss:$8 sm:$0xf0]
    %vm1211 = vcmask 1047556
    %v1212 = vsel %vm1211, %v1210, %v1208
    %1213 = vrot.lane.b32.xlu0 %v1212, 49
    %v1214 = vpop.permute.xlu0 %1213
    %vm1215 = vcmask 802184
    %s1216 = scalar_lea.vmem %s1, 48
    %1217 = vst.msk [vmem:[%s1216] sm:$0xff] %vm1215, %v1214
    %s1218 = scalar_lea.vmem [#allocation0], 545
    %v1219 = vld [vmem:[%s1218] ss:$8 sm:$0xf]
    %s1220 = scalar_lea.vmem [#allocation0], 545
    %v1221 = vld [vmem:[%s1220] ss:$8 sm:$0xf0]
    %vm1222 = vcmask 1047556
    %v1223 = vsel %vm1222, %v1221, %v1219
    %1224 = vrot.lane.b32.xlu0 %v1223, 49
    %v1225 = vpop.permute.xlu0 %1224
    %vm1226 = vcmask 802184
    %s1227 = scalar_lea.vmem %s1, 80
    %1228 = vst.msk [vmem:[%s1227] sm:$0xff] %vm1226, %v1225
    %s1229 = scalar_lea.vmem [#allocation0], 769
    %v1230 = vld [vmem:[%s1229] ss:$8 sm:$0xf]
    %s1231 = scalar_lea.vmem [#allocation0], 961
    %v1232 = vld [vmem:[%s1231] ss:$8 sm:$0xf0]
    %vm1233 = vcmask 1047556
    %v1234 = vsel %vm1233, %v1232, %v1230
    %1235 = vrot.lane.b32.xlu0 %v1234, 49
    %v1236 = vpop.permute.xlu0 %1235
    %vm1237 = vcmask 802184
    %s1238 = scalar_lea.vmem %s1, 112
    %1239 = vst.msk [vmem:[%s1238] sm:$0xf] %vm1237, %v1236
    %s1240 = scalar_lea.vmem %s1, 144
    %1241 = vst.msk [vmem:[%s1240] sm:$0xf0] %vm1237, %v1236
    %s1242 = scalar_lea.vmem [#allocation0], 961
    %v1243 = vld [vmem:[%s1242] ss:$8 sm:$0xf]
    %s1244 = scalar_lea.vmem [#allocation0], 1185
    %v1245 = vld [vmem:[%s1244] ss:$8 sm:$0xf0]
    %vm1246 = vcmask 1047556
    %v1247 = vsel %vm1246, %v1245, %v1243
    %1248 = vrot.lane.b32.xlu0 %v1247, 49
    %v1249 = vpop.permute.xlu0 %1248
    %vm1250 = vcmask 802184
    %s1251 = scalar_lea.vmem %s1, 144
    %1252 = vst.msk [vmem:[%s1251] sm:$0xf] %vm1250, %v1249
    %s1253 = scalar_lea.vmem %s1, 176
    %1254 = vst.msk [vmem:[%s1253] sm:$0xf0] %vm1250, %v1249
    %s1255 = scalar_lea.vmem [#allocation0], 1185
    %v1256 = vld [vmem:[%s1255] ss:$8 sm:$0xf]
    %s1257 = scalar_lea.vmem [#allocation0], 129
    %v1258 = vld [vmem:[%s1257] ss:$8 sm:$0xf0]
    %vm1259 = vcmask 1047556
    %v1260 = vsel %vm1259, %v1258, %v1256
    %1261 = vrot.lane.b32.xlu0 %v1260, 49
    %v1262 = vpop.permute.xlu0 %1261
    %vm1263 = vcmask 802184
    %s1264 = scalar_lea.vmem %s1, 176
    %1265 = vst.msk [vmem:[%s1264] sm:$0xf] %vm1263, %v1262
    %s1266 = scalar_lea.vmem %s1, 20
    %1267 = vst.msk [vmem:[%s1266] sm:$0xf0] %vm1263, %v1262
    %s1268 = scalar_lea.vmem [#allocation0], 1409
    %v1269 = vld [vmem:[%s1268] ss:$8 sm:$0xf]
    %s1270 = scalar_lea.vmem [#allocation0], 353
    %v1271 = vld [vmem:[%s1270] ss:$8 sm:$0xf0]
    %vm1272 = vcmask 1047556
    %v1273 = vsel %vm1272, %v1271, %v1269
    %1274 = vrot.lane.b32.xlu0 %v1273, 49
    %v1275 = vpop.permute.xlu0 %1274
    %vm1276 = vcmask 802184
    %s1277 = scalar_lea.vmem %s1, 208
    %1278 = vst.msk [vmem:[%s1277] sm:$0xf] %vm1276, %v1275
    %s1279 = scalar_lea.vmem %s1, 52
    %1280 = vst.msk [vmem:[%s1279] sm:$0xf0] %vm1276, %v1275
    %s1281 = scalar_lea.vmem [#allocation0], 609
    %v1282 = vld [vmem:[%s1281] ss:$8 sm:$0xf]
    %s1283 = scalar_lea.vmem [#allocation0], 161
    %v1284 = vld [vmem:[%s1283] ss:$8 sm:$0xf0]
    %vm1285 = vcmask 1047556
    %v1286 = vsel %vm1285, %v1284, %v1282
    %1287 = vrot.lane.b32.xlu0 %v1286, 49
    %v1288 = vpop.permute.xlu0 %1287
    %vm1289 = vcmask 802184
    %s1290 = scalar_lea.vmem %s1, 88
    %1291 = vst.msk [vmem:[%s1290] sm:$0xf] %vm1289, %v1288
    %s1292 = scalar_lea.vmem %s1, 24
    %1293 = vst.msk [vmem:[%s1292] sm:$0xf0] %vm1289, %v1288
    %s1294 = scalar_lea.vmem [#allocation0], 801
    %v1295 = vld [vmem:[%s1294] ss:$8 sm:$0xf]
    %s1296 = scalar_lea.vmem [#allocation0], 385
    %v1297 = vld [vmem:[%s1296] ss:$8 sm:$0xf0]
    %vm1298 = vcmask 1047556
    %v1299 = vsel %vm1298, %v1297, %v1295
    %1300 = vrot.lane.b32.xlu0 %v1299, 49
    %v1301 = vpop.permute.xlu0 %1300
    %vm1302 = vcmask 802184
    %s1303 = scalar_lea.vmem %s1, 120
    %1304 = vst.msk [vmem:[%s1303] sm:$0xf] %vm1302, %v1301
    %s1305 = scalar_lea.vmem %s1, 56
    %1306 = vst.msk [vmem:[%s1305] sm:$0xf0] %vm1302, %v1301
    %s1307 = scalar_lea.vmem [#allocation0], 1025
    %v1308 = vld [vmem:[%s1307] ss:$8 sm:$0xf]
    %s1309 = scalar_lea.vmem [#allocation0], 801
    %v1310 = vld [vmem:[%s1309] ss:$8 sm:$0xf0]
    %vm1311 = vcmask 1047556
    %v1312 = vsel %vm1311, %v1310, %v1308
    %1313 = vrot.lane.b32.xlu0 %v1312, 49
    %v1314 = vpop.permute.xlu0 %1313
    %vm1315 = vcmask 802184
    %s1316 = scalar_lea.vmem %s1, 152
    %1317 = vst.msk [vmem:[%s1316] sm:$0xf] %vm1315, %v1314
    %s1318 = scalar_lea.vmem %s1, 120
    %1319 = vst.msk [vmem:[%s1318] sm:$0xf0] %vm1315, %v1314
    %s1320 = scalar_lea.vmem [#allocation0], 1249
    %v1321 = vld [vmem:[%s1320] ss:$8 sm:$0xf]
    %s1322 = scalar_lea.vmem [#allocation0], 1025
    %v1323 = vld [vmem:[%s1322] ss:$8 sm:$0xf0]
    %vm1324 = vcmask 1047556
    %v1325 = vsel %vm1324, %v1323, %v1321
    %1326 = vrot.lane.b32.xlu0 %v1325, 49
    %v1327 = vpop.permute.xlu0 %1326
    %vm1328 = vcmask 802184
    %s1329 = scalar_lea.vmem %s1, 184
    %1330 = vst.msk [vmem:[%s1329] sm:$0xf] %vm1328, %v1327
    %s1331 = scalar_lea.vmem %s1, 152
    %1332 = vst.msk [vmem:[%s1331] sm:$0xf0] %vm1328, %v1327
    %s1333 = scalar_lea.vmem [#allocation0], 1441
    %v1334 = vld [vmem:[%s1333] ss:$8 sm:$0xf]
    %s1335 = scalar_lea.vmem [#allocation0], 1441
    %v1336 = vld [vmem:[%s1335] ss:$8 sm:$0xf0]
    %vm1337 = vcmask 1047556
    %v1338 = vsel %vm1337, %v1336, %v1334
    %1339 = vrot.lane.b32.xlu0 %v1338, 49
    %v1340 = vpop.permute.xlu0 %1339
    %vm1341 = vcmask 802184
    %s1342 = scalar_lea.vmem %s1, 216
    %1343 = vst.msk [vmem:[%s1342] sm:$0xff] %vm1341, %v1340

// kernel: tile.10
$region0: #{tile.10}
  #allocation0 [shape = 's32[1]{0}', space=sflag, size = 0x4, scoped, tag = 'scoped memory for tile.10']
  %s0 = inlined_call_operand.vmem [shape: f32[10], index: 0, kind: input, shape index: {}]
  %s1 = inlined_call_operand.vmem [shape: f32[4,1,1,10], index: 1, kind: output, shape index: {}]
  // Predicated region
  $region2: #{tile.10} parent=0 // pred_check
    _
  $region3: #{tile.10} parent=0 // pred_check_branch
    %3 = sbr.rel (0) target = $region5
  $region4: #{tile.10} parent=0 // pred_region
    _
  $region5: #{tile.10} parent=0 // pred_fallthru
    _
  %v4 = vld [vmem:[%s0] ss:$0 sm:$0xff]
  %5 = vst [vmem:[%s1] sm:$0xf] %v4

// kernel: tile.0
$region0: #{tile.0}
  %s0 = inlined_call_operand.vmem [shape: f32[4,1,1,10], index: 0, kind: input, shape index: {}]
  %s1 = inlined_call_operand.vmem [shape: f32[40,1], index: 1, kind: output, shape index: {}]
  $region1: #{tile.0} parent=0
    #allocation0 [shape = 'u8[4096]{0}', space=vmem, size = 0x1000, scoped, tag = 'scoped mem for input reshape']
    %s3 = ssub.s32 16, 1
    %v4 = vld [vmem:[%s0] sm:%s3]
    %5 = vst [vmem:[#allocation0] sm:%s3] %v4
    %v6 = vld [vmem:[#allocation0] sm:$0xf]
    %vm7 = vcmask 7168
    %8 = vst.msk [vmem:[%s1] ss:$10 sm:$0xf] %vm7, %v6
    %v9 = vld [vmem:[#allocation0] sm:$0xf]
    %10 = vrot.lane.b32.xlu0 %v9, 127
    %v11 = vpop.permute.xlu0 %10
    %vm12 = vcmask 7168
    %s13 = scalar_lea.vmem %s1, 1
    %14 = vst.msk [vmem:[%s13] ss:$10 sm:$0xf] %vm12, %v11
    %v15 = vld.sshfl [vmem:[#allocation0] sm:$0xff pattern:$0x22222103]
    %16 = vrot.lane.b32.xlu0 %v15, 126
    %v17 = vpop.permute.xlu0 %16
    %vm18 = vcmask 7168
    %s19 = scalar_lea.vmem %s1, 32
    %20 = vst.msk [vmem:[%s19] ss:$-30 sm:$0x3] %vm18, %v17
    %s21 = scalar_lea.vmem %s1, 4294967288
    %22 = vst.msk [vmem:[%s21] ss:$10 sm:$0xc] %vm18, %v17
    %v23 = vld.sshfl [vmem:[#allocation0] sm:$0xff pattern:$0x22222103]
    %24 = vrot.lane.b32.xlu0 %v23, 125
    %v25 = vpop.permute.xlu0 %24
    %vm26 = vcmask 7168
    %s27 = scalar_lea.vmem %s1, 33
    %28 = vst.msk [vmem:[%s27] ss:$-30 sm:$0x3] %vm26, %v25
    %s29 = scalar_lea.vmem %s1, 4294967289
    %30 = vst.msk [vmem:[%s29] ss:$10 sm:$0xc] %vm26, %v25
    %v31 = vld.sshfl [vmem:[#allocation0] sm:$0xff pattern:$0x22222103]
    %32 = vrot.lane.b32.xlu0 %v31, 124
    %v33 = vpop.permute.xlu0 %32
    %vm34 = vcmask 7168
    %s35 = scalar_lea.vmem %s1, 34
    %36 = vst.msk [vmem:[%s35] ss:$-30 sm:$0x3] %vm34, %v33
    %s37 = scalar_lea.vmem %s1, 4294967290
    %38 = vst.msk [vmem:[%s37] ss:$10 sm:$0xc] %vm34, %v33
    %v39 = vld.sshfl [vmem:[#allocation0] sm:$0xff pattern:$0x22222103]
    %40 = vrot.lane.b32.xlu0 %v39, 123
    %v41 = vpop.permute.xlu0 %40
    %vm42 = vcmask 7168
    %s43 = scalar_lea.vmem %s1, 35
    %44 = vst.msk [vmem:[%s43] ss:$-30 sm:$0x3] %vm42, %v41
    %s45 = scalar_lea.vmem %s1, 4294967291
    %46 = vst.msk [vmem:[%s45] ss:$10 sm:$0xc] %vm42, %v41
    %v47 = vld.sshfl [vmem:[#allocation0] sm:$0xff pattern:$0x22222103]
    %48 = vrot.lane.b32.xlu0 %v47, 122
    %v49 = vpop.permute.xlu0 %48
    %vm50 = vcmask 7168
    %s51 = scalar_lea.vmem %s1, 36
    %52 = vst.msk [vmem:[%s51] ss:$-30 sm:$0x3] %vm50, %v49
    %s53 = scalar_lea.vmem %s1, 4294967292
    %54 = vst.msk [vmem:[%s53] ss:$10 sm:$0xc] %vm50, %v49
    %v55 = vld.sshfl [vmem:[#allocation0] sm:$0xff pattern:$0x22222103]
    %56 = vrot.lane.b32.xlu0 %v55, 121
    %v57 = vpop.permute.xlu0 %56
    %vm58 = vcmask 7168
    %s59 = scalar_lea.vmem %s1, 37
    %60 = vst.msk [vmem:[%s59] ss:$-30 sm:$0x3] %vm58, %v57
    %s61 = scalar_lea.vmem %s1, 4294967293
    %62 = vst.msk [vmem:[%s61] ss:$10 sm:$0xc] %vm58, %v57
    %v63 = vld.sshfl [vmem:[#allocation0] sm:$0xff pattern:$0x22222103]
    %64 = vrot.lane.b32.xlu0 %v63, 120
    %v65 = vpop.permute.xlu0 %64
    %vm66 = vcmask 7168
    %s67 = scalar_lea.vmem %s1, 38
    %68 = vst.msk [vmem:[%s67] ss:$-30 sm:$0x3] %vm66, %v65
    %s69 = scalar_lea.vmem %s1, 4294967294
    %70 = vst.msk [vmem:[%s69] ss:$10 sm:$0xc] %vm66, %v65
    %v71 = vld.sshfl [vmem:[#allocation0] sm:$0xff pattern:$0x22222103]
    %72 = vrot.lane.b32.xlu0 %v71, 119
    %v73 = vpop.permute.xlu0 %72
    %vm74 = vcmask 7168
    %s75 = scalar_lea.vmem %s1, 39
    %76 = vst.msk [vmem:[%s75] ss:$-30 sm:$0x3] %vm74, %v73
    %s77 = scalar_lea.vmem %s1, 4294967295
    %78 = vst.msk [vmem:[%s77] ss:$10 sm:$0xc] %vm74, %v73

// kernel: _lambda_.1
$region0: #{_lambda_.1}
  #allocation0 [shape = 'u32[]', space=smem, size = 0x4, offset = 0x4, fixed_abs, tag = 'smem constant byte address 0x4 - core index']
  #allocation1 [shape = 'u32[72,128]{1,0:T(1,128)}', space=vmem, size = 0x9000, scoped, tag = 'internal scratch']
  %s0 = inlined_call_operand.vmem [shape: f32[1,16,128], index: 0, kind: input, shape index: {}]
  %s1 = inlined_call_operand.vmem [shape: f32[160,64], index: 1, kind: input, shape index: {}]
  %s2 = inlined_call_operand.vmem [shape: f32[40,1], index: 2, kind: input, shape index: {}]
  %s3 = inlined_call_operand.vmem [shape: f32[9,80,40], index: 3, kind: input, shape index: {}]
  %s4 = inlined_call_operand.vmem [shape: f32[20,1], index: 4, kind: input, shape index: {}]
  %s5 = inlined_call_operand.vmem [shape: f32[10,20,98], index: 5, kind: input, shape index: {}]
  %s6 = inlined_call_operand.vmem [shape: f32[98,128], index: 6, kind: input, shape index: {}]
  %s7 = inlined_call_operand.vmem [shape: f32[10,1], index: 7, kind: input, shape index: {}]
  %s8 = inlined_call_operand.vmem [shape: f32[1,10,128], index: 8, kind: output, shape index: {}]
  %s9 = sld [smem:[#allocation0]]
  $region42: #{_lambda_.1} parent=0
    _
  %s11 = ssub.s32 1, %s9
  %s12 = scalar_select 0, %s11, %s9
  // Predicated region
  $region2: #{_lambda_.1} parent=0 // pred_check
    _
  $region3: #{_lambda_.1} parent=0 // pred_check_branch
    %14 = sbr.rel (0) target = $region5
  $region4: #{_lambda_.1} parent=0 // pred_region
    _
  $region5: #{_lambda_.1} parent=0 // pred_fallthru
    _
  // Predicated region
  $region6: #{_lambda_.1} parent=0 // pred_check
    _
  $region7: #{_lambda_.1} parent=0 // pred_check_branch
    %16 = sbr.rel (0) target = $region9
  $region8: #{_lambda_.1} parent=0 // pred_region
    _
  $region9: #{_lambda_.1} parent=0 // pred_fallthru
    _
  // Predicated region
  $region10: #{_lambda_.1} parent=0 // pred_check
    _
  $region11: #{_lambda_.1} parent=0 // pred_check_branch
    %18 = sbr.rel (0) target = $region13
  $region12: #{_lambda_.1} parent=0 // pred_region
    _
  $region13: #{_lambda_.1} parent=0 // pred_fallthru
    _
  // Predicated region
  $region14: #{_lambda_.1} parent=0 // pred_check
    _
  $region15: #{_lambda_.1} parent=0 // pred_check_branch
    %20 = sbr.rel (0) target = $region17
  $region16: #{_lambda_.1} parent=0 // pred_region
    _
  $region17: #{_lambda_.1} parent=0 // pred_fallthru
    _
  // Predicated region
  $region18: #{_lambda_.1} parent=0 // pred_check
    _
  $region19: #{_lambda_.1} parent=0 // pred_check_branch
    %22 = sbr.rel (0) target = $region21
  $region20: #{_lambda_.1} parent=0 // pred_region
    _
  $region21: #{_lambda_.1} parent=0 // pred_fallthru
    _
  // Predicated region
  $region22: #{_lambda_.1} parent=0 // pred_check
    _
  $region23: #{_lambda_.1} parent=0 // pred_check_branch
    %24 = sbr.rel (0) target = $region25
  $region24: #{_lambda_.1} parent=0 // pred_region
    _
  $region25: #{_lambda_.1} parent=0 // pred_fallthru
    _
  // Predicated region
  $region26: #{_lambda_.1} parent=0 // pred_check
    _
  $region27: #{_lambda_.1} parent=0 // pred_check_branch
    %26 = sbr.rel (0) target = $region29
  $region28: #{_lambda_.1} parent=0 // pred_region
    _
  $region29: #{_lambda_.1} parent=0 // pred_fallthru
    _
  // Predicated region
  $region30: #{_lambda_.1} parent=0 // pred_check
    _
  $region31: #{_lambda_.1} parent=0 // pred_check_branch
    %28 = sbr.rel (0) target = $region33
  $region32: #{_lambda_.1} parent=0 // pred_region
    _
  $region33: #{_lambda_.1} parent=0 // pred_fallthru
    _
  %v29 = vld [vmem:[%s0] sm:$0xff]
  %v30 = vld [vmem:[%s0 + $0x8] sm:$0xff]
  %33 = vrot.lane.b32.xlu0 %v29, 127
  %v34 = vpop.permute.xlu0 %33
  %35 = vrot.lane.b32.xlu0 %v30, 127
  %v36 = vpop.permute.xlu0 %35
  %39 = vrot.lane.b32.xlu0 %v29, 121
  %v40 = vpop.permute.xlu0 %39
  %41 = vrot.lane.b32.xlu0 %v30, 121
  %v42 = vpop.permute.xlu0 %41
  %45 = vrot.lane.b32.xlu0 %v29, 120
  %v46 = vpop.permute.xlu0 %45
  %47 = vrot.lane.b32.xlu0 %v30, 120
  %v48 = vpop.permute.xlu0 %47
  %v51 = vld [vmem:[%s1] sm:$0xff]
  %v52 = vld [vmem:[%s1 + $0x8] sm:$0xff]
  %v53 = vld [vmem:[%s1 + $0x10] sm:$0xff]
  %v54 = vld [vmem:[%s1 + $0x18] sm:$0xff]
  %v55 = vld [vmem:[%s1 + $0x20] sm:$0xff]
  %v56 = vld [vmem:[%s1 + $0x28] sm:$0xff]
  %v57 = vld [vmem:[%s1 + $0x30] sm:$0xff]
  %v58 = vld [vmem:[%s1 + $0x38] sm:$0xff]
  %v59 = vld [vmem:[%s1 + $0x40] sm:$0xff]
  %v60 = vld [vmem:[%s1 + $0x48] sm:$0xff]
  %v61 = vld [vmem:[%s1 + $0x50] sm:$0xff]
  %v62 = vld [vmem:[%s1 + $0x58] sm:$0xff]
  %v63 = vld [vmem:[%s1 + $0x60] sm:$0xff]
  %v64 = vld [vmem:[%s1 + $0x68] sm:$0xff]
  %v65 = vld [vmem:[%s1 + $0x70] sm:$0xff]
  %v66 = vld [vmem:[%s1 + $0x78] sm:$0xff]
  %v67 = vld [vmem:[%s1 + $0x80] sm:$0xff]
  %v68 = vld [vmem:[%s1 + $0x88] sm:$0xff]
  %v69 = vld [vmem:[%s1 + $0x90] sm:$0xff]
  %v70 = vld [vmem:[%s1 + $0x98] sm:$0xff]
  %vm71 = vcmask 523264
  %v73 = vsel %vm71, %v51, 0
  %v76 = vsel %vm71, %v52, 0
  %v79 = vsel %vm71, %v53, 0
  %v82 = vsel %vm71, %v54, 0
  %v85 = vsel %vm71, %v55, 0
  %v88 = vsel %vm71, %v56, 0
  %v91 = vsel %vm71, %v57, 0
  %v94 = vsel %vm71, %v58, 0
  %v97 = vsel %vm71, %v59, 0
  %v100 = vsel %vm71, %v60, 0
  %v103 = vsel %vm71, %v61, 0
  %v106 = vsel %vm71, %v62, 0
  %v109 = vsel %vm71, %v63, 0
  %v112 = vsel %vm71, %v64, 0
  %v115 = vsel %vm71, %v65, 0
  %v118 = vsel %vm71, %v66, 0
  %v121 = vsel %vm71, %v67, 0
  %v124 = vsel %vm71, %v68, 0
  %v127 = vsel %vm71, %v69, 0
  %v130 = vsel %vm71, %v70, 0
  %132 = vmatpush.msra.mxu0 0.0
  %133 = vmatpush.msra.mxu0 0.0
  %134 = vmatpush.msra.mxu0 0.0
  %135 = vmatpush.msra.mxu0 0.0
  %136 = vmatpush.msra.mxu0 0.0
  %137 = vmatpush.msra.mxu0 0.0
  %138 = vmatpush.msra.mxu0 0.0
  %139 = vmatpush.msra.mxu0 0.0
  %140 = vmatpush.msra.mxu0 %v48
  %141 = vmatpush.msra.mxu0 %v46
  %142 = vmatpush.msra.mxu0 %v42
  %143 = vmatpush.msra.mxu0 %v40
  %144 = vmatpush.msra.mxu0 %v36
  %145 = vmatpush.msra.mxu0 %v34
  %146 = vmatpush.msra.mxu0 %v30
  %147 = vmatpush.msra.mxu0 %v29
  %148 = vmatmul.f32.gmra.mxu0 %v73
  %v149 = vpop.f32.mrf.mxu0
  %v150 = vadd.f32 0.0, %v149
  %151 = vmatmul.f32.gmra.mxu0 %v76
  %v152 = vpop.f32.mrf.mxu0
  %v153 = vadd.f32 0.0, %v152
  %154 = vmatmul.f32.gmra.mxu0 %v79
  %v155 = vpop.f32.mrf.mxu0
  %v156 = vadd.f32 0.0, %v155
  %157 = vmatmul.f32.gmra.mxu0 %v82
  %v158 = vpop.f32.mrf.mxu0
  %v159 = vadd.f32 0.0, %v158
  %160 = vmatmul.f32.gmra.mxu0 %v85
  %v161 = vpop.f32.mrf.mxu0
  %v162 = vadd.f32 0.0, %v161
  %163 = vmatmul.f32.gmra.mxu0 %v88
  %v164 = vpop.f32.mrf.mxu0
  %v165 = vadd.f32 0.0, %v164
  %166 = vmatmul.f32.gmra.mxu0 %v91
  %v167 = vpop.f32.mrf.mxu0
  %v168 = vadd.f32 0.0, %v167
  %169 = vmatmul.f32.gmra.mxu0 %v94
  %v170 = vpop.f32.mrf.mxu0
  %v171 = vadd.f32 0.0, %v170
  %172 = vmatmul.f32.gmra.mxu0 %v97
  %v173 = vpop.f32.mrf.mxu0
  %v174 = vadd.f32 0.0, %v173
  %175 = vmatmul.f32.gmra.mxu0 %v100
  %v176 = vpop.f32.mrf.mxu0
  %v177 = vadd.f32 0.0, %v176
  %178 = vmatmul.f32.gmra.mxu0 %v103
  %v179 = vpop.f32.mrf.mxu0
  %v180 = vadd.f32 0.0, %v179
  %181 = vmatmul.f32.gmra.mxu0 %v106
  %v182 = vpop.f32.mrf.mxu0
  %v183 = vadd.f32 0.0, %v182
  %184 = vmatmul.f32.gmra.mxu0 %v109
  %v185 = vpop.f32.mrf.mxu0
  %v186 = vadd.f32 0.0, %v185
  %187 = vmatmul.f32.gmra.mxu0 %v112
  %v188 = vpop.f32.mrf.mxu0
  %v189 = vadd.f32 0.0, %v188
  %190 = vmatmul.f32.gmra.mxu0 %v115
  %v191 = vpop.f32.mrf.mxu0
  %v192 = vadd.f32 0.0, %v191
  %193 = vmatmul.f32.gmra.mxu0 %v118
  %v194 = vpop.f32.mrf.mxu0
  %v195 = vadd.f32 0.0, %v194
  %196 = vmatmul.f32.gmra.mxu0 %v121
  %v197 = vpop.f32.mrf.mxu0
  %v198 = vadd.f32 0.0, %v197
  %199 = vmatmul.f32.gmra.mxu0 %v124
  %v200 = vpop.f32.mrf.mxu0
  %v201 = vadd.f32 0.0, %v200
  %202 = vmatmul.f32.gmra.mxu0 %v127
  %v203 = vpop.f32.mrf.mxu0
  %v204 = vadd.f32 0.0, %v203
  %205 = vmatmul.f32.gmra.mxu0 %v130
  %v206 = vpop.f32.mrf.mxu0
  %v207 = vadd.f32 0.0, %v206
  %208 = vdwg.mxu0
  %v209 = vmax.f32 %v150, %v165
  %v210 = vmax.f32 %v153, %v168
  %v211 = vmax.f32 %v156, %v171
  %v212 = vmax.f32 %v159, %v174
  %v213 = vmax.f32 %v162, %v177
  %v214 = vmax.f32 %v180, %v195
  %v215 = vmax.f32 %v183, %v198
  %v216 = vmax.f32 %v186, %v201
  %v217 = vmax.f32 %v189, %v204
  %v218 = vmax.f32 %v192, %v207
  %v219 = vmax.f32 %v209, %v214
  %v220 = vmax.f32 %v210, %v215
  %v221 = vmax.f32 %v211, %v216
  %v222 = vmax.f32 %v212, %v217
  %v223 = vmax.f32 %v213, %v218
  %v224 = vld [vmem:[%s2] sm:$0xff]
  %v225 = vld [vmem:[%s2 + $0x8] sm:$0xff]
  %v226 = vld [vmem:[%s2 + $0x10] sm:$0xff]
  %v227 = vld [vmem:[%s2 + $0x18] sm:$0xff]
  %v228 = vld [vmem:[%s2 + $0x20] sm:$0xff]
  %230 = vset.pattern.permute.xlu0 0
  %231 = vperm.xlu0 %230, %v224
  %v232 = vpop.permute.xlu0 %231
  %235 = vset.pattern.permute.xlu0 0
  %236 = vperm.xlu0 %235, %v225
  %v237 = vpop.permute.xlu0 %236
  %240 = vset.pattern.permute.xlu0 0
  %241 = vperm.xlu0 %240, %v226
  %v242 = vpop.permute.xlu0 %241
  %245 = vset.pattern.permute.xlu0 0
  %246 = vperm.xlu0 %245, %v227
  %v247 = vpop.permute.xlu0 %246
  %250 = vset.pattern.permute.xlu0 0
  %251 = vperm.xlu0 %250, %v228
  %v252 = vpop.permute.xlu0 %251
  %v254 = vadd.f32 %v219, %v232
  %v255 = vadd.f32 %v220, %v237
  %v256 = vadd.f32 %v221, %v242
  %v257 = vadd.f32 %v222, %v247
  %v258 = vadd.f32 %v223, %v252
  %v259 = vmax.f32 %v254, 0.0
  %v260 = vmax.f32 %v255, 0.0
  %v261 = vmax.f32 %v256, 0.0
  %v262 = vmax.f32 %v257, 0.0
  %v263 = vmax.f32 %v258, 0.0
  %v264 = vld [vmem:[%s3] sm:$0xff]
  %v265 = vld [vmem:[%s3 + $0x8] sm:$0xff]
  %v266 = vld [vmem:[%s3 + $0x10] sm:$0xff]
  %v267 = vld [vmem:[%s3 + $0x18] sm:$0xff]
  %v268 = vld [vmem:[%s3 + $0x20] sm:$0xff]
  %v269 = vld [vmem:[%s3 + $0x28] sm:$0xff]
  %v270 = vld [vmem:[%s3 + $0x30] sm:$0xff]
  %v271 = vld [vmem:[%s3 + $0x38] sm:$0xff]
  %v272 = vld [vmem:[%s3 + $0x40] sm:$0xff]
  %v273 = vld [vmem:[%s3 + $0x48] sm:$0xff]
  %s274 = scalar_lea.vmem %s3, 80
  %v275 = vld [vmem:[%s274] sm:$0xff]
  %v276 = vld [vmem:[%s274 + $0x8] sm:$0xff]
  %v277 = vld [vmem:[%s274 + $0x10] sm:$0xff]
  %v278 = vld [vmem:[%s274 + $0x18] sm:$0xff]
  %v279 = vld [vmem:[%s274 + $0x20] sm:$0xff]
  %v280 = vld [vmem:[%s274 + $0x28] sm:$0xff]
  %v281 = vld [vmem:[%s274 + $0x30] sm:$0xff]
  %v282 = vld [vmem:[%s274 + $0x38] sm:$0xff]
  %v283 = vld [vmem:[%s274 + $0x40] sm:$0xff]
  %v284 = vld [vmem:[%s274 + $0x48] sm:$0xff]
  %290 = vrot.lane.b32.xlu0 %v259, 127
  %v291 = vpop.permute.xlu0 %290
  %292 = vrot.lane.b32.xlu0 %v260, 127
  %v293 = vpop.permute.xlu0 %292
  %294 = vrot.lane.b32.xlu0 %v261, 127
  %v295 = vpop.permute.xlu0 %294
  %296 = vrot.lane.b32.xlu0 %v262, 127
  %v297 = vpop.permute.xlu0 %296
  %298 = vrot.lane.b32.xlu0 %v263, 127
  %v299 = vpop.permute.xlu0 %298
  %vm305 = vcmask 326656
  %v307 = vsel %vm305, %v275, 0
  %v310 = vsel %vm305, %v276, 0
  %v313 = vsel %vm305, %v277, 0
  %v316 = vsel %vm305, %v278, 0
  %v319 = vsel %vm305, %v279, 0
  %v322 = vsel %vm305, %v280, 0
  %v325 = vsel %vm305, %v281, 0
  %v328 = vsel %vm305, %v282, 0
  %v331 = vsel %vm305, %v283, 0
  %v334 = vsel %vm305, %v284, 0
  %336 = vmatpush.msra.mxu0 0.0
  %337 = vmatpush.msra.mxu0 0.0
  %338 = vmatpush.msra.mxu0 0.0
  %339 = vmatpush.msra.mxu0 0.0
  %340 = vmatpush.msra.mxu0 0.0
  %341 = vmatpush.msra.mxu0 0.0
  %342 = vmatpush.msra.mxu0 0.0
  %343 = vmatpush.msra.mxu0 0.0
  %344 = vmatpush.msra.mxu0 0.0
  %345 = vmatpush.msra.mxu0 0.0
  %346 = vmatpush.msra.mxu0 0.0
  %347 = vmatpush.msra.mxu0 %v299
  %348 = vmatpush.msra.mxu0 %v297
  %349 = vmatpush.msra.mxu0 %v295
  %350 = vmatpush.msra.mxu0 %v293
  %351 = vmatpush.msra.mxu0 %v291
  %352 = vmatmul.f32.gmra.mxu0 %v307
  %v353 = vpop.f32.mrf.mxu0
  %v354 = vadd.f32 0.0, %v353
  %355 = vmatmul.f32.gmra.mxu0 %v310
  %v356 = vpop.f32.mrf.mxu0
  %v357 = vadd.f32 0.0, %v356
  %358 = vmatmul.f32.gmra.mxu0 %v313
  %v359 = vpop.f32.mrf.mxu0
  %v360 = vadd.f32 0.0, %v359
  %361 = vmatmul.f32.gmra.mxu0 %v316
  %v362 = vpop.f32.mrf.mxu0
  %v363 = vadd.f32 0.0, %v362
  %364 = vmatmul.f32.gmra.mxu0 %v319
  %v365 = vpop.f32.mrf.mxu0
  %v366 = vadd.f32 0.0, %v365
  %367 = vmatmul.f32.gmra.mxu0 %v322
  %v368 = vpop.f32.mrf.mxu0
  %v369 = vadd.f32 0.0, %v368
  %370 = vmatmul.f32.gmra.mxu0 %v325
  %v371 = vpop.f32.mrf.mxu0
  %v372 = vadd.f32 0.0, %v371
  %373 = vmatmul.f32.gmra.mxu0 %v328
  %v374 = vpop.f32.mrf.mxu0
  %v375 = vadd.f32 0.0, %v374
  %376 = vmatmul.f32.gmra.mxu0 %v331
  %v377 = vpop.f32.mrf.mxu0
  %v378 = vadd.f32 0.0, %v377
  %379 = vmatmul.f32.gmra.mxu0 %v334
  %v380 = vpop.f32.mrf.mxu0
  %v381 = vadd.f32 0.0, %v380
  %382 = vdwg.mxu0
  %v384 = vsel %vm305, %v264, 0
  %v387 = vsel %vm305, %v265, 0
  %v390 = vsel %vm305, %v266, 0
  %v393 = vsel %vm305, %v267, 0
  %v396 = vsel %vm305, %v268, 0
  %v399 = vsel %vm305, %v269, 0
  %v402 = vsel %vm305, %v270, 0
  %v405 = vsel %vm305, %v271, 0
  %v408 = vsel %vm305, %v272, 0
  %v411 = vsel %vm305, %v273, 0
  %413 = vmatpush.msra.mxu0 0.0
  %414 = vmatpush.msra.mxu0 0.0
  %415 = vmatpush.msra.mxu0 0.0
  %416 = vmatpush.msra.mxu0 0.0
  %417 = vmatpush.msra.mxu0 0.0
  %418 = vmatpush.msra.mxu0 0.0
  %419 = vmatpush.msra.mxu0 0.0
  %420 = vmatpush.msra.mxu0 0.0
  %421 = vmatpush.msra.mxu0 0.0
  %422 = vmatpush.msra.mxu0 0.0
  %423 = vmatpush.msra.mxu0 0.0
  %424 = vmatpush.msra.mxu0 %v263
  %425 = vmatpush.msra.mxu0 %v262
  %426 = vmatpush.msra.mxu0 %v261
  %427 = vmatpush.msra.mxu0 %v260
  %428 = vmatpush.msra.mxu0 %v259
  %429 = vmatmul.f32.gmra.mxu0 %v384
  %v430 = vpop.f32.mrf.mxu0
  %v431 = vadd.f32 %v354, %v430
  %432 = vmatmul.f32.gmra.mxu0 %v387
  %v433 = vpop.f32.mrf.mxu0
  %v434 = vadd.f32 %v357, %v433
  %435 = vmatmul.f32.gmra.mxu0 %v390
  %v436 = vpop.f32.mrf.mxu0
  %v437 = vadd.f32 %v360, %v436
  %438 = vmatmul.f32.gmra.mxu0 %v393
  %v439 = vpop.f32.mrf.mxu0
  %v440 = vadd.f32 %v363, %v439
  %441 = vmatmul.f32.gmra.mxu0 %v396
  %v442 = vpop.f32.mrf.mxu0
  %v443 = vadd.f32 %v366, %v442
  %444 = vmatmul.f32.gmra.mxu0 %v399
  %v445 = vpop.f32.mrf.mxu0
  %v446 = vadd.f32 %v369, %v445
  %447 = vmatmul.f32.gmra.mxu0 %v402
  %v448 = vpop.f32.mrf.mxu0
  %v449 = vadd.f32 %v372, %v448
  %450 = vmatmul.f32.gmra.mxu0 %v405
  %v451 = vpop.f32.mrf.mxu0
  %v452 = vadd.f32 %v375, %v451
  %453 = vmatmul.f32.gmra.mxu0 %v408
  %v454 = vpop.f32.mrf.mxu0
  %v455 = vadd.f32 %v378, %v454
  %456 = vmatmul.f32.gmra.mxu0 %v411
  %v457 = vpop.f32.mrf.mxu0
  %v458 = vadd.f32 %v381, %v457
  %459 = vdwg.mxu0
  %s460 = scalar_lea.vmem %s3, 160
  %v461 = vld [vmem:[%s460] sm:$0xff]
  %v462 = vld [vmem:[%s460 + $0x8] sm:$0xff]
  %v463 = vld [vmem:[%s460 + $0x10] sm:$0xff]
  %v464 = vld [vmem:[%s460 + $0x18] sm:$0xff]
  %v465 = vld [vmem:[%s460 + $0x20] sm:$0xff]
  %v466 = vld [vmem:[%s460 + $0x28] sm:$0xff]
  %v467 = vld [vmem:[%s460 + $0x30] sm:$0xff]
  %v468 = vld [vmem:[%s460 + $0x38] sm:$0xff]
  %v469 = vld [vmem:[%s460 + $0x40] sm:$0xff]
  %v470 = vld [vmem:[%s460 + $0x48] sm:$0xff]
  %471 = vrot.lane.b32.xlu0 %v259, 126
  %v472 = vpop.permute.xlu0 %471
  %473 = vrot.lane.b32.xlu0 %v260, 126
  %v474 = vpop.permute.xlu0 %473
  %475 = vrot.lane.b32.xlu0 %v261, 126
  %v476 = vpop.permute.xlu0 %475
  %477 = vrot.lane.b32.xlu0 %v262, 126
  %v478 = vpop.permute.xlu0 %477
  %479 = vrot.lane.b32.xlu0 %v263, 126
  %v480 = vpop.permute.xlu0 %479
  %v487 = vsel %vm305, %v461, 0
  %v490 = vsel %vm305, %v462, 0
  %v493 = vsel %vm305, %v463, 0
  %v496 = vsel %vm305, %v464, 0
  %v499 = vsel %vm305, %v465, 0
  %v502 = vsel %vm305, %v466, 0
  %v505 = vsel %vm305, %v467, 0
  %v508 = vsel %vm305, %v468, 0
  %v511 = vsel %vm305, %v469, 0
  %v514 = vsel %vm305, %v470, 0
  %516 = vmatpush.msra.mxu0 0.0
  %517 = vmatpush.msra.mxu0 0.0
  %518 = vmatpush.msra.mxu0 0.0
  %519 = vmatpush.msra.mxu0 0.0
  %520 = vmatpush.msra.mxu0 0.0
  %521 = vmatpush.msra.mxu0 0.0
  %522 = vmatpush.msra.mxu0 0.0
  %523 = vmatpush.msra.mxu0 0.0
  %524 = vmatpush.msra.mxu0 0.0
  %525 = vmatpush.msra.mxu0 0.0
  %526 = vmatpush.msra.mxu0 0.0
  %527 = vmatpush.msra.mxu0 %v480
  %528 = vmatpush.msra.mxu0 %v478
  %529 = vmatpush.msra.mxu0 %v476
  %530 = vmatpush.msra.mxu0 %v474
  %531 = vmatpush.msra.mxu0 %v472
  %532 = vmatmul.f32.gmra.mxu0 %v487
  %v533 = vpop.f32.mrf.mxu0
  %v534 = vadd.f32 0.0, %v533
  %535 = vmatmul.f32.gmra.mxu0 %v490
  %v536 = vpop.f32.mrf.mxu0
  %v537 = vadd.f32 0.0, %v536
  %538 = vmatmul.f32.gmra.mxu0 %v493
  %v539 = vpop.f32.mrf.mxu0
  %v540 = vadd.f32 0.0, %v539
  %541 = vmatmul.f32.gmra.mxu0 %v496
  %v542 = vpop.f32.mrf.mxu0
  %v543 = vadd.f32 0.0, %v542
  %544 = vmatmul.f32.gmra.mxu0 %v499
  %v545 = vpop.f32.mrf.mxu0
  %v546 = vadd.f32 0.0, %v545
  %547 = vmatmul.f32.gmra.mxu0 %v502
  %v548 = vpop.f32.mrf.mxu0
  %v549 = vadd.f32 0.0, %v548
  %550 = vmatmul.f32.gmra.mxu0 %v505
  %v551 = vpop.f32.mrf.mxu0
  %v552 = vadd.f32 0.0, %v551
  %553 = vmatmul.f32.gmra.mxu0 %v508
  %v554 = vpop.f32.mrf.mxu0
  %v555 = vadd.f32 0.0, %v554
  %556 = vmatmul.f32.gmra.mxu0 %v511
  %v557 = vpop.f32.mrf.mxu0
  %v558 = vadd.f32 0.0, %v557
  %559 = vmatmul.f32.gmra.mxu0 %v514
  %v560 = vpop.f32.mrf.mxu0
  %v561 = vadd.f32 0.0, %v560
  %562 = vdwg.mxu0
  %v563 = vadd.f32 %v431, %v534
  %v564 = vadd.f32 %v434, %v537
  %v565 = vadd.f32 %v437, %v540
  %v566 = vadd.f32 %v440, %v543
  %v567 = vadd.f32 %v443, %v546
  %v568 = vadd.f32 %v446, %v549
  %v569 = vadd.f32 %v449, %v552
  %v570 = vadd.f32 %v452, %v555
  %v571 = vadd.f32 %v455, %v558
  %v572 = vadd.f32 %v458, %v561
  %s573 = scalar_lea.vmem %s3, 240
  %v574 = vld [vmem:[%s573] sm:$0xff]
  %v575 = vld [vmem:[%s573 + $0x8] sm:$0xff]
  %v576 = vld [vmem:[%s573 + $0x10] sm:$0xff]
  %v577 = vld [vmem:[%s573 + $0x18] sm:$0xff]
  %v578 = vld [vmem:[%s573 + $0x20] sm:$0xff]
  %v579 = vld [vmem:[%s573 + $0x28] sm:$0xff]
  %v580 = vld [vmem:[%s573 + $0x30] sm:$0xff]
  %v581 = vld [vmem:[%s573 + $0x38] sm:$0xff]
  %v582 = vld [vmem:[%s573 + $0x40] sm:$0xff]
  %v583 = vld [vmem:[%s573 + $0x48] sm:$0xff]
  %584 = vrot.lane.b32.xlu0 %v259, 121
  %v585 = vpop.permute.xlu0 %584
  %586 = vrot.lane.b32.xlu0 %v260, 121
  %v587 = vpop.permute.xlu0 %586
  %588 = vrot.lane.b32.xlu0 %v261, 121
  %v589 = vpop.permute.xlu0 %588
  %590 = vrot.lane.b32.xlu0 %v262, 121
  %v591 = vpop.permute.xlu0 %590
  %592 = vrot.lane.b32.xlu0 %v263, 121
  %v593 = vpop.permute.xlu0 %592
  %v600 = vsel %vm305, %v574, 0
  %v603 = vsel %vm305, %v575, 0
  %v606 = vsel %vm305, %v576, 0
  %v609 = vsel %vm305, %v577, 0
  %v612 = vsel %vm305, %v578, 0
  %v615 = vsel %vm305, %v579, 0
  %v618 = vsel %vm305, %v580, 0
  %v621 = vsel %vm305, %v581, 0
  %v624 = vsel %vm305, %v582, 0
  %v627 = vsel %vm305, %v583, 0
  %629 = vmatpush.msra.mxu0 0.0
  %630 = vmatpush.msra.mxu0 0.0
  %631 = vmatpush.msra.mxu0 0.0
  %632 = vmatpush.msra.mxu0 0.0
  %633 = vmatpush.msra.mxu0 0.0
  %634 = vmatpush.msra.mxu0 0.0
  %635 = vmatpush.msra.mxu0 0.0
  %636 = vmatpush.msra.mxu0 0.0
  %637 = vmatpush.msra.mxu0 0.0
  %638 = vmatpush.msra.mxu0 0.0
  %639 = vmatpush.msra.mxu0 0.0
  %640 = vmatpush.msra.mxu0 %v593
  %641 = vmatpush.msra.mxu0 %v591
  %642 = vmatpush.msra.mxu0 %v589
  %643 = vmatpush.msra.mxu0 %v587
  %644 = vmatpush.msra.mxu0 %v585
  %645 = vmatmul.f32.gmra.mxu0 %v600
  %v646 = vpop.f32.mrf.mxu0
  %v647 = vadd.f32 0.0, %v646
  %648 = vmatmul.f32.gmra.mxu0 %v603
  %v649 = vpop.f32.mrf.mxu0
  %v650 = vadd.f32 0.0, %v649
  %651 = vmatmul.f32.gmra.mxu0 %v606
  %v652 = vpop.f32.mrf.mxu0
  %v653 = vadd.f32 0.0, %v652
  %654 = vmatmul.f32.gmra.mxu0 %v609
  %v655 = vpop.f32.mrf.mxu0
  %v656 = vadd.f32 0.0, %v655
  %657 = vmatmul.f32.gmra.mxu0 %v612
  %v658 = vpop.f32.mrf.mxu0
  %v659 = vadd.f32 0.0, %v658
  %660 = vmatmul.f32.gmra.mxu0 %v615
  %v661 = vpop.f32.mrf.mxu0
  %v662 = vadd.f32 0.0, %v661
  %663 = vmatmul.f32.gmra.mxu0 %v618
  %v664 = vpop.f32.mrf.mxu0
  %v665 = vadd.f32 0.0, %v664
  %666 = vmatmul.f32.gmra.mxu0 %v621
  %v667 = vpop.f32.mrf.mxu0
  %v668 = vadd.f32 0.0, %v667
  %669 = vmatmul.f32.gmra.mxu0 %v624
  %v670 = vpop.f32.mrf.mxu0
  %v671 = vadd.f32 0.0, %v670
  %672 = vmatmul.f32.gmra.mxu0 %v627
  %v673 = vpop.f32.mrf.mxu0
  %v674 = vadd.f32 0.0, %v673
  %675 = vdwg.mxu0
  %v676 = vadd.f32 %v563, %v647
  %v677 = vadd.f32 %v564, %v650
  %v678 = vadd.f32 %v565, %v653
  %v679 = vadd.f32 %v566, %v656
  %v680 = vadd.f32 %v567, %v659
  %v681 = vadd.f32 %v568, %v662
  %v682 = vadd.f32 %v569, %v665
  %v683 = vadd.f32 %v570, %v668
  %v684 = vadd.f32 %v571, %v671
  %v685 = vadd.f32 %v572, %v674
  %s686 = scalar_lea.vmem %s3, 320
  %v687 = vld [vmem:[%s686] sm:$0xff]
  %v688 = vld [vmem:[%s686 + $0x8] sm:$0xff]
  %v689 = vld [vmem:[%s686 + $0x10] sm:$0xff]
  %v690 = vld [vmem:[%s686 + $0x18] sm:$0xff]
  %v691 = vld [vmem:[%s686 + $0x20] sm:$0xff]
  %v692 = vld [vmem:[%s686 + $0x28] sm:$0xff]
  %v693 = vld [vmem:[%s686 + $0x30] sm:$0xff]
  %v694 = vld [vmem:[%s686 + $0x38] sm:$0xff]
  %v695 = vld [vmem:[%s686 + $0x40] sm:$0xff]
  %v696 = vld [vmem:[%s686 + $0x48] sm:$0xff]
  %697 = vrot.lane.b32.xlu0 %v259, 120
  %v698 = vpop.permute.xlu0 %697
  %699 = vrot.lane.b32.xlu0 %v260, 120
  %v700 = vpop.permute.xlu0 %699
  %701 = vrot.lane.b32.xlu0 %v261, 120
  %v702 = vpop.permute.xlu0 %701
  %703 = vrot.lane.b32.xlu0 %v262, 120
  %v704 = vpop.permute.xlu0 %703
  %705 = vrot.lane.b32.xlu0 %v263, 120
  %v706 = vpop.permute.xlu0 %705
  %v713 = vsel %vm305, %v687, 0
  %v716 = vsel %vm305, %v688, 0
  %v719 = vsel %vm305, %v689, 0
  %v722 = vsel %vm305, %v690, 0
  %v725 = vsel %vm305, %v691, 0
  %v728 = vsel %vm305, %v692, 0
  %v731 = vsel %vm305, %v693, 0
  %v734 = vsel %vm305, %v694, 0
  %v737 = vsel %vm305, %v695, 0
  %v740 = vsel %vm305, %v696, 0
  %742 = vmatpush.msra.mxu0 0.0
  %743 = vmatpush.msra.mxu0 0.0
  %744 = vmatpush.msra.mxu0 0.0
  %745 = vmatpush.msra.mxu0 0.0
  %746 = vmatpush.msra.mxu0 0.0
  %747 = vmatpush.msra.mxu0 0.0
  %748 = vmatpush.msra.mxu0 0.0
  %749 = vmatpush.msra.mxu0 0.0
  %750 = vmatpush.msra.mxu0 0.0
  %751 = vmatpush.msra.mxu0 0.0
  %752 = vmatpush.msra.mxu0 0.0
  %753 = vmatpush.msra.mxu0 %v706
  %754 = vmatpush.msra.mxu0 %v704
  %755 = vmatpush.msra.mxu0 %v702
  %756 = vmatpush.msra.mxu0 %v700
  %757 = vmatpush.msra.mxu0 %v698
  %758 = vmatmul.f32.gmra.mxu0 %v713
  %v759 = vpop.f32.mrf.mxu0
  %v760 = vadd.f32 0.0, %v759
  %761 = vmatmul.f32.gmra.mxu0 %v716
  %v762 = vpop.f32.mrf.mxu0
  %v763 = vadd.f32 0.0, %v762
  %764 = vmatmul.f32.gmra.mxu0 %v719
  %v765 = vpop.f32.mrf.mxu0
  %v766 = vadd.f32 0.0, %v765
  %767 = vmatmul.f32.gmra.mxu0 %v722
  %v768 = vpop.f32.mrf.mxu0
  %v769 = vadd.f32 0.0, %v768
  %770 = vmatmul.f32.gmra.mxu0 %v725
  %v771 = vpop.f32.mrf.mxu0
  %v772 = vadd.f32 0.0, %v771
  %773 = vmatmul.f32.gmra.mxu0 %v728
  %v774 = vpop.f32.mrf.mxu0
  %v775 = vadd.f32 0.0, %v774
  %776 = vmatmul.f32.gmra.mxu0 %v731
  %v777 = vpop.f32.mrf.mxu0
  %v778 = vadd.f32 0.0, %v777
  %779 = vmatmul.f32.gmra.mxu0 %v734
  %v780 = vpop.f32.mrf.mxu0
  %v781 = vadd.f32 0.0, %v780
  %782 = vmatmul.f32.gmra.mxu0 %v737
  %v783 = vpop.f32.mrf.mxu0
  %v784 = vadd.f32 0.0, %v783
  %785 = vmatmul.f32.gmra.mxu0 %v740
  %v786 = vpop.f32.mrf.mxu0
  %v787 = vadd.f32 0.0, %v786
  %788 = vdwg.mxu0
  %v789 = vadd.f32 %v676, %v760
  %v790 = vadd.f32 %v677, %v763
  %v791 = vadd.f32 %v678, %v766
  %v792 = vadd.f32 %v679, %v769
  %v793 = vadd.f32 %v680, %v772
  %v794 = vadd.f32 %v681, %v775
  %v795 = vadd.f32 %v682, %v778
  %v796 = vadd.f32 %v683, %v781
  %v797 = vadd.f32 %v684, %v784
  %v798 = vadd.f32 %v685, %v787
  %s799 = scalar_lea.vmem %s3, 400
  %v800 = vld [vmem:[%s799] sm:$0xff]
  %v801 = vld [vmem:[%s799 + $0x8] sm:$0xff]
  %v802 = vld [vmem:[%s799 + $0x10] sm:$0xff]
  %v803 = vld [vmem:[%s799 + $0x18] sm:$0xff]
  %v804 = vld [vmem:[%s799 + $0x20] sm:$0xff]
  %v805 = vld [vmem:[%s799 + $0x28] sm:$0xff]
  %v806 = vld [vmem:[%s799 + $0x30] sm:$0xff]
  %v807 = vld [vmem:[%s799 + $0x38] sm:$0xff]
  %v808 = vld [vmem:[%s799 + $0x40] sm:$0xff]
  %v809 = vld [vmem:[%s799 + $0x48] sm:$0xff]
  %810 = vrot.lane.b32.xlu0 %v259, 119
  %v811 = vpop.permute.xlu0 %810
  %812 = vrot.lane.b32.xlu0 %v260, 119
  %v813 = vpop.permute.xlu0 %812
  %814 = vrot.lane.b32.xlu0 %v261, 119
  %v815 = vpop.permute.xlu0 %814
  %816 = vrot.lane.b32.xlu0 %v262, 119
  %v817 = vpop.permute.xlu0 %816
  %818 = vrot.lane.b32.xlu0 %v263, 119
  %v819 = vpop.permute.xlu0 %818
  %v826 = vsel %vm305, %v800, 0
  %v829 = vsel %vm305, %v801, 0
  %v832 = vsel %vm305, %v802, 0
  %v835 = vsel %vm305, %v803, 0
  %v838 = vsel %vm305, %v804, 0
  %v841 = vsel %vm305, %v805, 0
  %v844 = vsel %vm305, %v806, 0
  %v847 = vsel %vm305, %v807, 0
  %v850 = vsel %vm305, %v808, 0
  %v853 = vsel %vm305, %v809, 0
  %855 = vmatpush.msra.mxu0 0.0
  %856 = vmatpush.msra.mxu0 0.0
  %857 = vmatpush.msra.mxu0 0.0
  %858 = vmatpush.msra.mxu0 0.0
  %859 = vmatpush.msra.mxu0 0.0
  %860 = vmatpush.msra.mxu0 0.0
  %861 = vmatpush.msra.mxu0 0.0
  %862 = vmatpush.msra.mxu0 0.0
  %863 = vmatpush.msra.mxu0 0.0
  %864 = vmatpush.msra.mxu0 0.0
  %865 = vmatpush.msra.mxu0 0.0
  %866 = vmatpush.msra.mxu0 %v819
  %867 = vmatpush.msra.mxu0 %v817
  %868 = vmatpush.msra.mxu0 %v815
  %869 = vmatpush.msra.mxu0 %v813
  %870 = vmatpush.msra.mxu0 %v811
  %871 = vmatmul.f32.gmra.mxu0 %v826
  %v872 = vpop.f32.mrf.mxu0
  %v873 = vadd.f32 0.0, %v872
  %874 = vmatmul.f32.gmra.mxu0 %v829
  %v875 = vpop.f32.mrf.mxu0
  %v876 = vadd.f32 0.0, %v875
  %877 = vmatmul.f32.gmra.mxu0 %v832
  %v878 = vpop.f32.mrf.mxu0
  %v879 = vadd.f32 0.0, %v878
  %880 = vmatmul.f32.gmra.mxu0 %v835
  %v881 = vpop.f32.mrf.mxu0
  %v882 = vadd.f32 0.0, %v881
  %883 = vmatmul.f32.gmra.mxu0 %v838
  %v884 = vpop.f32.mrf.mxu0
  %v885 = vadd.f32 0.0, %v884
  %886 = vmatmul.f32.gmra.mxu0 %v841
  %v887 = vpop.f32.mrf.mxu0
  %v888 = vadd.f32 0.0, %v887
  %889 = vmatmul.f32.gmra.mxu0 %v844
  %v890 = vpop.f32.mrf.mxu0
  %v891 = vadd.f32 0.0, %v890
  %892 = vmatmul.f32.gmra.mxu0 %v847
  %v893 = vpop.f32.mrf.mxu0
  %v894 = vadd.f32 0.0, %v893
  %895 = vmatmul.f32.gmra.mxu0 %v850
  %v896 = vpop.f32.mrf.mxu0
  %v897 = vadd.f32 0.0, %v896
  %898 = vmatmul.f32.gmra.mxu0 %v853
  %v899 = vpop.f32.mrf.mxu0
  %v900 = vadd.f32 0.0, %v899
  %901 = vdwg.mxu0
  %v902 = vadd.f32 %v789, %v873
  %v903 = vadd.f32 %v790, %v876
  %v904 = vadd.f32 %v791, %v879
  %v905 = vadd.f32 %v792, %v882
  %v906 = vadd.f32 %v793, %v885
  %v907 = vadd.f32 %v794, %v888
  %v908 = vadd.f32 %v795, %v891
  %v909 = vadd.f32 %v796, %v894
  %v910 = vadd.f32 %v797, %v897
  %v911 = vadd.f32 %v798, %v900
  %s912 = scalar_lea.vmem %s3, 480
  %v913 = vld [vmem:[%s912] sm:$0xff]
  %v914 = vld [vmem:[%s912 + $0x8] sm:$0xff]
  %v915 = vld [vmem:[%s912 + $0x10] sm:$0xff]
  %v916 = vld [vmem:[%s912 + $0x18] sm:$0xff]
  %v917 = vld [vmem:[%s912 + $0x20] sm:$0xff]
  %v918 = vld [vmem:[%s912 + $0x28] sm:$0xff]
  %v919 = vld [vmem:[%s912 + $0x30] sm:$0xff]
  %v920 = vld [vmem:[%s912 + $0x38] sm:$0xff]
  %v921 = vld [vmem:[%s912 + $0x40] sm:$0xff]
  %v922 = vld [vmem:[%s912 + $0x48] sm:$0xff]
  %923 = vrot.lane.b32.xlu0 %v259, 114
  %v924 = vpop.permute.xlu0 %923
  %925 = vrot.lane.b32.xlu0 %v260, 114
  %v926 = vpop.permute.xlu0 %925
  %927 = vrot.lane.b32.xlu0 %v261, 114
  %v928 = vpop.permute.xlu0 %927
  %929 = vrot.lane.b32.xlu0 %v262, 114
  %v930 = vpop.permute.xlu0 %929
  %931 = vrot.lane.b32.xlu0 %v263, 114
  %v932 = vpop.permute.xlu0 %931
  %v939 = vsel %vm305, %v913, 0
  %v942 = vsel %vm305, %v914, 0
  %v945 = vsel %vm305, %v915, 0
  %v948 = vsel %vm305, %v916, 0
  %v951 = vsel %vm305, %v917, 0
  %v954 = vsel %vm305, %v918, 0
  %v957 = vsel %vm305, %v919, 0
  %v960 = vsel %vm305, %v920, 0
  %v963 = vsel %vm305, %v921, 0
  %v966 = vsel %vm305, %v922, 0
  %968 = vmatpush.msra.mxu0 0.0
  %969 = vmatpush.msra.mxu0 0.0
  %970 = vmatpush.msra.mxu0 0.0
  %971 = vmatpush.msra.mxu0 0.0
  %972 = vmatpush.msra.mxu0 0.0
  %973 = vmatpush.msra.mxu0 0.0
  %974 = vmatpush.msra.mxu0 0.0
  %975 = vmatpush.msra.mxu0 0.0
  %976 = vmatpush.msra.mxu0 0.0
  %977 = vmatpush.msra.mxu0 0.0
  %978 = vmatpush.msra.mxu0 0.0
  %979 = vmatpush.msra.mxu0 %v932
  %980 = vmatpush.msra.mxu0 %v930
  %981 = vmatpush.msra.mxu0 %v928
  %982 = vmatpush.msra.mxu0 %v926
  %983 = vmatpush.msra.mxu0 %v924
  %984 = vmatmul.f32.gmra.mxu0 %v939
  %v985 = vpop.f32.mrf.mxu0
  %v986 = vadd.f32 0.0, %v985
  %987 = vmatmul.f32.gmra.mxu0 %v942
  %v988 = vpop.f32.mrf.mxu0
  %v989 = vadd.f32 0.0, %v988
  %990 = vmatmul.f32.gmra.mxu0 %v945
  %v991 = vpop.f32.mrf.mxu0
  %v992 = vadd.f32 0.0, %v991
  %993 = vmatmul.f32.gmra.mxu0 %v948
  %v994 = vpop.f32.mrf.mxu0
  %v995 = vadd.f32 0.0, %v994
  %996 = vmatmul.f32.gmra.mxu0 %v951
  %v997 = vpop.f32.mrf.mxu0
  %v998 = vadd.f32 0.0, %v997
  %999 = vmatmul.f32.gmra.mxu0 %v954
  %v1000 = vpop.f32.mrf.mxu0
  %v1001 = vadd.f32 0.0, %v1000
  %1002 = vmatmul.f32.gmra.mxu0 %v957
  %v1003 = vpop.f32.mrf.mxu0
  %v1004 = vadd.f32 0.0, %v1003
  %1005 = vmatmul.f32.gmra.mxu0 %v960
  %v1006 = vpop.f32.mrf.mxu0
  %v1007 = vadd.f32 0.0, %v1006
  %1008 = vmatmul.f32.gmra.mxu0 %v963
  %v1009 = vpop.f32.mrf.mxu0
  %v1010 = vadd.f32 0.0, %v1009
  %1011 = vmatmul.f32.gmra.mxu0 %v966
  %v1012 = vpop.f32.mrf.mxu0
  %v1013 = vadd.f32 0.0, %v1012
  %1014 = vdwg.mxu0
  %v1015 = vadd.f32 %v902, %v986
  %v1016 = vadd.f32 %v903, %v989
  %v1017 = vadd.f32 %v904, %v992
  %v1018 = vadd.f32 %v905, %v995
  %v1019 = vadd.f32 %v906, %v998
  %v1020 = vadd.f32 %v907, %v1001
  %v1021 = vadd.f32 %v908, %v1004
  %v1022 = vadd.f32 %v909, %v1007
  %v1023 = vadd.f32 %v910, %v1010
  %v1024 = vadd.f32 %v911, %v1013
  %s1025 = scalar_lea.vmem %s3, 560
  %v1026 = vld [vmem:[%s1025] sm:$0xff]
  %v1027 = vld [vmem:[%s1025 + $0x8] sm:$0xff]
  %v1028 = vld [vmem:[%s1025 + $0x10] sm:$0xff]
  %v1029 = vld [vmem:[%s1025 + $0x18] sm:$0xff]
  %v1030 = vld [vmem:[%s1025 + $0x20] sm:$0xff]
  %v1031 = vld [vmem:[%s1025 + $0x28] sm:$0xff]
  %v1032 = vld [vmem:[%s1025 + $0x30] sm:$0xff]
  %v1033 = vld [vmem:[%s1025 + $0x38] sm:$0xff]
  %v1034 = vld [vmem:[%s1025 + $0x40] sm:$0xff]
  %v1035 = vld [vmem:[%s1025 + $0x48] sm:$0xff]
  %1036 = vrot.lane.b32.xlu0 %v259, 113
  %v1037 = vpop.permute.xlu0 %1036
  %1038 = vrot.lane.b32.xlu0 %v260, 113
  %v1039 = vpop.permute.xlu0 %1038
  %1040 = vrot.lane.b32.xlu0 %v261, 113
  %v1041 = vpop.permute.xlu0 %1040
  %1042 = vrot.lane.b32.xlu0 %v262, 113
  %v1043 = vpop.permute.xlu0 %1042
  %1044 = vrot.lane.b32.xlu0 %v263, 113
  %v1045 = vpop.permute.xlu0 %1044
  %v1052 = vsel %vm305, %v1026, 0
  %v1055 = vsel %vm305, %v1027, 0
  %v1058 = vsel %vm305, %v1028, 0
  %v1061 = vsel %vm305, %v1029, 0
  %v1064 = vsel %vm305, %v1030, 0
  %v1067 = vsel %vm305, %v1031, 0
  %v1070 = vsel %vm305, %v1032, 0
  %v1073 = vsel %vm305, %v1033, 0
  %v1076 = vsel %vm305, %v1034, 0
  %v1079 = vsel %vm305, %v1035, 0
  %1081 = vmatpush.msra.mxu0 0.0
  %1082 = vmatpush.msra.mxu0 0.0
  %1083 = vmatpush.msra.mxu0 0.0
  %1084 = vmatpush.msra.mxu0 0.0
  %1085 = vmatpush.msra.mxu0 0.0
  %1086 = vmatpush.msra.mxu0 0.0
  %1087 = vmatpush.msra.mxu0 0.0
  %1088 = vmatpush.msra.mxu0 0.0
  %1089 = vmatpush.msra.mxu0 0.0
  %1090 = vmatpush.msra.mxu0 0.0
  %1091 = vmatpush.msra.mxu0 0.0
  %1092 = vmatpush.msra.mxu0 %v1045
  %1093 = vmatpush.msra.mxu0 %v1043
  %1094 = vmatpush.msra.mxu0 %v1041
  %1095 = vmatpush.msra.mxu0 %v1039
  %1096 = vmatpush.msra.mxu0 %v1037
  %1097 = vmatmul.f32.gmra.mxu0 %v1052
  %v1098 = vpop.f32.mrf.mxu0
  %v1099 = vadd.f32 0.0, %v1098
  %1100 = vmatmul.f32.gmra.mxu0 %v1055
  %v1101 = vpop.f32.mrf.mxu0
  %v1102 = vadd.f32 0.0, %v1101
  %1103 = vmatmul.f32.gmra.mxu0 %v1058
  %v1104 = vpop.f32.mrf.mxu0
  %v1105 = vadd.f32 0.0, %v1104
  %1106 = vmatmul.f32.gmra.mxu0 %v1061
  %v1107 = vpop.f32.mrf.mxu0
  %v1108 = vadd.f32 0.0, %v1107
  %1109 = vmatmul.f32.gmra.mxu0 %v1064
  %v1110 = vpop.f32.mrf.mxu0
  %v1111 = vadd.f32 0.0, %v1110
  %1112 = vmatmul.f32.gmra.mxu0 %v1067
  %v1113 = vpop.f32.mrf.mxu0
  %v1114 = vadd.f32 0.0, %v1113
  %1115 = vmatmul.f32.gmra.mxu0 %v1070
  %v1116 = vpop.f32.mrf.mxu0
  %v1117 = vadd.f32 0.0, %v1116
  %1118 = vmatmul.f32.gmra.mxu0 %v1073
  %v1119 = vpop.f32.mrf.mxu0
  %v1120 = vadd.f32 0.0, %v1119
  %1121 = vmatmul.f32.gmra.mxu0 %v1076
  %v1122 = vpop.f32.mrf.mxu0
  %v1123 = vadd.f32 0.0, %v1122
  %1124 = vmatmul.f32.gmra.mxu0 %v1079
  %v1125 = vpop.f32.mrf.mxu0
  %v1126 = vadd.f32 0.0, %v1125
  %1127 = vdwg.mxu0
  %v1128 = vadd.f32 %v1015, %v1099
  %v1129 = vadd.f32 %v1016, %v1102
  %v1130 = vadd.f32 %v1017, %v1105
  %v1131 = vadd.f32 %v1018, %v1108
  %v1132 = vadd.f32 %v1019, %v1111
  %v1133 = vadd.f32 %v1020, %v1114
  %v1134 = vadd.f32 %v1021, %v1117
  %v1135 = vadd.f32 %v1022, %v1120
  %v1136 = vadd.f32 %v1023, %v1123
  %v1137 = vadd.f32 %v1024, %v1126
  %s1138 = scalar_lea.vmem %s3, 640
  %v1139 = vld [vmem:[%s1138] sm:$0xff]
  %v1140 = vld [vmem:[%s1138 + $0x8] sm:$0xff]
  %v1141 = vld [vmem:[%s1138 + $0x10] sm:$0xff]
  %v1142 = vld [vmem:[%s1138 + $0x18] sm:$0xff]
  %v1143 = vld [vmem:[%s1138 + $0x20] sm:$0xff]
  %v1144 = vld [vmem:[%s1138 + $0x28] sm:$0xff]
  %v1145 = vld [vmem:[%s1138 + $0x30] sm:$0xff]
  %v1146 = vld [vmem:[%s1138 + $0x38] sm:$0xff]
  %v1147 = vld [vmem:[%s1138 + $0x40] sm:$0xff]
  %v1148 = vld [vmem:[%s1138 + $0x48] sm:$0xff]
  %1149 = vrot.lane.b32.xlu0 %v259, 112
  %v1150 = vpop.permute.xlu0 %1149
  %1151 = vrot.lane.b32.xlu0 %v260, 112
  %v1152 = vpop.permute.xlu0 %1151
  %1153 = vrot.lane.b32.xlu0 %v261, 112
  %v1154 = vpop.permute.xlu0 %1153
  %1155 = vrot.lane.b32.xlu0 %v262, 112
  %v1156 = vpop.permute.xlu0 %1155
  %1157 = vrot.lane.b32.xlu0 %v263, 112
  %v1158 = vpop.permute.xlu0 %1157
  %v1165 = vsel %vm305, %v1139, 0
  %v1168 = vsel %vm305, %v1140, 0
  %v1171 = vsel %vm305, %v1141, 0
  %v1174 = vsel %vm305, %v1142, 0
  %v1177 = vsel %vm305, %v1143, 0
  %v1180 = vsel %vm305, %v1144, 0
  %v1183 = vsel %vm305, %v1145, 0
  %v1186 = vsel %vm305, %v1146, 0
  %v1189 = vsel %vm305, %v1147, 0
  %v1192 = vsel %vm305, %v1148, 0
  %1194 = vmatpush.msra.mxu0 0.0
  %1195 = vmatpush.msra.mxu0 0.0
  %1196 = vmatpush.msra.mxu0 0.0
  %1197 = vmatpush.msra.mxu0 0.0
  %1198 = vmatpush.msra.mxu0 0.0
  %1199 = vmatpush.msra.mxu0 0.0
  %1200 = vmatpush.msra.mxu0 0.0
  %1201 = vmatpush.msra.mxu0 0.0
  %1202 = vmatpush.msra.mxu0 0.0
  %1203 = vmatpush.msra.mxu0 0.0
  %1204 = vmatpush.msra.mxu0 0.0
  %1205 = vmatpush.msra.mxu0 %v1158
  %1206 = vmatpush.msra.mxu0 %v1156
  %1207 = vmatpush.msra.mxu0 %v1154
  %1208 = vmatpush.msra.mxu0 %v1152
  %1209 = vmatpush.msra.mxu0 %v1150
  %1210 = vmatmul.f32.gmra.mxu0 %v1165
  %v1211 = vpop.f32.mrf.mxu0
  %v1212 = vadd.f32 0.0, %v1211
  %1213 = vmatmul.f32.gmra.mxu0 %v1168
  %v1214 = vpop.f32.mrf.mxu0
  %v1215 = vadd.f32 0.0, %v1214
  %1216 = vmatmul.f32.gmra.mxu0 %v1171
  %v1217 = vpop.f32.mrf.mxu0
  %v1218 = vadd.f32 0.0, %v1217
  %1219 = vmatmul.f32.gmra.mxu0 %v1174
  %v1220 = vpop.f32.mrf.mxu0
  %v1221 = vadd.f32 0.0, %v1220
  %1222 = vmatmul.f32.gmra.mxu0 %v1177
  %v1223 = vpop.f32.mrf.mxu0
  %v1224 = vadd.f32 0.0, %v1223
  %1225 = vmatmul.f32.gmra.mxu0 %v1180
  %v1226 = vpop.f32.mrf.mxu0
  %v1227 = vadd.f32 0.0, %v1226
  %1228 = vmatmul.f32.gmra.mxu0 %v1183
  %v1229 = vpop.f32.mrf.mxu0
  %v1230 = vadd.f32 0.0, %v1229
  %1231 = vmatmul.f32.gmra.mxu0 %v1186
  %v1232 = vpop.f32.mrf.mxu0
  %v1233 = vadd.f32 0.0, %v1232
  %1234 = vmatmul.f32.gmra.mxu0 %v1189
  %v1235 = vpop.f32.mrf.mxu0
  %v1236 = vadd.f32 0.0, %v1235
  %1237 = vmatmul.f32.gmra.mxu0 %v1192
  %v1238 = vpop.f32.mrf.mxu0
  %v1239 = vadd.f32 0.0, %v1238
  %1240 = vdwg.mxu0
  %v1241 = vadd.f32 %v1128, %v1212
  %v1242 = vadd.f32 %v1129, %v1215
  %v1243 = vadd.f32 %v1130, %v1218
  %v1244 = vadd.f32 %v1131, %v1221
  %v1245 = vadd.f32 %v1132, %v1224
  %v1246 = vadd.f32 %v1133, %v1227
  %v1247 = vadd.f32 %v1134, %v1230
  %v1248 = vadd.f32 %v1135, %v1233
  %v1249 = vadd.f32 %v1136, %v1236
  %v1250 = vadd.f32 %v1137, %v1239
  %vm1254 = vcmask 1043456
  %v1255 = vrot.slane %v1243, 4
  %v1256 = vrot.slane %v1244, 4
  %v1257 = vsel %vm1254, %v1255, %v1256
  %v1258 = vrot.slane %v1245, 4
  %v1259 = vsel %vm1254, %v1256, %v1258
  %v1263 = vmax.f32 %v1241, %v1257
  %v1264 = vmax.f32 %v1242, %v1259
  %v1265 = vmax.f32 %v1243, %v1258
  %v1269 = vrot.slane %v1248, 4
  %v1270 = vrot.slane %v1249, 4
  %v1271 = vsel %vm1254, %v1269, %v1270
  %v1272 = vrot.slane %v1250, 4
  %v1273 = vsel %vm1254, %v1270, %v1272
  %v1277 = vmax.f32 %v1246, %v1271
  %v1278 = vmax.f32 %v1247, %v1273
  %v1279 = vmax.f32 %v1248, %v1272
  %v1280 = vmax.f32 %v1263, %v1277
  %v1281 = vmax.f32 %v1264, %v1278
  %v1282 = vmax.f32 %v1265, %v1279
  %v1283 = vld [vmem:[%s4] sm:$0xff]
  %v1284 = vld [vmem:[%s4 + $0x8] sm:$0xff]
  %v1285 = vld [vmem:[%s4 + $0x10] sm:$0xf]
  %1287 = vset.pattern.permute.xlu0 0
  %1288 = vperm.xlu0 %1287, %v1283
  %v1289 = vpop.permute.xlu0 %1288
  %1292 = vset.pattern.permute.xlu0 0
  %1293 = vperm.xlu0 %1292, %v1284
  %v1294 = vpop.permute.xlu0 %1293
  %1297 = vset.pattern.permute.xlu0 0
  %1298 = vperm.xlu0 %1297, %v1285
  %v1299 = vpop.permute.xlu0 %1298
  %v1301 = vadd.f32 %v1280, %v1289
  %v1302 = vadd.f32 %v1281, %v1294
  %v1303 = vadd.f32 %v1282, %v1299
  %v1304 = vmax.f32 %v1301, 0.0
  %v1305 = vmax.f32 %v1302, 0.0
  %v1306 = vmax.f32 %v1303, 0.0
  %v1307 = vld [vmem:[%s5] sm:$0xff]
  %v1308 = vld [vmem:[%s5 + $0x8] sm:$0xff]
  %v1309 = vld [vmem:[%s5 + $0x10] sm:$0xf]
  %v1310 = vld [vmem:[%s5 + $0x18] sm:$0xff]
  %v1311 = vld [vmem:[%s5 + $0x20] sm:$0xff]
  %v1312 = vld [vmem:[%s5 + $0x28] sm:$0xf]
  %v1313 = vld [vmem:[%s5 + $0x30] sm:$0xff]
  %v1314 = vld [vmem:[%s5 + $0x38] sm:$0xff]
  %v1315 = vld [vmem:[%s5 + $0x40] sm:$0xf]
  %v1316 = vld [vmem:[%s5 + $0x48] sm:$0xff]
  %v1317 = vld [vmem:[%s5 + $0x50] sm:$0xff]
  %v1318 = vld [vmem:[%s5 + $0x58] sm:$0xf]
  %v1319 = vld [vmem:[%s5 + $0x60] sm:$0xff]
  %v1320 = vld [vmem:[%s5 + $0x68] sm:$0xff]
  %v1321 = vld [vmem:[%s5 + $0x70] sm:$0xf]
  %v1322 = vld [vmem:[%s5 + $0x78] sm:$0xff]
  %v1323 = vld [vmem:[%s5 + $0x80] sm:$0xff]
  %v1324 = vld [vmem:[%s5 + $0x88] sm:$0xf]
  %v1325 = vld [vmem:[%s5 + $0x90] sm:$0xff]
  %v1326 = vld [vmem:[%s5 + $0x98] sm:$0xff]
  %v1327 = vld [vmem:[%s5 + $0xa0] sm:$0xf]
  %v1328 = vld [vmem:[%s5 + $0xa8] sm:$0xff]
  %v1329 = vld [vmem:[%s5 + $0xb0] sm:$0xff]
  %v1330 = vld [vmem:[%s5 + $0xb8] sm:$0xf]
  %v1331 = vld [vmem:[%s5 + $0xc0] sm:$0xff]
  %v1332 = vld [vmem:[%s5 + $0xc8] sm:$0xff]
  %v1333 = vld [vmem:[%s5 + $0xd0] sm:$0xf]
  %v1334 = vld [vmem:[%s5 + $0xd8] sm:$0xff]
  %v1335 = vld [vmem:[%s5 + $0xe0] sm:$0xff]
  %v1336 = vld [vmem:[%s5 + $0xe8] sm:$0xf]
  %v1337 = vmul.f32 %v1307, %v1304
  %v1338 = vmul.f32 %v1308, %v1305
  %v1339 = vmul.f32 %v1309, %v1306
  %v1340 = vmul.f32 %v1310, %v1304
  %v1341 = vmul.f32 %v1311, %v1305
  %v1342 = vmul.f32 %v1312, %v1306
  %v1343 = vmul.f32 %v1313, %v1304
  %v1344 = vmul.f32 %v1314, %v1305
  %v1345 = vmul.f32 %v1315, %v1306
  %v1346 = vmul.f32 %v1316, %v1304
  %v1347 = vmul.f32 %v1317, %v1305
  %v1348 = vmul.f32 %v1318, %v1306
  %v1349 = vmul.f32 %v1319, %v1304
  %v1350 = vmul.f32 %v1320, %v1305
  %v1351 = vmul.f32 %v1321, %v1306
  %v1352 = vmul.f32 %v1322, %v1304
  %v1353 = vmul.f32 %v1323, %v1305
  %v1354 = vmul.f32 %v1324, %v1306
  %v1355 = vmul.f32 %v1325, %v1304
  %v1356 = vmul.f32 %v1326, %v1305
  %v1357 = vmul.f32 %v1327, %v1306
  %v1358 = vmul.f32 %v1328, %v1304
  %v1359 = vmul.f32 %v1329, %v1305
  %v1360 = vmul.f32 %v1330, %v1306
  %v1361 = vmul.f32 %v1331, %v1304
  %v1362 = vmul.f32 %v1332, %v1305
  %v1363 = vmul.f32 %v1333, %v1306
  %v1364 = vmul.f32 %v1334, %v1304
  %v1365 = vmul.f32 %v1335, %v1305
  %v1366 = vmul.f32 %v1336, %v1306
  %vm1367 = vcmask 801792
  %v1368 = vsel %vm1367, %v1337, 0.0
  %v1369 = vsel %vm1367, %v1338, 0.0
  %v1370 = vadd.f32 %v1368, %v1369
  %vm1371 = vcmask 797696
  %v1372 = vsel %vm1371, %v1339, 0.0
  %v1373 = vadd.f32 %v1370, %v1372
  %v1374 = vrot.slane %v1373, 4
  %v1375 = vadd.f32 %v1373, %v1374
  %v1376 = vrot.slane %v1375, 2
  %v1377 = vadd.f32 %v1375, %v1376
  %v1378 = vrot.slane %v1377, 1
  %v1379 = vadd.f32 %v1377, %v1378
  %v1380 = vsel %vm1367, %v1340, 0.0
  %v1381 = vsel %vm1367, %v1341, 0.0
  %v1382 = vadd.f32 %v1380, %v1381
  %v1383 = vsel %vm1371, %v1342, 0.0
  %v1384 = vadd.f32 %v1382, %v1383
  %v1385 = vrot.slane %v1384, 4
  %v1386 = vadd.f32 %v1384, %v1385
  %v1387 = vrot.slane %v1386, 2
  %v1388 = vadd.f32 %v1386, %v1387
  %v1389 = vrot.slane %v1388, 1
  %v1390 = vadd.f32 %v1388, %v1389
  %v1391 = vsel %vm1367, %v1343, 0.0
  %v1392 = vsel %vm1367, %v1344, 0.0
  %v1393 = vadd.f32 %v1391, %v1392
  %v1394 = vsel %vm1371, %v1345, 0.0
  %v1395 = vadd.f32 %v1393, %v1394
  %v1396 = vrot.slane %v1395, 4
  %v1397 = vadd.f32 %v1395, %v1396
  %v1398 = vrot.slane %v1397, 2
  %v1399 = vadd.f32 %v1397, %v1398
  %v1400 = vrot.slane %v1399, 1
  %v1401 = vadd.f32 %v1399, %v1400
  %v1402 = vsel %vm1367, %v1346, 0.0
  %v1403 = vsel %vm1367, %v1347, 0.0
  %v1404 = vadd.f32 %v1402, %v1403
  %v1405 = vsel %vm1371, %v1348, 0.0
  %v1406 = vadd.f32 %v1404, %v1405
  %v1407 = vrot.slane %v1406, 4
  %v1408 = vadd.f32 %v1406, %v1407
  %v1409 = vrot.slane %v1408, 2
  %v1410 = vadd.f32 %v1408, %v1409
  %v1411 = vrot.slane %v1410, 1
  %v1412 = vadd.f32 %v1410, %v1411
  %v1413 = vsel %vm1367, %v1349, 0.0
  %v1414 = vsel %vm1367, %v1350, 0.0
  %v1415 = vadd.f32 %v1413, %v1414
  %v1416 = vsel %vm1371, %v1351, 0.0
  %v1417 = vadd.f32 %v1415, %v1416
  %v1418 = vrot.slane %v1417, 4
  %v1419 = vadd.f32 %v1417, %v1418
  %v1420 = vrot.slane %v1419, 2
  %v1421 = vadd.f32 %v1419, %v1420
  %v1422 = vrot.slane %v1421, 1
  %v1423 = vadd.f32 %v1421, %v1422
  %v1424 = vsel %vm1367, %v1352, 0.0
  %v1425 = vsel %vm1367, %v1353, 0.0
  %v1426 = vadd.f32 %v1424, %v1425
  %v1427 = vsel %vm1371, %v1354, 0.0
  %v1428 = vadd.f32 %v1426, %v1427
  %v1429 = vrot.slane %v1428, 4
  %v1430 = vadd.f32 %v1428, %v1429
  %v1431 = vrot.slane %v1430, 2
  %v1432 = vadd.f32 %v1430, %v1431
  %v1433 = vrot.slane %v1432, 1
  %v1434 = vadd.f32 %v1432, %v1433
  %v1435 = vsel %vm1367, %v1355, 0.0
  %v1436 = vsel %vm1367, %v1356, 0.0
  %v1437 = vadd.f32 %v1435, %v1436
  %v1438 = vsel %vm1371, %v1357, 0.0
  %v1439 = vadd.f32 %v1437, %v1438
  %v1440 = vrot.slane %v1439, 4
  %v1441 = vadd.f32 %v1439, %v1440
  %v1442 = vrot.slane %v1441, 2
  %v1443 = vadd.f32 %v1441, %v1442
  %v1444 = vrot.slane %v1443, 1
  %v1445 = vadd.f32 %v1443, %v1444
  %v1446 = vsel %vm1367, %v1358, 0.0
  %v1447 = vsel %vm1367, %v1359, 0.0
  %v1448 = vadd.f32 %v1446, %v1447
  %v1449 = vsel %vm1371, %v1360, 0.0
  %v1450 = vadd.f32 %v1448, %v1449
  %v1451 = vrot.slane %v1450, 4
  %v1452 = vadd.f32 %v1450, %v1451
  %v1453 = vrot.slane %v1452, 2
  %v1454 = vadd.f32 %v1452, %v1453
  %v1455 = vrot.slane %v1454, 1
  %v1456 = vadd.f32 %v1454, %v1455
  %v1457 = vsel %vm1367, %v1361, 0.0
  %v1458 = vsel %vm1367, %v1362, 0.0
  %v1459 = vadd.f32 %v1457, %v1458
  %v1460 = vsel %vm1371, %v1363, 0.0
  %v1461 = vadd.f32 %v1459, %v1460
  %v1462 = vrot.slane %v1461, 4
  %v1463 = vadd.f32 %v1461, %v1462
  %v1464 = vrot.slane %v1463, 2
  %v1465 = vadd.f32 %v1463, %v1464
  %v1466 = vrot.slane %v1465, 1
  %v1467 = vadd.f32 %v1465, %v1466
  %v1468 = vsel %vm1367, %v1364, 0.0
  %v1469 = vsel %vm1367, %v1365, 0.0
  %v1470 = vadd.f32 %v1468, %v1469
  %v1471 = vsel %vm1371, %v1366, 0.0
  %v1472 = vadd.f32 %v1470, %v1471
  %v1473 = vrot.slane %v1472, 4
  %v1474 = vadd.f32 %v1472, %v1473
  %v1475 = vrot.slane %v1474, 2
  %v1476 = vadd.f32 %v1474, %v1475
  %v1477 = vrot.slane %v1476, 1
  %v1478 = vadd.f32 %v1476, %v1477
  %v1479 = vld [vmem:[%s6] sm:$0xff]
  %v1480 = vld [vmem:[%s6 + $0x8] sm:$0xff]
  %v1481 = vld [vmem:[%s6 + $0x10] sm:$0xff]
  %v1482 = vld [vmem:[%s6 + $0x18] sm:$0xff]
  %v1483 = vld [vmem:[%s6 + $0x20] sm:$0xff]
  %v1484 = vld [vmem:[%s6 + $0x28] sm:$0xff]
  %v1485 = vld [vmem:[%s6 + $0x30] sm:$0xff]
  %v1486 = vld [vmem:[%s6 + $0x38] sm:$0xff]
  %v1487 = vld [vmem:[%s6 + $0x40] sm:$0xff]
  %v1488 = vld [vmem:[%s6 + $0x48] sm:$0xff]
  %v1489 = vld [vmem:[%s6 + $0x50] sm:$0xff]
  %v1490 = vld [vmem:[%s6 + $0x58] sm:$0xff]
  %v1491 = vld [vmem:[%s6 + $0x60] sm:$0x3]
  %v1492 = vld [vmem:[%s7] sm:$0xff]
  %v1493 = vld [vmem:[%s7 + $0x8] sm:$0x3]
  %1495 = vset.pattern.permute.xlu0 0
  %1496 = vperm.xlu0 %1495, %v1492
  %v1497 = vpop.permute.xlu0 %1496
  %1500 = vset.pattern.permute.xlu0 0
  %1501 = vperm.xlu0 %1500, %v1493
  %v1502 = vpop.permute.xlu0 %1501
  %vm1514 = vcmask 1041409
  %v1515 = vsel %vm1514, %v1390, %v1379
  %vm1516 = vcmask 1042434
  %v1517 = vsel %vm1516, %v1401, %v1515
  %vm1518 = vcmask 1043459
  %v1519 = vsel %vm1518, %v1412, %v1517
  %vm1520 = vcmask 1044484
  %v1521 = vsel %vm1520, %v1423, %v1519
  %vm1522 = vcmask 1045509
  %v1523 = vsel %vm1522, %v1434, %v1521
  %vm1524 = vcmask 1046534
  %v1525 = vsel %vm1524, %v1445, %v1523
  %vm1526 = vcmask 1047559
  %v1527 = vsel %vm1526, %v1456, %v1525
  %v1528 = vsel %vm1514, %v1478, %v1467
  %v1529 = vsel %vm1367, %v1527, 0
  %v1531 = vsel %vm1367, %v1528, 0
  %vm1533 = vcmask 1041408
  %v1535 = vsel %vm1533, %v1491, 0
  %1537 = vmatpush.msra.mxu0 0.0
  %1538 = vmatpush.msra.mxu0 0.0
  %1539 = vmatpush.msra.mxu0 0.0
  %1540 = vmatpush.msra.mxu0 %v1535
  %1541 = vmatpush.msra.mxu0 %v1490
  %1542 = vmatpush.msra.mxu0 %v1489
  %1543 = vmatpush.msra.mxu0 %v1488
  %1544 = vmatpush.msra.mxu0 %v1487
  %1545 = vmatpush.msra.mxu0 %v1486
  %1546 = vmatpush.msra.mxu0 %v1485
  %1547 = vmatpush.msra.mxu0 %v1484
  %1548 = vmatpush.msra.mxu0 %v1483
  %1549 = vmatpush.msra.mxu0 %v1482
  %1550 = vmatpush.msra.mxu0 %v1481
  %1551 = vmatpush.msra.mxu0 %v1480
  %1552 = vmatpush.msra.mxu0 %v1479
  %1553 = vmatmul.f32.gmra.mxu0 %v1529
  %v1554 = vpop.f32.mrf.mxu0
  %v1555 = vadd.f32 %v1497, %v1554
  %1556 = vmatmul.f32.gmra.mxu0 %v1531
  %v1557 = vpop.f32.mrf.mxu0
  %v1558 = vadd.f32 %v1502, %v1557
  %1559 = vdwg.mxu0
  %v1560 = vsel %vm1533, %v1558, -inf
  %v1561 = vmax.f32 %v1555, %v1560
  %v1562 = vrot.slane %v1561, 4
  %v1563 = vmax.f32 %v1561, %v1562
  %v1564 = vrot.slane %v1563, 2
  %v1565 = vmax.f32 %v1563, %v1564
  %v1566 = vrot.slane %v1565, 1
  %v1567 = vmax.f32 %v1565, %v1566
  %v1568 = vsub.f32 %v1555, %v1567
  %v1569 = vsub.f32 %v1558, %v1567
  %v1570 = vmul.f32 %v1568, 1.442695
  %v1571 = vpow.pop %v1570
  %v1572 = vmul.f32 %v1569, 1.442695
  %v1573 = vpow.pop %v1572
  %v1574 = vsel %vm1533, %v1573, 0.0
  %v1575 = vadd.f32 %v1571, %v1574
  %v1576 = vrot.slane %v1575, 4
  %v1577 = vadd.f32 %v1575, %v1576
  %v1578 = vrot.slane %v1577, 2
  %v1579 = vadd.f32 %v1577, %v1578
  %v1580 = vrot.slane %v1579, 1
  %v1581 = vadd.f32 %v1579, %v1580
  %v1582 = vlog2.pop %v1581
  %v1583 = vmul.f32 %v1582, 0.6931472
  %v1584 = vadd.f32 %v1583, %v1567
  %v1585 = vsub.f32 %v1555, %v1584
  %v1586 = vsub.f32 %v1558, %v1584
  %1587 = vst [vmem:[%s8] sm:$0xff] %v1585
  %1588 = vst [vmem:[%s8 + $0x8] sm:$0x3] %v1586
  // Predicated region
  $region34: #{_lambda_.1} parent=0 // pred_check
    _
  $region35: #{_lambda_.1} parent=0 // pred_check_branch
    %1590 = sbr.rel (0) target = $region37
  $region36: #{_lambda_.1} parent=0 // pred_region
    _
  $region37: #{_lambda_.1} parent=0 // pred_fallthru
    _
  // Predicated region
  $region38: #{_lambda_.1} parent=0 // pred_check
    _
  $region39: #{_lambda_.1} parent=0 // pred_check_branch
    %1592 = sbr.rel (0) target = $region41
  $region40: #{_lambda_.1} parent=0 // pred_region
    _
  $region41: #{_lambda_.1} parent=0 // pred_fallthru
    _

</llo_original>
